<compile_context>
chip_gen: v5e
topology: v5e:2x2
jax: 0.10.0
libtpu: 0.0.40
codegen_flags: <defaults>
</compile_context>

<pallas_src>
import functools

import jax
import jax.numpy as jnp
from jax import lax
from jax.experimental import pallas as pl
from jax.experimental.pallas import tpu as pltpu


# ------------------------------ Pallas kernel -------------------------------

def _pyramid_maxout_kernel(x_ref, w_ref, b_ref, out_ref, *, H, W, beta, depth):
    # x_ref:   (1, H+2P, W+2P, Cin) f32   zero-padded input, P = beta-1 (largest-kernel halo)
    # w_ref:   (KMAX^2*Cin, beta*depth) bf16  all beta kernels embedded in KMAX x KMAX window
    # b_ref:   (1, beta*depth) f32        concatenated conv biases
    # out_ref: (1, H*W, depth) f32        maxout(ReLU) result for this sample
    Cin = x_ref.shape[3]
    KMAX = 2 * beta - 1
    HW = H * W

    x = x_ref[0]  # (H+2P, W+2P, Cin)

    # im2col for the KMAX x KMAX window: one (HW, KMAX^2*Cin) patch matrix so all beta
    # convolutions collapse into a single MXU matmul with a large contraction dim.
    taps = []
    for dh in range(KMAX):
        for dw in range(KMAX):
            taps.append(x[dh:dh + H, dw:dw + W, :].reshape(HW, Cin))
    patches = jnp.concatenate(taps, axis=1).astype(jnp.bfloat16)   # (HW, KMAX^2*Cin)

    # One matmul produces all beta*depth conv outputs at once (f32 accumulation).
    acc = jnp.dot(patches, w_ref[...],
                  preferred_element_type=jnp.float32)              # (HW, beta*depth)
    acc = acc + b_ref[...]

    # Maxout over the beta column blocks (each `depth` wide), then ReLU.
    m = acc[:, 0:depth]
    for i in range(1, beta):
        m = jnp.maximum(m, acc[:, i * depth:(i + 1) * depth])
    out_ref[0] = jnp.maximum(m, 0.0)


# ------------------------------ wrapper -------------------------------------

def pyramid_maxout_forward(x_nchw, weights, biases, *, depth, beta):
    """weights[i]: (k_i, k_i, Cin, depth) HWIO with k_i = 2*i+1; biases[i]: (depth,)."""
    N, Cin, H, W = x_nchw.shape
    KMAX = 2 * beta - 1
    P = beta - 1
    T = KMAX * KMAX

    # NCHW -> NHWC, single spatial halo pad for the largest kernel (done once, tiny).
    x = jnp.transpose(x_nchw, (0, 2, 3, 1))
    xp = jnp.pad(x, ((0, 0), (P, P), (P, P), (0, 0)))

    # Embed each (2i+1)-kernel centered in a KMAX x KMAX zero window and stack the
    # beta convs along the output-channel axis: columns = [conv0 | conv1 | ... ].
    w_blocks = []
    for i, w in enumerate(weights):
        k = 2 * i + 1
        off = (KMAX - k) // 2
        w_full = jnp.zeros((KMAX, KMAX, Cin, depth), jnp.float32)
        w_full = w_full.at[off:off + k, off:off + k].set(w)
        w_blocks.append(w_full)
    w_big = jnp.concatenate(w_blocks, axis=-1).reshape(T * Cin, beta * depth)
    w_big = w_big.astype(jnp.bfloat16)
    b_cat = jnp.concatenate(biases).reshape(1, beta * depth).astype(jnp.float32)

    kernel = functools.partial(_pyramid_maxout_kernel, H=H, W=W, beta=beta, depth=depth)
    out = pl.pallas_call(
        kernel,
        out_shape=jax.ShapeDtypeStruct((N, H * W, depth), jnp.float32),
        grid_spec=pltpu.PrefetchScalarGridSpec(
            num_scalar_prefetch=0,
            grid=(N,),  # one batch element per grid step
            in_specs=[
                pl.BlockSpec((1, H + 2 * P, W + 2 * P, Cin), lambda n: (n, 0, 0, 0)),
                pl.BlockSpec((T * Cin, beta * depth), lambda n: (0, 0)),
                pl.BlockSpec((1, beta * depth), lambda n: (0, 0)),
            ],
            out_specs=pl.BlockSpec((1, H * W, depth), lambda n: (n, 0, 0)),
        ),
        compiler_params=pltpu.CompilerParams(
            dimension_semantics=("parallel",)),
    )(xp, w_big, b_cat)

    # (N, H*W, depth) -> (N, depth, H, W); output tensor is tiny (N*H*W*depth floats).
    return jnp.transpose(out.reshape(N, H, W, depth), (0, 3, 1, 2))


# ------------------------------ parameters ----------------------------------

def init_params(key, in_channel, depth, beta):
    """PyTorch-style Conv2d init: U(-1/sqrt(fan_in), 1/sqrt(fan_in)) for weight and bias."""
    weights, biases = [], []
    keys = jax.random.split(key, 2 * beta)
    for i in range(beta):
        k = 2 * i + 1
        fan_in = in_channel * k * k
        bound = float(fan_in) ** -0.5
        w = jax.random.uniform(keys[2 * i], (k, k, in_channel, depth),
                               jnp.float32, -bound, bound)
        b = jax.random.uniform(keys[2 * i + 1], (depth,), jnp.float32, -bound, bound)
        weights.append(w)
        biases.append(b)
    return weights, biases


# --------------------------- pure-JAX reference -----------------------------

def pyramid_maxout_ref(x_nchw, weights, biases):
    x = jnp.transpose(x_nchw, (0, 2, 3, 1))                       # NCHW -> NHWC
    outs = []
    for i, (w, b) in enumerate(zip(weights, biases)):
        y = lax.conv_general_dilated(
            x, w, (1, 1), [(i, i), (i, i)],
            dimension_numbers=("NHWC", "HWIO", "NHWC")) + b
        outs.append(y)
    r = jnp.max(jnp.stack(outs, axis=0), axis=0)
    return jnp.transpose(jnp.maximum(r, 0.0), (0, 3, 1, 2))       # NHWC -> NCHW


# -------------------------------- main ---------------------------------------

if __name__ == "__main__":
    key = jax.random.PRNGKey(0)
    kx, kp = jax.random.split(key)

    # Pyramid_maxout defaults: in_channel=64, depth=3, beta=4 (kernels 1,3,5,7)
    in_channel, depth, beta = 64, 3, 4
    N, H, W = 2, 16, 16

    x = jax.random.normal(kx, (N, in_channel, H, W), jnp.float32)
    weights, biases = init_params(kp, in_channel, depth, beta)

    fwd = jax.jit(functools.partial(pyramid_maxout_forward, depth=depth, beta=beta))
    out = jax.block_until_ready(fwd(x, weights, biases))

    assert out.shape == (N, depth, H, W), out.shape
    ref = pyramid_maxout_ref(x, weights, biases)
    max_err = float(jnp.max(jnp.abs(out - ref)))
    assert bool(jnp.allclose(out, ref, atol=3e-2, rtol=3e-2)), max_err

    print("KERNEL_OK")
</pallas_src>

<mosaic_0001>
module attributes {stable_mosaic.version = 11 : i64} {
  func.func @_pyramid_maxout_kernel(%arg0: i32, %arg1: memref<1x22x22x64xf32, #tpu.memory_space<vmem>>, %arg2: memref<3136x12xbf16, #tpu.memory_space<vmem>>, %arg3: memref<1x12xf32, #tpu.memory_space<vmem>>, %arg4: memref<1x256x3xf32, #tpu.memory_space<vmem>>) attributes {dimension_semantics = [#tpu.dimension_semantics<parallel>], iteration_bounds = array<i64: 2>, scalar_prefetch = 0 : i64, scratch_operands = 0 : i64, tpu.core_type = #tpu.core_type<tc>, window_params = [{transform_indices = @transform_0, window_bounds = array<i64: 1, 22, 22, 64>}, {pipeline_mode = #tpu.pipeline_mode<synchronous>, transform_indices = @transform_1, window_bounds = array<i64: 3136, 12>}, {pipeline_mode = #tpu.pipeline_mode<synchronous>, transform_indices = @transform_2, window_bounds = array<i64: 1, 12>}, {transform_indices = @transform_3, window_bounds = array<i64: 1, 256, 3>}]} {
    %c0 = arith.constant 0 : index
    %c0_0 = arith.constant 0 : index
    %c0_1 = arith.constant 0 : index
    %c0_2 = arith.constant 0 : index
    %0 = vector.load %arg1[%c0, %c0_0, %c0_1, %c0_2] : memref<1x22x22x64xf32, #tpu.memory_space<vmem>>, vector<1x22x22x64xf32>
    %1 = vector.shape_cast %0 : vector<1x22x22x64xf32> to vector<22x22x64xf32>
    %2 = vector.extract_strided_slice %1 {offsets = [0, 0, 0], sizes = [16, 16, 64], strides = [1, 1, 1]} : vector<22x22x64xf32> to vector<16x16x64xf32>
    %3 = vector.shape_cast %2 : vector<16x16x64xf32> to vector<256x64xf32>
    %4 = vector.extract_strided_slice %1 {offsets = [0, 1, 0], sizes = [16, 16, 64], strides = [1, 1, 1]} : vector<22x22x64xf32> to vector<16x16x64xf32>
    %5 = vector.shape_cast %4 : vector<16x16x64xf32> to vector<256x64xf32>
    %6 = vector.extract_strided_slice %1 {offsets = [0, 2, 0], sizes = [16, 16, 64], strides = [1, 1, 1]} : vector<22x22x64xf32> to vector<16x16x64xf32>
    %7 = vector.shape_cast %6 : vector<16x16x64xf32> to vector<256x64xf32>
    %8 = vector.extract_strided_slice %1 {offsets = [0, 3, 0], sizes = [16, 16, 64], strides = [1, 1, 1]} : vector<22x22x64xf32> to vector<16x16x64xf32>
    %9 = vector.shape_cast %8 : vector<16x16x64xf32> to vector<256x64xf32>
    %10 = vector.extract_strided_slice %1 {offsets = [0, 4, 0], sizes = [16, 16, 64], strides = [1, 1, 1]} : vector<22x22x64xf32> to vector<16x16x64xf32>
    %11 = vector.shape_cast %10 : vector<16x16x64xf32> to vector<256x64xf32>
    %12 = vector.extract_strided_slice %1 {offsets = [0, 5, 0], sizes = [16, 16, 64], strides = [1, 1, 1]} : vector<22x22x64xf32> to vector<16x16x64xf32>
    %13 = vector.shape_cast %12 : vector<16x16x64xf32> to vector<256x64xf32>
    %14 = vector.extract_strided_slice %1 {offsets = [0, 6, 0], sizes = [16, 16, 64], strides = [1, 1, 1]} : vector<22x22x64xf32> to vector<16x16x64xf32>
    %15 = vector.shape_cast %14 : vector<16x16x64xf32> to vector<256x64xf32>
    %16 = vector.extract_strided_slice %1 {offsets = [1, 0, 0], sizes = [16, 16, 64], strides = [1, 1, 1]} : vector<22x22x64xf32> to vector<16x16x64xf32>
    %17 = vector.shape_cast %16 : vector<16x16x64xf32> to vector<256x64xf32>
    %18 = vector.extract_strided_slice %1 {offsets = [1, 1, 0], sizes = [16, 16, 64], strides = [1, 1, 1]} : vector<22x22x64xf32> to vector<16x16x64xf32>
    %19 = vector.shape_cast %18 : vector<16x16x64xf32> to vector<256x64xf32>
    %20 = vector.extract_strided_slice %1 {offsets = [1, 2, 0], sizes = [16, 16, 64], strides = [1, 1, 1]} : vector<22x22x64xf32> to vector<16x16x64xf32>
    %21 = vector.shape_cast %20 : vector<16x16x64xf32> to vector<256x64xf32>
    %22 = vector.extract_strided_slice %1 {offsets = [1, 3, 0], sizes = [16, 16, 64], strides = [1, 1, 1]} : vector<22x22x64xf32> to vector<16x16x64xf32>
    %23 = vector.shape_cast %22 : vector<16x16x64xf32> to vector<256x64xf32>
    %24 = vector.extract_strided_slice %1 {offsets = [1, 4, 0], sizes = [16, 16, 64], strides = [1, 1, 1]} : vector<22x22x64xf32> to vector<16x16x64xf32>
    %25 = vector.shape_cast %24 : vector<16x16x64xf32> to vector<256x64xf32>
    %26 = vector.extract_strided_slice %1 {offsets = [1, 5, 0], sizes = [16, 16, 64], strides = [1, 1, 1]} : vector<22x22x64xf32> to vector<16x16x64xf32>
    %27 = vector.shape_cast %26 : vector<16x16x64xf32> to vector<256x64xf32>
    %28 = vector.extract_strided_slice %1 {offsets = [1, 6, 0], sizes = [16, 16, 64], strides = [1, 1, 1]} : vector<22x22x64xf32> to vector<16x16x64xf32>
    %29 = vector.shape_cast %28 : vector<16x16x64xf32> to vector<256x64xf32>
    %30 = vector.extract_strided_slice %1 {offsets = [2, 0, 0], sizes = [16, 16, 64], strides = [1, 1, 1]} : vector<22x22x64xf32> to vector<16x16x64xf32>
    %31 = vector.shape_cast %30 : vector<16x16x64xf32> to vector<256x64xf32>
    %32 = vector.extract_strided_slice %1 {offsets = [2, 1, 0], sizes = [16, 16, 64], strides = [1, 1, 1]} : vector<22x22x64xf32> to vector<16x16x64xf32>
    %33 = vector.shape_cast %32 : vector<16x16x64xf32> to vector<256x64xf32>
    %34 = vector.extract_strided_slice %1 {offsets = [2, 2, 0], sizes = [16, 16, 64], strides = [1, 1, 1]} : vector<22x22x64xf32> to vector<16x16x64xf32>
    %35 = vector.shape_cast %34 : vector<16x16x64xf32> to vector<256x64xf32>
    %36 = vector.extract_strided_slice %1 {offsets = [2, 3, 0], sizes = [16, 16, 64], strides = [1, 1, 1]} : vector<22x22x64xf32> to vector<16x16x64xf32>
    %37 = vector.shape_cast %36 : vector<16x16x64xf32> to vector<256x64xf32>
    %38 = vector.extract_strided_slice %1 {offsets = [2, 4, 0], sizes = [16, 16, 64], strides = [1, 1, 1]} : vector<22x22x64xf32> to vector<16x16x64xf32>
    %39 = vector.shape_cast %38 : vector<16x16x64xf32> to vector<256x64xf32>
    %40 = vector.extract_strided_slice %1 {offsets = [2, 5, 0], sizes = [16, 16, 64], strides = [1, 1, 1]} : vector<22x22x64xf32> to vector<16x16x64xf32>
    %41 = vector.shape_cast %40 : vector<16x16x64xf32> to vector<256x64xf32>
    %42 = vector.extract_strided_slice %1 {offsets = [2, 6, 0], sizes = [16, 16, 64], strides = [1, 1, 1]} : vector<22x22x64xf32> to vector<16x16x64xf32>
    %43 = vector.shape_cast %42 : vector<16x16x64xf32> to vector<256x64xf32>
    %44 = vector.extract_strided_slice %1 {offsets = [3, 0, 0], sizes = [16, 16, 64], strides = [1, 1, 1]} : vector<22x22x64xf32> to vector<16x16x64xf32>
    %45 = vector.shape_cast %44 : vector<16x16x64xf32> to vector<256x64xf32>
    %46 = vector.extract_strided_slice %1 {offsets = [3, 1, 0], sizes = [16, 16, 64], strides = [1, 1, 1]} : vector<22x22x64xf32> to vector<16x16x64xf32>
    %47 = vector.shape_cast %46 : vector<16x16x64xf32> to vector<256x64xf32>
    %48 = vector.extract_strided_slice %1 {offsets = [3, 2, 0], sizes = [16, 16, 64], strides = [1, 1, 1]} : vector<22x22x64xf32> to vector<16x16x64xf32>
    %49 = vector.shape_cast %48 : vector<16x16x64xf32> to vector<256x64xf32>
    %50 = vector.extract_strided_slice %1 {offsets = [3, 3, 0], sizes = [16, 16, 64], strides = [1, 1, 1]} : vector<22x22x64xf32> to vector<16x16x64xf32>
    %51 = vector.shape_cast %50 : vector<16x16x64xf32> to vector<256x64xf32>
    %52 = vector.extract_strided_slice %1 {offsets = [3, 4, 0], sizes = [16, 16, 64], strides = [1, 1, 1]} : vector<22x22x64xf32> to vector<16x16x64xf32>
    %53 = vector.shape_cast %52 : vector<16x16x64xf32> to vector<256x64xf32>
    %54 = vector.extract_strided_slice %1 {offsets = [3, 5, 0], sizes = [16, 16, 64], strides = [1, 1, 1]} : vector<22x22x64xf32> to vector<16x16x64xf32>
    %55 = vector.shape_cast %54 : vector<16x16x64xf32> to vector<256x64xf32>
    %56 = vector.extract_strided_slice %1 {offsets = [3, 6, 0], sizes = [16, 16, 64], strides = [1, 1, 1]} : vector<22x22x64xf32> to vector<16x16x64xf32>
    %57 = vector.shape_cast %56 : vector<16x16x64xf32> to vector<256x64xf32>
    %58 = vector.extract_strided_slice %1 {offsets = [4, 0, 0], sizes = [16, 16, 64], strides = [1, 1, 1]} : vector<22x22x64xf32> to vector<16x16x64xf32>
    %59 = vector.shape_cast %58 : vector<16x16x64xf32> to vector<256x64xf32>
    %60 = vector.extract_strided_slice %1 {offsets = [4, 1, 0], sizes = [16, 16, 64], strides = [1, 1, 1]} : vector<22x22x64xf32> to vector<16x16x64xf32>
    %61 = vector.shape_cast %60 : vector<16x16x64xf32> to vector<256x64xf32>
    %62 = vector.extract_strided_slice %1 {offsets = [4, 2, 0], sizes = [16, 16, 64], strides = [1, 1, 1]} : vector<22x22x64xf32> to vector<16x16x64xf32>
    %63 = vector.shape_cast %62 : vector<16x16x64xf32> to vector<256x64xf32>
    %64 = vector.extract_strided_slice %1 {offsets = [4, 3, 0], sizes = [16, 16, 64], strides = [1, 1, 1]} : vector<22x22x64xf32> to vector<16x16x64xf32>
    %65 = vector.shape_cast %64 : vector<16x16x64xf32> to vector<256x64xf32>
    %66 = vector.extract_strided_slice %1 {offsets = [4, 4, 0], sizes = [16, 16, 64], strides = [1, 1, 1]} : vector<22x22x64xf32> to vector<16x16x64xf32>
    %67 = vector.shape_cast %66 : vector<16x16x64xf32> to vector<256x64xf32>
    %68 = vector.extract_strided_slice %1 {offsets = [4, 5, 0], sizes = [16, 16, 64], strides = [1, 1, 1]} : vector<22x22x64xf32> to vector<16x16x64xf32>
    %69 = vector.shape_cast %68 : vector<16x16x64xf32> to vector<256x64xf32>
    %70 = vector.extract_strided_slice %1 {offsets = [4, 6, 0], sizes = [16, 16, 64], strides = [1, 1, 1]} : vector<22x22x64xf32> to vector<16x16x64xf32>
    %71 = vector.shape_cast %70 : vector<16x16x64xf32> to vector<256x64xf32>
    %72 = vector.extract_strided_slice %1 {offsets = [5, 0, 0], sizes = [16, 16, 64], strides = [1, 1, 1]} : vector<22x22x64xf32> to vector<16x16x64xf32>
    %73 = vector.shape_cast %72 : vector<16x16x64xf32> to vector<256x64xf32>
    %74 = vector.extract_strided_slice %1 {offsets = [5, 1, 0], sizes = [16, 16, 64], strides = [1, 1, 1]} : vector<22x22x64xf32> to vector<16x16x64xf32>
    %75 = vector.shape_cast %74 : vector<16x16x64xf32> to vector<256x64xf32>
    %76 = vector.extract_strided_slice %1 {offsets = [5, 2, 0], sizes = [16, 16, 64], strides = [1, 1, 1]} : vector<22x22x64xf32> to vector<16x16x64xf32>
    %77 = vector.shape_cast %76 : vector<16x16x64xf32> to vector<256x64xf32>
    %78 = vector.extract_strided_slice %1 {offsets = [5, 3, 0], sizes = [16, 16, 64], strides = [1, 1, 1]} : vector<22x22x64xf32> to vector<16x16x64xf32>
    %79 = vector.shape_cast %78 : vector<16x16x64xf32> to vector<256x64xf32>
    %80 = vector.extract_strided_slice %1 {offsets = [5, 4, 0], sizes = [16, 16, 64], strides = [1, 1, 1]} : vector<22x22x64xf32> to vector<16x16x64xf32>
    %81 = vector.shape_cast %80 : vector<16x16x64xf32> to vector<256x64xf32>
    %82 = vector.extract_strided_slice %1 {offsets = [5, 5, 0], sizes = [16, 16, 64], strides = [1, 1, 1]} : vector<22x22x64xf32> to vector<16x16x64xf32>
    %83 = vector.shape_cast %82 : vector<16x16x64xf32> to vector<256x64xf32>
    %84 = vector.extract_strided_slice %1 {offsets = [5, 6, 0], sizes = [16, 16, 64], strides = [1, 1, 1]} : vector<22x22x64xf32> to vector<16x16x64xf32>
    %85 = vector.shape_cast %84 : vector<16x16x64xf32> to vector<256x64xf32>
    %86 = vector.extract_strided_slice %1 {offsets = [6, 0, 0], sizes = [16, 16, 64], strides = [1, 1, 1]} : vector<22x22x64xf32> to vector<16x16x64xf32>
    %87 = vector.shape_cast %86 : vector<16x16x64xf32> to vector<256x64xf32>
    %88 = vector.extract_strided_slice %1 {offsets = [6, 1, 0], sizes = [16, 16, 64], strides = [1, 1, 1]} : vector<22x22x64xf32> to vector<16x16x64xf32>
    %89 = vector.shape_cast %88 : vector<16x16x64xf32> to vector<256x64xf32>
    %90 = vector.extract_strided_slice %1 {offsets = [6, 2, 0], sizes = [16, 16, 64], strides = [1, 1, 1]} : vector<22x22x64xf32> to vector<16x16x64xf32>
    %91 = vector.shape_cast %90 : vector<16x16x64xf32> to vector<256x64xf32>
    %92 = vector.extract_strided_slice %1 {offsets = [6, 3, 0], sizes = [16, 16, 64], strides = [1, 1, 1]} : vector<22x22x64xf32> to vector<16x16x64xf32>
    %93 = vector.shape_cast %92 : vector<16x16x64xf32> to vector<256x64xf32>
    %94 = vector.extract_strided_slice %1 {offsets = [6, 4, 0], sizes = [16, 16, 64], strides = [1, 1, 1]} : vector<22x22x64xf32> to vector<16x16x64xf32>
    %95 = vector.shape_cast %94 : vector<16x16x64xf32> to vector<256x64xf32>
    %96 = vector.extract_strided_slice %1 {offsets = [6, 5, 0], sizes = [16, 16, 64], strides = [1, 1, 1]} : vector<22x22x64xf32> to vector<16x16x64xf32>
    %97 = vector.shape_cast %96 : vector<16x16x64xf32> to vector<256x64xf32>
    %98 = vector.extract_strided_slice %1 {offsets = [6, 6, 0], sizes = [16, 16, 64], strides = [1, 1, 1]} : vector<22x22x64xf32> to vector<16x16x64xf32>
    %99 = vector.shape_cast %98 : vector<16x16x64xf32> to vector<256x64xf32>
    %100 = tpu.concatenate %3, %5, %7, %9, %11, %13, %15, %17, %19, %21, %23, %25, %27, %29, %31, %33 in 1 : vector<256x64xf32>, vector<256x64xf32>, vector<256x64xf32>, vector<256x64xf32>, vector<256x64xf32>, vector<256x64xf32>, vector<256x64xf32>, vector<256x64xf32>, vector<256x64xf32>, vector<256x64xf32>, vector<256x64xf32>, vector<256x64xf32>, vector<256x64xf32>, vector<256x64xf32>, vector<256x64xf32>, vector<256x64xf32> -> vector<256x1024xf32>
    %101 = tpu.concatenate %35, %37, %39, %41, %43, %45, %47, %49, %51, %53, %55, %57, %59, %61, %63, %65 in 1 : vector<256x64xf32>, vector<256x64xf32>, vector<256x64xf32>, vector<256x64xf32>, vector<256x64xf32>, vector<256x64xf32>, vector<256x64xf32>, vector<256x64xf32>, vector<256x64xf32>, vector<256x64xf32>, vector<256x64xf32>, vector<256x64xf32>, vector<256x64xf32>, vector<256x64xf32>, vector<256x64xf32>, vector<256x64xf32> -> vector<256x1024xf32>
    %102 = tpu.concatenate %67, %69, %71, %73, %75, %77, %79, %81, %83, %85, %87, %89, %91, %93, %95, %97 in 1 : vector<256x64xf32>, vector<256x64xf32>, vector<256x64xf32>, vector<256x64xf32>, vector<256x64xf32>, vector<256x64xf32>, vector<256x64xf32>, vector<256x64xf32>, vector<256x64xf32>, vector<256x64xf32>, vector<256x64xf32>, vector<256x64xf32>, vector<256x64xf32>, vector<256x64xf32>, vector<256x64xf32>, vector<256x64xf32> -> vector<256x1024xf32>
    %103 = tpu.concatenate %100, %101, %102, %99 in 1 : vector<256x1024xf32>, vector<256x1024xf32>, vector<256x1024xf32>, vector<256x64xf32> -> vector<256x3136xf32>
    %104 = arith.truncf %103 : vector<256x3136xf32> to vector<256x3136xbf16>
    %c0_3 = arith.constant 0 : index
    %c0_4 = arith.constant 0 : index
    %105 = vector.load %arg2[%c0_3, %c0_4] : memref<3136x12xbf16, #tpu.memory_space<vmem>>, vector<3136x12xbf16>
    %cst = arith.constant dense<0.000000e+00> : vector<256x12xf32>
    %106 = tpu.matmul %104, %105, %cst {dimension_numbers = #tpu.dot_dimension_numbers<[1], [0], [0], [1], [0, 0, 1, 1], [], []>} : vector<256x3136xbf16>, vector<3136x12xbf16>, vector<256x12xf32> -> vector<256x12xf32>
    %c0_5 = arith.constant 0 : index
    %c0_6 = arith.constant 0 : index
    %107 = vector.load %arg3[%c0_5, %c0_6] : memref<1x12xf32, #tpu.memory_space<vmem>>, vector<1x12xf32>
    %108 = vector.broadcast %107 : vector<1x12xf32> to vector<256x12xf32>
    %109 = arith.addf %106, %108 : vector<256x12xf32>
    %110 = vector.extract_strided_slice %109 {offsets = [0, 0], sizes = [256, 3], strides = [1, 1]} : vector<256x12xf32> to vector<256x3xf32>
    %111 = vector.extract_strided_slice %109 {offsets = [0, 3], sizes = [256, 3], strides = [1, 1]} : vector<256x12xf32> to vector<256x3xf32>
    %112 = arith.maximumf %110, %111 : vector<256x3xf32>
    %113 = vector.extract_strided_slice %109 {offsets = [0, 6], sizes = [256, 3], strides = [1, 1]} : vector<256x12xf32> to vector<256x3xf32>
    %114 = arith.maximumf %112, %113 : vector<256x3xf32>
    %115 = vector.extract_strided_slice %109 {offsets = [0, 9], sizes = [256, 3], strides = [1, 1]} : vector<256x12xf32> to vector<256x3xf32>
    %116 = arith.maximumf %114, %115 : vector<256x3xf32>
    %cst_7 = arith.constant 0.000000e+00 : f32
    %117 = vector.broadcast %cst_7 : f32 to vector<256x3xf32>
    %118 = arith.maximumf %116, %117 : vector<256x3xf32>
    %c0_8 = arith.constant 0 : index
    %c0_9 = arith.constant 0 : index
    %c0_10 = arith.constant 0 : index
    %119 = vector.load %arg4[%c0_8, %c0_9, %c0_10] : memref<1x256x3xf32, #tpu.memory_space<vmem>>, vector<1x256x3xf32>
    %120 = vector.shape_cast %119 : vector<1x256x3xf32> to vector<256x3xf32>
    %121 = vector.shape_cast %118 : vector<256x3xf32> to vector<1x256x3xf32>
    tpu.vector_store %arg4[%c0_8, %c0_9, %c0_10], %121 {strides = array<i32>} : memref<1x256x3xf32, #tpu.memory_space<vmem>>, vector<1x256x3xf32>,
    return
  }
  func.func @transform_0(%arg0: i32) -> (i32, i32, i32, i32) {
    %c0_i32 = arith.constant 0 : i32
    %c0_i32_0 = arith.constant 0 : i32
    %c0_i32_1 = arith.constant 0 : i32
    %c0_i32_2 = arith.constant 0 : i32
    return %arg0, %c0_i32, %c0_i32_0, %c0_i32_1 : i32, i32, i32, i32
  }
  func.func @transform_1(%arg0: i32) -> (i32, i32) {
    %c0_i32 = arith.constant 0 : i32
    %c0_i32_0 = arith.constant 0 : i32
    %c0_i32_1 = arith.constant 0 : i32
    return %c0_i32, %c0_i32_0 : i32, i32
  }
  func.func @transform_2(%arg0: i32) -> (i32, i32) {
    %c0_i32 = arith.constant 0 : i32
    %c0_i32_0 = arith.constant 0 : i32
    %c0_i32_1 = arith.constant 0 : i32
    return %c0_i32, %c0_i32_0 : i32, i32
  }
  func.func @transform_3(%arg0: i32) -> (i32, i32, i32) {
    %c0_i32 = arith.constant 0 : i32
    %c0_i32_0 = arith.constant 0 : i32
    %c0_i32_1 = arith.constant 0 : i32
    return %arg0, %c0_i32, %c0_i32_0 : i32, i32, i32
  }
}

</mosaic_0001>

<llo_original>
// kernel: pyramid_maxout_forward.1
$region0: #{pyramid_maxout_forward.1}
  #allocation0 [shape = 'u32[]', space=smem, size = 0x4, offset = 0x4, fixed_abs, tag = 'smem constant byte address 0x4 - core index']
  #allocation1 [shape = 'u32[72,128]{1,0:T(1,128)}', space=vmem, size = 0x9000, scoped, tag = 'internal scratch']
  %s0 = inlined_call_operand.vmem [shape: f32[2,22,22,64], index: 0, kind: input, shape index: {}]
  %s1 = inlined_call_operand.vmem [shape: bf16[3136,12], index: 1, kind: input, shape index: {}]
  %s2 = inlined_call_operand.vmem [shape: f32[1,12], index: 2, kind: input, shape index: {}]
  %s3 = inlined_call_operand.vmem [shape: f32[2,256,3], index: 3, kind: output, shape index: {}]
  %s4 = sld [smem:[#allocation0]]
  $region45: #{pyramid_maxout_forward.1} parent=0
    _
  %s6 = ssub.s32 1, %s4
  %s7 = scalar_select 0, %s6, %s4
  loop: start=0, step=1, limit=4
  $region2: #{pyramid_maxout_forward.1} parent=0 // loop_pre_header
    _
  $region3: #{pyramid_maxout_forward.1} parent=0 // loop_header
    %s9 = sphi 0, %s13
    %p10 = scmp.ge.s32.totalorder %s9, 4
    %s19 = sphi 0, %s21
    %s22 = sphi 0, %s19
    %s23 = sphi 0, %s22
    %s39 = sphi 0, %s23
    %s43 = sphi 0, %s43
    %s45 = sphi 0, %s43
    %s46 = sphi 0, %s45
    %s60 = sphi 0, %s46
    %s64 = sphi 0, %s64
    %s66 = sphi 0, %s64
    %s67 = sphi 0, %s66
    %s81 = sphi 0, %s67
    %s87 = sphi 0, %s89
    %s90 = sphi 0, %s87
    %s91 = sphi 0, %s90
    %s107 = sphi 0, %s91
  $region4: #{pyramid_maxout_forward.1} parent=0 // loop_header_branch
    %12 = sbr.rel (%p10) target = $region8
  $region5: #{pyramid_maxout_forward.1} parent=0 // loop_body
    %s14 = ssub.s32 %s9, 1
    %s15 = ssub.s32 %s9, 2
    %s16 = sadd.s32 %s9, 1
    %s17 = ssub.s32 %s9, %s16
    %p18 = scmp.eq.s32.totalorder %s17, 0
    %s20 = sadd.s32 %s19, 1
    %s21 = scalar_select %p18, %s19, %s20
    %p24 = pneg %p18
    %p25 = scmp.eq.s32.totalorder %s9, 1
    %p26 = por %p24, %p25
    %p27 = scmp.ne.s32.totalorder %s19, %s22
    %p28 = scmp.eq.s32.totalorder %s9, 0
    %p29 = por %p27, %p28
    %p30 = scmp.ne.s32.totalorder %s19, %s22
    %p31 = scmp.eq.s32.totalorder %s14, 1
    %p32 = por %p30, %p31
    %p33 = scmp.ne.s32.totalorder %s22, %s23
    %p34 = scmp.eq.s32.totalorder %s14, 0
    %p35 = por %p33, %p34
    %p36 = scmp.ne.s32.totalorder %s22, %s23
    %p37 = scmp.eq.s32.totalorder %s15, 1
    %p38 = por %p36, %p37
    %p40 = scmp.ne.s32.totalorder %s23, %s39
    %p41 = scmp.eq.s32.totalorder %s15, 0
    %p42 = por %p40, %p41
    %s44 = sadd.s32 %s43, 1
    %p47 = scmp.eq.s32.totalorder %s9, 1
    %p48 = scmp.ne.s32.totalorder %s43, %s45
    %p49 = scmp.eq.s32.totalorder %s9, 0
    %p50 = por %p48, %p49
    %p51 = scmp.ne.s32.totalorder %s43, %s45
    %p52 = scmp.eq.s32.totalorder %s14, 1
    %p53 = por %p51, %p52
    %p54 = scmp.ne.s32.totalorder %s45, %s46
    %p55 = scmp.eq.s32.totalorder %s14, 0
    %p56 = por %p54, %p55
    %p57 = scmp.ne.s32.totalorder %s45, %s46
    %p58 = scmp.eq.s32.totalorder %s15, 1
    %p59 = por %p57, %p58
    %p61 = scmp.ne.s32.totalorder %s46, %s60
    %p62 = scmp.eq.s32.totalorder %s15, 0
    %p63 = por %p61, %p62
    %s65 = sadd.s32 %s64, 1
    %p68 = scmp.eq.s32.totalorder %s9, 1
    %p69 = scmp.ne.s32.totalorder %s64, %s66
    %p70 = scmp.eq.s32.totalorder %s9, 0
    %p71 = por %p69, %p70
    %p72 = scmp.ne.s32.totalorder %s64, %s66
    %p73 = scmp.eq.s32.totalorder %s14, 1
    %p74 = por %p72, %p73
    %p75 = scmp.ne.s32.totalorder %s66, %s67
    %p76 = scmp.eq.s32.totalorder %s14, 0
    %p77 = por %p75, %p76
    %p78 = scmp.ne.s32.totalorder %s66, %s67
    %p79 = scmp.eq.s32.totalorder %s15, 1
    %p80 = por %p78, %p79
    %p82 = scmp.ne.s32.totalorder %s67, %s81
    %p83 = scmp.eq.s32.totalorder %s15, 0
    %p84 = por %p82, %p83
    %s85 = ssub.s32 %s9, %s16
    %p86 = scmp.eq.s32.totalorder %s85, 0
    %s88 = sadd.s32 %s87, 1
    %s89 = scalar_select %p86, %s87, %s88
    %p92 = pneg %p86
    %p93 = scmp.eq.s32.totalorder %s9, 1
    %p94 = por %p92, %p93
    %p95 = scmp.ne.s32.totalorder %s87, %s90
    %p96 = scmp.eq.s32.totalorder %s9, 0
    %p97 = por %p95, %p96
    %p98 = scmp.ne.s32.totalorder %s87, %s90
    %p99 = scmp.eq.s32.totalorder %s14, 1
    %p100 = por %p98, %p99
    %p101 = scmp.ne.s32.totalorder %s90, %s91
    %p102 = scmp.eq.s32.totalorder %s14, 0
    %p103 = por %p101, %p102
    %p104 = scmp.ne.s32.totalorder %s90, %s91
    %p105 = scmp.eq.s32.totalorder %s15, 1
    %p106 = por %p104, %p105
    %p108 = scmp.ne.s32.totalorder %s91, %s107
    %p109 = scmp.eq.s32.totalorder %s15, 0
    %p110 = por %p108, %p109
    %p111 = scmp.le.s32.totalorder 1, %s9
    %p112 = scmp.lt.s32.totalorder %s9, 3
    %p113 = pnand %p111, %p112
    %p114 = pneg %p113
    // Predicated region
    $region9: #{pyramid_maxout_forward.1} parent=5 // pred_check
      _
    $region10: #{pyramid_maxout_forward.1} parent=5 // pred_check_branch
      %116 = sbr.rel (%p113) target = $region12
    $region11: #{pyramid_maxout_forward.1} parent=5 // pred_region
      %s117 = ssub.s32 %s9, 1
      // Predicated region
      $region13: #{pyramid_maxout_forward.1} parent=11 // pred_check
        %p118 = pneg %p56
      $region14: #{pyramid_maxout_forward.1} parent=11 // pred_check_branch
        %120 = sbr.rel (%p118) target = $region16
      $region15: #{pyramid_maxout_forward.1} parent=11 // pred_region
        _
      $region16: #{pyramid_maxout_forward.1} parent=11 // pred_fallthru
        _
      // Predicated region
      $region17: #{pyramid_maxout_forward.1} parent=11 // pred_check
        %p121 = pneg %p77
      $region18: #{pyramid_maxout_forward.1} parent=11 // pred_check_branch
        %123 = sbr.rel (%p121) target = $region20
      $region19: #{pyramid_maxout_forward.1} parent=11 // pred_region
        _
      $region20: #{pyramid_maxout_forward.1} parent=11 // pred_fallthru
        _
    $region12: #{pyramid_maxout_forward.1} parent=5 // pred_fallthru
      _
    %p124 = scmp.lt.s32.totalorder %s9, 2
    // Predicated region
    $region21: #{pyramid_maxout_forward.1} parent=5 // pred_check
      %p125 = pneg %p124
    $region22: #{pyramid_maxout_forward.1} parent=5 // pred_check_branch
      %127 = sbr.rel (%p125) target = $region24
    $region23: #{pyramid_maxout_forward.1} parent=5 // pred_region
      // Predicated region
      $region25: #{pyramid_maxout_forward.1} parent=23 // pred_check
        %p128 = pneg %p29
      $region26: #{pyramid_maxout_forward.1} parent=23 // pred_check_branch
        %130 = sbr.rel (%p128) target = $region28
      $region27: #{pyramid_maxout_forward.1} parent=23 // pred_region
        %p131 = scmp.lt.s32.totalorder %s9, 1
        %s132 = scalar_select %p131, %s9, 1
        %s133 = smul.addr %s132, 66
        %s134 = smul.addr %s133, 8
        %s135 = scalar_lea.vmem %s0, %s134
      $region28: #{pyramid_maxout_forward.1} parent=23 // pred_fallthru
        _
    $region24: #{pyramid_maxout_forward.1} parent=5 // pred_fallthru
      _
    %p136 = scmp.le.s32.totalorder 1, %s9
    %p137 = scmp.lt.s32.totalorder %s9, 3
    %p138 = pnand %p136, %p137
    %p139 = pneg %p138
    // Predicated region
    $region29: #{pyramid_maxout_forward.1} parent=5 // pred_check
      _
    $region30: #{pyramid_maxout_forward.1} parent=5 // pred_check_branch
      %141 = sbr.rel (%p138) target = $region32
    $region31: #{pyramid_maxout_forward.1} parent=5 // pred_region
      %s142 = ssub.s32 %s9, 1
      %p143 = scmp.lt.s32.totalorder %s14, 1
      %s144 = scalar_select %p143, %s14, 1
      %s145 = smul.addr %s144, 66
      %s146 = smul.addr %s145, 8
      %s147 = scalar_lea.vmem %s0, %s146
      %p148 = pneg %p35
      %p149 = pneg %p32
      %p150 = pneg %p56
      %p151 = pneg %p53
      %p152 = pneg %p77
      %p153 = pneg %p74
      %p154 = pneg %p103
      %p155 = pneg %p100
      %p156 = scmp.lt.s32.totalorder %s14, 1
      %s157 = scalar_select %p156, %s14, 1
      %s158 = smul.addr %s157, 32
      %s159 = smul.addr %s158, 8
      %s160 = scalar_lea.vmem %s3, %s159
      %p161 = scmp.lt.s32.totalorder %s14, 1
      %s162 = scalar_select %p161, %s14, 1
      %s163 = smul.addr %s162, 66
      %s164 = smul.addr %s163, 8
      %s165 = scalar_lea.vmem %s0, %s164
      %p166 = scmp.lt.s32.totalorder %s14, 1
      %s167 = scalar_select %p166, %s14, 1
      %s168 = smul.addr %s167, 32
      %s169 = smul.addr %s168, 8
      %s170 = scalar_lea.vmem %s3, %s169
      %v172 = vld [vmem:[%s165] sm:$0xff]
      %v173 = vld [vmem:[%s165 + $0x8] sm:$0xff]
      %v174 = vld [vmem:[%s165 + $0x10] sm:$0x3f]
      %v175 = vld [vmem:[%s165 + $0x18] sm:$0xff]
      %v176 = vld [vmem:[%s165 + $0x20] sm:$0xff]
      %v177 = vld [vmem:[%s165 + $0x28] sm:$0x3f]
      %v178 = vld [vmem:[%s165 + $0x30] sm:$0xff]
      %v179 = vld [vmem:[%s165 + $0x38] sm:$0xff]
      %v180 = vld [vmem:[%s165 + $0x40] sm:$0x3f]
      %v181 = vld [vmem:[%s165 + $0x48] sm:$0xff]
      %v182 = vld [vmem:[%s165 + $0x50] sm:$0xff]
      %v183 = vld [vmem:[%s165 + $0x58] sm:$0x3f]
      %v184 = vld [vmem:[%s165 + $0x60] sm:$0xff]
      %v185 = vld [vmem:[%s165 + $0x68] sm:$0xff]
      %v186 = vld [vmem:[%s165 + $0x70] sm:$0x3f]
      %v187 = vld [vmem:[%s165 + $0x78] sm:$0xff]
      %v188 = vld [vmem:[%s165 + $0x80] sm:$0xff]
      %v189 = vld [vmem:[%s165 + $0x88] sm:$0x3f]
      %v190 = vld [vmem:[%s165 + $0x90] sm:$0xff]
      %v191 = vld [vmem:[%s165 + $0x98] sm:$0xff]
      %v192 = vld [vmem:[%s165 + $0xa0] sm:$0x3f]
      %v193 = vld [vmem:[%s165 + $0xa8] sm:$0xff]
      %v194 = vld [vmem:[%s165 + $0xb0] sm:$0xff]
      %v195 = vld [vmem:[%s165 + $0xb8] sm:$0x3f]
      %v196 = vld [vmem:[%s165 + $0xc0] sm:$0xff]
      %v197 = vld [vmem:[%s165 + $0xc8] sm:$0xff]
      %v198 = vld [vmem:[%s165 + $0xd0] sm:$0x3f]
      %v199 = vld [vmem:[%s165 + $0xd8] sm:$0xff]
      %v200 = vld [vmem:[%s165 + $0xe0] sm:$0xff]
      %v201 = vld [vmem:[%s165 + $0xe8] sm:$0x3f]
      %v202 = vld [vmem:[%s165 + $0xf0] sm:$0xff]
      %v203 = vld [vmem:[%s165 + $0xf8] sm:$0xff]
      %v204 = vld [vmem:[%s165 + $0x100] sm:$0x3f]
      %v205 = vld [vmem:[%s165 + $0x108] sm:$0xff]
      %v206 = vld [vmem:[%s165 + $0x110] sm:$0xff]
      %v207 = vld [vmem:[%s165 + $0x118] sm:$0x3f]
      %v208 = vld [vmem:[%s165 + $0x120] sm:$0xff]
      %v209 = vld [vmem:[%s165 + $0x128] sm:$0xff]
      %v210 = vld [vmem:[%s165 + $0x130] sm:$0x3f]
      %v211 = vld [vmem:[%s165 + $0x138] sm:$0xff]
      %v212 = vld [vmem:[%s165 + $0x140] sm:$0xff]
      %v213 = vld [vmem:[%s165 + $0x148] sm:$0x3f]
      %v214 = vld [vmem:[%s165 + $0x150] sm:$0xff]
      %v215 = vld [vmem:[%s165 + $0x158] sm:$0xff]
      %v216 = vld [vmem:[%s165 + $0x160] sm:$0x3f]
      %v217 = vld [vmem:[%s165 + $0x168] sm:$0xff]
      %v218 = vld [vmem:[%s165 + $0x170] sm:$0xff]
      %v219 = vld [vmem:[%s165 + $0x178] sm:$0x3f]
      %v220 = vld [vmem:[%s165 + $0x180] sm:$0xff]
      %v221 = vld [vmem:[%s165 + $0x188] sm:$0xff]
      %v222 = vld [vmem:[%s165 + $0x190] sm:$0x3f]
      %v223 = vld [vmem:[%s165 + $0x198] sm:$0xff]
      %v224 = vld [vmem:[%s165 + $0x1a0] sm:$0xff]
      %v225 = vld [vmem:[%s165 + $0x1a8] sm:$0x3f]
      %v226 = vld [vmem:[%s165 + $0x1b0] sm:$0xff]
      %v227 = vld [vmem:[%s165 + $0x1b8] sm:$0xff]
      %v228 = vld [vmem:[%s165 + $0x1c0] sm:$0x3f]
      %v229 = vld [vmem:[%s165 + $0x1c8] sm:$0xff]
      %v230 = vld [vmem:[%s165 + $0x1d0] sm:$0xff]
      %v231 = vld [vmem:[%s165 + $0x1d8] sm:$0x3f]
      %v232 = vld [vmem:[%s165 + $0x1e0] sm:$0xff]
      %v233 = vld [vmem:[%s165 + $0x1e8] sm:$0xff]
      %v234 = vld [vmem:[%s165 + $0x1f0] sm:$0x3f]
      %v235 = vld [vmem:[%s165 + $0x1f8] sm:$0xff]
      %v236 = vld [vmem:[%s165 + $0x200] sm:$0xff]
      %v237 = vld [vmem:[%s165 + $0x208] sm:$0x3f]
      %vm286 = vcmask 1046528
      %v287 = vrot.slane %v172, 1
      %v288 = vrot.slane %v173, 1
      %v289 = vsel %vm286, %v287, %v288
      %v290 = vrot.slane %v174, 1
      %v291 = vsel %vm286, %v288, %v290
      %v292 = vrot.slane %v175, 1
      %v293 = vrot.slane %v176, 1
      %v294 = vsel %vm286, %v292, %v293
      %v295 = vrot.slane %v177, 1
      %v296 = vsel %vm286, %v293, %v295
      %v297 = vrot.slane %v178, 1
      %v298 = vrot.slane %v179, 1
      %v299 = vsel %vm286, %v297, %v298
      %v300 = vrot.slane %v180, 1
      %v301 = vsel %vm286, %v298, %v300
      %v302 = vrot.slane %v181, 1
      %v303 = vrot.slane %v182, 1
      %v304 = vsel %vm286, %v302, %v303
      %v305 = vrot.slane %v183, 1
      %v306 = vsel %vm286, %v303, %v305
      %v307 = vrot.slane %v184, 1
      %v308 = vrot.slane %v185, 1
      %v309 = vsel %vm286, %v307, %v308
      %v310 = vrot.slane %v186, 1
      %v311 = vsel %vm286, %v308, %v310
      %v312 = vrot.slane %v187, 1
      %v313 = vrot.slane %v188, 1
      %v314 = vsel %vm286, %v312, %v313
      %v315 = vrot.slane %v189, 1
      %v316 = vsel %vm286, %v313, %v315
      %v317 = vrot.slane %v190, 1
      %v318 = vrot.slane %v191, 1
      %v319 = vsel %vm286, %v317, %v318
      %v320 = vrot.slane %v192, 1
      %v321 = vsel %vm286, %v318, %v320
      %v322 = vrot.slane %v193, 1
      %v323 = vrot.slane %v194, 1
      %v324 = vsel %vm286, %v322, %v323
      %v325 = vrot.slane %v195, 1
      %v326 = vsel %vm286, %v323, %v325
      %v327 = vrot.slane %v196, 1
      %v328 = vrot.slane %v197, 1
      %v329 = vsel %vm286, %v327, %v328
      %v330 = vrot.slane %v198, 1
      %v331 = vsel %vm286, %v328, %v330
      %v332 = vrot.slane %v199, 1
      %v333 = vrot.slane %v200, 1
      %v334 = vsel %vm286, %v332, %v333
      %v335 = vrot.slane %v201, 1
      %v336 = vsel %vm286, %v333, %v335
      %v337 = vrot.slane %v202, 1
      %v338 = vrot.slane %v203, 1
      %v339 = vsel %vm286, %v337, %v338
      %v340 = vrot.slane %v204, 1
      %v341 = vsel %vm286, %v338, %v340
      %v342 = vrot.slane %v205, 1
      %v343 = vrot.slane %v206, 1
      %v344 = vsel %vm286, %v342, %v343
      %v345 = vrot.slane %v207, 1
      %v346 = vsel %vm286, %v343, %v345
      %v347 = vrot.slane %v208, 1
      %v348 = vrot.slane %v209, 1
      %v349 = vsel %vm286, %v347, %v348
      %v350 = vrot.slane %v210, 1
      %v351 = vsel %vm286, %v348, %v350
      %v352 = vrot.slane %v211, 1
      %v353 = vrot.slane %v212, 1
      %v354 = vsel %vm286, %v352, %v353
      %v355 = vrot.slane %v213, 1
      %v356 = vsel %vm286, %v353, %v355
      %v357 = vrot.slane %v214, 1
      %v358 = vrot.slane %v215, 1
      %v359 = vsel %vm286, %v357, %v358
      %v360 = vrot.slane %v216, 1
      %v361 = vsel %vm286, %v358, %v360
      %v362 = vrot.slane %v217, 1
      %v363 = vrot.slane %v218, 1
      %v364 = vsel %vm286, %v362, %v363
      %v365 = vrot.slane %v219, 1
      %v366 = vsel %vm286, %v363, %v365
      %vm367 = vcmask 1045504
      %v368 = vrot.slane %v172, 2
      %v369 = vrot.slane %v173, 2
      %v370 = vsel %vm367, %v368, %v369
      %v371 = vrot.slane %v174, 2
      %v372 = vsel %vm367, %v369, %v371
      %v373 = vrot.slane %v175, 2
      %v374 = vrot.slane %v176, 2
      %v375 = vsel %vm367, %v373, %v374
      %v376 = vrot.slane %v177, 2
      %v377 = vsel %vm367, %v374, %v376
      %v378 = vrot.slane %v178, 2
      %v379 = vrot.slane %v179, 2
      %v380 = vsel %vm367, %v378, %v379
      %v381 = vrot.slane %v180, 2
      %v382 = vsel %vm367, %v379, %v381
      %v383 = vrot.slane %v181, 2
      %v384 = vrot.slane %v182, 2
      %v385 = vsel %vm367, %v383, %v384
      %v386 = vrot.slane %v183, 2
      %v387 = vsel %vm367, %v384, %v386
      %v388 = vrot.slane %v184, 2
      %v389 = vrot.slane %v185, 2
      %v390 = vsel %vm367, %v388, %v389
      %v391 = vrot.slane %v186, 2
      %v392 = vsel %vm367, %v389, %v391
      %v393 = vrot.slane %v187, 2
      %v394 = vrot.slane %v188, 2
      %v395 = vsel %vm367, %v393, %v394
      %v396 = vrot.slane %v189, 2
      %v397 = vsel %vm367, %v394, %v396
      %v398 = vrot.slane %v190, 2
      %v399 = vrot.slane %v191, 2
      %v400 = vsel %vm367, %v398, %v399
      %v401 = vrot.slane %v192, 2
      %v402 = vsel %vm367, %v399, %v401
      %v403 = vrot.slane %v193, 2
      %v404 = vrot.slane %v194, 2
      %v405 = vsel %vm367, %v403, %v404
      %v406 = vrot.slane %v195, 2
      %v407 = vsel %vm367, %v404, %v406
      %v408 = vrot.slane %v196, 2
      %v409 = vrot.slane %v197, 2
      %v410 = vsel %vm367, %v408, %v409
      %v411 = vrot.slane %v198, 2
      %v412 = vsel %vm367, %v409, %v411
      %v413 = vrot.slane %v199, 2
      %v414 = vrot.slane %v200, 2
      %v415 = vsel %vm367, %v413, %v414
      %v416 = vrot.slane %v201, 2
      %v417 = vsel %vm367, %v414, %v416
      %v418 = vrot.slane %v202, 2
      %v419 = vrot.slane %v203, 2
      %v420 = vsel %vm367, %v418, %v419
      %v421 = vrot.slane %v204, 2
      %v422 = vsel %vm367, %v419, %v421
      %v423 = vrot.slane %v205, 2
      %v424 = vrot.slane %v206, 2
      %v425 = vsel %vm367, %v423, %v424
      %v426 = vrot.slane %v207, 2
      %v427 = vsel %vm367, %v424, %v426
      %v428 = vrot.slane %v208, 2
      %v429 = vrot.slane %v209, 2
      %v430 = vsel %vm367, %v428, %v429
      %v431 = vrot.slane %v210, 2
      %v432 = vsel %vm367, %v429, %v431
      %v433 = vrot.slane %v211, 2
      %v434 = vrot.slane %v212, 2
      %v435 = vsel %vm367, %v433, %v434
      %v436 = vrot.slane %v213, 2
      %v437 = vsel %vm367, %v434, %v436
      %v438 = vrot.slane %v214, 2
      %v439 = vrot.slane %v215, 2
      %v440 = vsel %vm367, %v438, %v439
      %v441 = vrot.slane %v216, 2
      %v442 = vsel %vm367, %v439, %v441
      %v443 = vrot.slane %v217, 2
      %v444 = vrot.slane %v218, 2
      %v445 = vsel %vm367, %v443, %v444
      %v446 = vrot.slane %v219, 2
      %v447 = vsel %vm367, %v444, %v446
      %vm480 = vcmask 1044480
      %v481 = vrot.slane %v172, 3
      %v482 = vrot.slane %v173, 3
      %v483 = vsel %vm480, %v481, %v482
      %v484 = vrot.slane %v174, 3
      %v485 = vsel %vm480, %v482, %v484
      %v486 = vrot.slane %v175, 3
      %v487 = vrot.slane %v176, 3
      %v488 = vsel %vm480, %v486, %v487
      %v489 = vrot.slane %v177, 3
      %v490 = vsel %vm480, %v487, %v489
      %v491 = vrot.slane %v178, 3
      %v492 = vrot.slane %v179, 3
      %v493 = vsel %vm480, %v491, %v492
      %v494 = vrot.slane %v180, 3
      %v495 = vsel %vm480, %v492, %v494
      %v496 = vrot.slane %v181, 3
      %v497 = vrot.slane %v182, 3
      %v498 = vsel %vm480, %v496, %v497
      %v499 = vrot.slane %v183, 3
      %v500 = vsel %vm480, %v497, %v499
      %v501 = vrot.slane %v184, 3
      %v502 = vrot.slane %v185, 3
      %v503 = vsel %vm480, %v501, %v502
      %v504 = vrot.slane %v186, 3
      %v505 = vsel %vm480, %v502, %v504
      %v506 = vrot.slane %v187, 3
      %v507 = vrot.slane %v188, 3
      %v508 = vsel %vm480, %v506, %v507
      %v509 = vrot.slane %v189, 3
      %v510 = vsel %vm480, %v507, %v509
      %v511 = vrot.slane %v190, 3
      %v512 = vrot.slane %v191, 3
      %v513 = vsel %vm480, %v511, %v512
      %v514 = vrot.slane %v192, 3
      %v515 = vsel %vm480, %v512, %v514
      %v516 = vrot.slane %v193, 3
      %v517 = vrot.slane %v194, 3
      %v518 = vsel %vm480, %v516, %v517
      %v519 = vrot.slane %v195, 3
      %v520 = vsel %vm480, %v517, %v519
      %v521 = vrot.slane %v196, 3
      %v522 = vrot.slane %v197, 3
      %v523 = vsel %vm480, %v521, %v522
      %v524 = vrot.slane %v198, 3
      %v525 = vsel %vm480, %v522, %v524
      %v526 = vrot.slane %v199, 3
      %v527 = vrot.slane %v200, 3
      %v528 = vsel %vm480, %v526, %v527
      %v529 = vrot.slane %v201, 3
      %v530 = vsel %vm480, %v527, %v529
      %v531 = vrot.slane %v202, 3
      %v532 = vrot.slane %v203, 3
      %v533 = vsel %vm480, %v531, %v532
      %v534 = vrot.slane %v204, 3
      %v535 = vsel %vm480, %v532, %v534
      %v536 = vrot.slane %v205, 3
      %v537 = vrot.slane %v206, 3
      %v538 = vsel %vm480, %v536, %v537
      %v539 = vrot.slane %v207, 3
      %v540 = vsel %vm480, %v537, %v539
      %v541 = vrot.slane %v208, 3
      %v542 = vrot.slane %v209, 3
      %v543 = vsel %vm480, %v541, %v542
      %v544 = vrot.slane %v210, 3
      %v545 = vsel %vm480, %v542, %v544
      %v546 = vrot.slane %v211, 3
      %v547 = vrot.slane %v212, 3
      %v548 = vsel %vm480, %v546, %v547
      %v549 = vrot.slane %v213, 3
      %v550 = vsel %vm480, %v547, %v549
      %v551 = vrot.slane %v214, 3
      %v552 = vrot.slane %v215, 3
      %v553 = vsel %vm480, %v551, %v552
      %v554 = vrot.slane %v216, 3
      %v555 = vsel %vm480, %v552, %v554
      %v556 = vrot.slane %v217, 3
      %v557 = vrot.slane %v218, 3
      %v558 = vsel %vm480, %v556, %v557
      %v559 = vrot.slane %v219, 3
      %v560 = vsel %vm480, %v557, %v559
      %vm561 = vcmask 1043456
      %v562 = vrot.slane %v172, 4
      %v563 = vrot.slane %v173, 4
      %v564 = vsel %vm561, %v562, %v563
      %v565 = vrot.slane %v174, 4
      %v566 = vsel %vm561, %v563, %v565
      %v567 = vrot.slane %v175, 4
      %v568 = vrot.slane %v176, 4
      %v569 = vsel %vm561, %v567, %v568
      %v570 = vrot.slane %v177, 4
      %v571 = vsel %vm561, %v568, %v570
      %v572 = vrot.slane %v178, 4
      %v573 = vrot.slane %v179, 4
      %v574 = vsel %vm561, %v572, %v573
      %v575 = vrot.slane %v180, 4
      %v576 = vsel %vm561, %v573, %v575
      %v577 = vrot.slane %v181, 4
      %v578 = vrot.slane %v182, 4
      %v579 = vsel %vm561, %v577, %v578
      %v580 = vrot.slane %v183, 4
      %v581 = vsel %vm561, %v578, %v580
      %v582 = vrot.slane %v184, 4
      %v583 = vrot.slane %v185, 4
      %v584 = vsel %vm561, %v582, %v583
      %v585 = vrot.slane %v186, 4
      %v586 = vsel %vm561, %v583, %v585
      %v587 = vrot.slane %v187, 4
      %v588 = vrot.slane %v188, 4
      %v589 = vsel %vm561, %v587, %v588
      %v590 = vrot.slane %v189, 4
      %v591 = vsel %vm561, %v588, %v590
      %v592 = vrot.slane %v190, 4
      %v593 = vrot.slane %v191, 4
      %v594 = vsel %vm561, %v592, %v593
      %v595 = vrot.slane %v192, 4
      %v596 = vsel %vm561, %v593, %v595
      %v597 = vrot.slane %v193, 4
      %v598 = vrot.slane %v194, 4
      %v599 = vsel %vm561, %v597, %v598
      %v600 = vrot.slane %v195, 4
      %v601 = vsel %vm561, %v598, %v600
      %v602 = vrot.slane %v196, 4
      %v603 = vrot.slane %v197, 4
      %v604 = vsel %vm561, %v602, %v603
      %v605 = vrot.slane %v198, 4
      %v606 = vsel %vm561, %v603, %v605
      %v607 = vrot.slane %v199, 4
      %v608 = vrot.slane %v200, 4
      %v609 = vsel %vm561, %v607, %v608
      %v610 = vrot.slane %v201, 4
      %v611 = vsel %vm561, %v608, %v610
      %v612 = vrot.slane %v202, 4
      %v613 = vrot.slane %v203, 4
      %v614 = vsel %vm561, %v612, %v613
      %v615 = vrot.slane %v204, 4
      %v616 = vsel %vm561, %v613, %v615
      %v617 = vrot.slane %v205, 4
      %v618 = vrot.slane %v206, 4
      %v619 = vsel %vm561, %v617, %v618
      %v620 = vrot.slane %v207, 4
      %v621 = vsel %vm561, %v618, %v620
      %v622 = vrot.slane %v208, 4
      %v623 = vrot.slane %v209, 4
      %v624 = vsel %vm561, %v622, %v623
      %v625 = vrot.slane %v210, 4
      %v626 = vsel %vm561, %v623, %v625
      %v627 = vrot.slane %v211, 4
      %v628 = vrot.slane %v212, 4
      %v629 = vsel %vm561, %v627, %v628
      %v630 = vrot.slane %v213, 4
      %v631 = vsel %vm561, %v628, %v630
      %v632 = vrot.slane %v214, 4
      %v633 = vrot.slane %v215, 4
      %v634 = vsel %vm561, %v632, %v633
      %v635 = vrot.slane %v216, 4
      %v636 = vsel %vm561, %v633, %v635
      %v637 = vrot.slane %v217, 4
      %v638 = vrot.slane %v218, 4
      %v639 = vsel %vm561, %v637, %v638
      %v640 = vrot.slane %v219, 4
      %v641 = vsel %vm561, %v638, %v640
      %vm674 = vcmask 1042432
      %v675 = vrot.slane %v172, 5
      %v676 = vrot.slane %v173, 5
      %v677 = vsel %vm674, %v675, %v676
      %v678 = vrot.slane %v174, 5
      %v679 = vsel %vm674, %v676, %v678
      %v680 = vrot.slane %v175, 5
      %v681 = vrot.slane %v176, 5
      %v682 = vsel %vm674, %v680, %v681
      %v683 = vrot.slane %v177, 5
      %v684 = vsel %vm674, %v681, %v683
      %v685 = vrot.slane %v178, 5
      %v686 = vrot.slane %v179, 5
      %v687 = vsel %vm674, %v685, %v686
      %v688 = vrot.slane %v180, 5
      %v689 = vsel %vm674, %v686, %v688
      %v690 = vrot.slane %v181, 5
      %v691 = vrot.slane %v182, 5
      %v692 = vsel %vm674, %v690, %v691
      %v693 = vrot.slane %v183, 5
      %v694 = vsel %vm674, %v691, %v693
      %v695 = vrot.slane %v184, 5
      %v696 = vrot.slane %v185, 5
      %v697 = vsel %vm674, %v695, %v696
      %v698 = vrot.slane %v186, 5
      %v699 = vsel %vm674, %v696, %v698
      %v700 = vrot.slane %v187, 5
      %v701 = vrot.slane %v188, 5
      %v702 = vsel %vm674, %v700, %v701
      %v703 = vrot.slane %v189, 5
      %v704 = vsel %vm674, %v701, %v703
      %v705 = vrot.slane %v190, 5
      %v706 = vrot.slane %v191, 5
      %v707 = vsel %vm674, %v705, %v706
      %v708 = vrot.slane %v192, 5
      %v709 = vsel %vm674, %v706, %v708
      %v710 = vrot.slane %v193, 5
      %v711 = vrot.slane %v194, 5
      %v712 = vsel %vm674, %v710, %v711
      %v713 = vrot.slane %v195, 5
      %v714 = vsel %vm674, %v711, %v713
      %v715 = vrot.slane %v196, 5
      %v716 = vrot.slane %v197, 5
      %v717 = vsel %vm674, %v715, %v716
      %v718 = vrot.slane %v198, 5
      %v719 = vsel %vm674, %v716, %v718
      %v720 = vrot.slane %v199, 5
      %v721 = vrot.slane %v200, 5
      %v722 = vsel %vm674, %v720, %v721
      %v723 = vrot.slane %v201, 5
      %v724 = vsel %vm674, %v721, %v723
      %v725 = vrot.slane %v202, 5
      %v726 = vrot.slane %v203, 5
      %v727 = vsel %vm674, %v725, %v726
      %v728 = vrot.slane %v204, 5
      %v729 = vsel %vm674, %v726, %v728
      %v730 = vrot.slane %v205, 5
      %v731 = vrot.slane %v206, 5
      %v732 = vsel %vm674, %v730, %v731
      %v733 = vrot.slane %v207, 5
      %v734 = vsel %vm674, %v731, %v733
      %v735 = vrot.slane %v208, 5
      %v736 = vrot.slane %v209, 5
      %v737 = vsel %vm674, %v735, %v736
      %v738 = vrot.slane %v210, 5
      %v739 = vsel %vm674, %v736, %v738
      %v740 = vrot.slane %v211, 5
      %v741 = vrot.slane %v212, 5
      %v742 = vsel %vm674, %v740, %v741
      %v743 = vrot.slane %v213, 5
      %v744 = vsel %vm674, %v741, %v743
      %v745 = vrot.slane %v214, 5
      %v746 = vrot.slane %v215, 5
      %v747 = vsel %vm674, %v745, %v746
      %v748 = vrot.slane %v216, 5
      %v749 = vsel %vm674, %v746, %v748
      %v750 = vrot.slane %v217, 5
      %v751 = vrot.slane %v218, 5
      %v752 = vsel %vm674, %v750, %v751
      %v753 = vrot.slane %v219, 5
      %v754 = vsel %vm674, %v751, %v753
      %vm755 = vcmask 1041408
      %v756 = vrot.slane %v172, 6
      %v757 = vrot.slane %v173, 6
      %v758 = vsel %vm755, %v756, %v757
      %v759 = vrot.slane %v174, 6
      %v760 = vsel %vm755, %v757, %v759
      %v761 = vrot.slane %v175, 6
      %v762 = vrot.slane %v176, 6
      %v763 = vsel %vm755, %v761, %v762
      %v764 = vrot.slane %v177, 6
      %v765 = vsel %vm755, %v762, %v764
      %v766 = vrot.slane %v178, 6
      %v767 = vrot.slane %v179, 6
      %v768 = vsel %vm755, %v766, %v767
      %v769 = vrot.slane %v180, 6
      %v770 = vsel %vm755, %v767, %v769
      %v771 = vrot.slane %v181, 6
      %v772 = vrot.slane %v182, 6
      %v773 = vsel %vm755, %v771, %v772
      %v774 = vrot.slane %v183, 6
      %v775 = vsel %vm755, %v772, %v774
      %v776 = vrot.slane %v184, 6
      %v777 = vrot.slane %v185, 6
      %v778 = vsel %vm755, %v776, %v777
      %v779 = vrot.slane %v186, 6
      %v780 = vsel %vm755, %v777, %v779
      %v781 = vrot.slane %v187, 6
      %v782 = vrot.slane %v188, 6
      %v783 = vsel %vm755, %v781, %v782
      %v784 = vrot.slane %v189, 6
      %v785 = vsel %vm755, %v782, %v784
      %v786 = vrot.slane %v190, 6
      %v787 = vrot.slane %v191, 6
      %v788 = vsel %vm755, %v786, %v787
      %v789 = vrot.slane %v192, 6
      %v790 = vsel %vm755, %v787, %v789
      %v791 = vrot.slane %v193, 6
      %v792 = vrot.slane %v194, 6
      %v793 = vsel %vm755, %v791, %v792
      %v794 = vrot.slane %v195, 6
      %v795 = vsel %vm755, %v792, %v794
      %v796 = vrot.slane %v196, 6
      %v797 = vrot.slane %v197, 6
      %v798 = vsel %vm755, %v796, %v797
      %v799 = vrot.slane %v198, 6
      %v800 = vsel %vm755, %v797, %v799
      %v801 = vrot.slane %v199, 6
      %v802 = vrot.slane %v200, 6
      %v803 = vsel %vm755, %v801, %v802
      %v804 = vrot.slane %v201, 6
      %v805 = vsel %vm755, %v802, %v804
      %v806 = vrot.slane %v202, 6
      %v807 = vrot.slane %v203, 6
      %v808 = vsel %vm755, %v806, %v807
      %v809 = vrot.slane %v204, 6
      %v810 = vsel %vm755, %v807, %v809
      %v811 = vrot.slane %v205, 6
      %v812 = vrot.slane %v206, 6
      %v813 = vsel %vm755, %v811, %v812
      %v814 = vrot.slane %v207, 6
      %v815 = vsel %vm755, %v812, %v814
      %v816 = vrot.slane %v208, 6
      %v817 = vrot.slane %v209, 6
      %v818 = vsel %vm755, %v816, %v817
      %v819 = vrot.slane %v210, 6
      %v820 = vsel %vm755, %v817, %v819
      %v821 = vrot.slane %v211, 6
      %v822 = vrot.slane %v212, 6
      %v823 = vsel %vm755, %v821, %v822
      %v824 = vrot.slane %v213, 6
      %v825 = vsel %vm755, %v822, %v824
      %v826 = vrot.slane %v214, 6
      %v827 = vrot.slane %v215, 6
      %v828 = vsel %vm755, %v826, %v827
      %v829 = vrot.slane %v216, 6
      %v830 = vsel %vm755, %v827, %v829
      %v831 = vrot.slane %v217, 6
      %v832 = vrot.slane %v218, 6
      %v833 = vsel %vm755, %v831, %v832
      %v834 = vrot.slane %v219, 6
      %v835 = vsel %vm755, %v832, %v834
      %v871 = vrot.slane %v220, 1
      %v872 = vrot.slane %v221, 1
      %v873 = vsel %vm286, %v871, %v872
      %v874 = vrot.slane %v222, 1
      %v875 = vsel %vm286, %v872, %v874
      %v908 = vrot.slane %v220, 2
      %v909 = vrot.slane %v221, 2
      %v910 = vsel %vm367, %v908, %v909
      %v911 = vrot.slane %v222, 2
      %v912 = vsel %vm367, %v909, %v911
      %v913 = vrot.slane %v220, 3
      %v914 = vrot.slane %v221, 3
      %v915 = vsel %vm480, %v913, %v914
      %v916 = vrot.slane %v222, 3
      %v917 = vsel %vm480, %v914, %v916
      %v950 = vrot.slane %v220, 4
      %v951 = vrot.slane %v221, 4
      %v952 = vsel %vm561, %v950, %v951
      %v953 = vrot.slane %v222, 4
      %v954 = vsel %vm561, %v951, %v953
      %v955 = vrot.slane %v220, 5
      %v956 = vrot.slane %v221, 5
      %v957 = vsel %vm674, %v955, %v956
      %v958 = vrot.slane %v222, 5
      %v959 = vsel %vm674, %v956, %v958
      %v992 = vrot.slane %v220, 6
      %v993 = vrot.slane %v221, 6
      %v994 = vsel %vm755, %v992, %v993
      %v995 = vrot.slane %v222, 6
      %v996 = vsel %vm755, %v993, %v995
      %v1000 = vrot.slane %v223, 1
      %v1001 = vrot.slane %v224, 1
      %v1002 = vsel %vm286, %v1000, %v1001
      %v1003 = vrot.slane %v225, 1
      %v1004 = vsel %vm286, %v1001, %v1003
      %v1005 = vrot.slane %v223, 2
      %v1006 = vrot.slane %v224, 2
      %v1007 = vsel %vm367, %v1005, %v1006
      %v1008 = vrot.slane %v225, 2
      %v1009 = vsel %vm367, %v1006, %v1008
      %v1014 = vrot.slane %v223, 3
      %v1015 = vrot.slane %v224, 3
      %v1016 = vsel %vm480, %v1014, %v1015
      %v1017 = vrot.slane %v225, 3
      %v1018 = vsel %vm480, %v1015, %v1017
      %v1019 = vrot.slane %v223, 4
      %v1020 = vrot.slane %v224, 4
      %v1021 = vsel %vm561, %v1019, %v1020
      %v1022 = vrot.slane %v225, 4
      %v1023 = vsel %vm561, %v1020, %v1022
      %v1028 = vrot.slane %v223, 5
      %v1029 = vrot.slane %v224, 5
      %v1030 = vsel %vm674, %v1028, %v1029
      %v1031 = vrot.slane %v225, 5
      %v1032 = vsel %vm674, %v1029, %v1031
      %v1033 = vrot.slane %v223, 6
      %v1034 = vrot.slane %v224, 6
      %v1035 = vsel %vm755, %v1033, %v1034
      %v1036 = vrot.slane %v225, 6
      %v1037 = vsel %vm755, %v1034, %v1036
      %v1045 = vrot.slane %v226, 1
      %v1046 = vrot.slane %v227, 1
      %v1047 = vsel %vm286, %v1045, %v1046
      %v1048 = vrot.slane %v228, 1
      %v1049 = vsel %vm286, %v1046, %v1048
      %v1054 = vrot.slane %v226, 2
      %v1055 = vrot.slane %v227, 2
      %v1056 = vsel %vm367, %v1054, %v1055
      %v1057 = vrot.slane %v228, 2
      %v1058 = vsel %vm367, %v1055, %v1057
      %v1059 = vrot.slane %v226, 3
      %v1060 = vrot.slane %v227, 3
      %v1061 = vsel %vm480, %v1059, %v1060
      %v1062 = vrot.slane %v228, 3
      %v1063 = vsel %vm480, %v1060, %v1062
      %v1068 = vrot.slane %v226, 4
      %v1069 = vrot.slane %v227, 4
      %v1070 = vsel %vm561, %v1068, %v1069
      %v1071 = vrot.slane %v228, 4
      %v1072 = vsel %vm561, %v1069, %v1071
      %v1073 = vrot.slane %v226, 5
      %v1074 = vrot.slane %v227, 5
      %v1075 = vsel %vm674, %v1073, %v1074
      %v1076 = vrot.slane %v228, 5
      %v1077 = vsel %vm674, %v1074, %v1076
      %v1082 = vrot.slane %v226, 6
      %v1083 = vrot.slane %v227, 6
      %v1084 = vsel %vm755, %v1082, %v1083
      %v1085 = vrot.slane %v228, 6
      %v1086 = vsel %vm755, %v1083, %v1085
      %v1090 = vrot.slane %v229, 1
      %v1091 = vrot.slane %v230, 1
      %v1092 = vsel %vm286, %v1090, %v1091
      %v1093 = vrot.slane %v231, 1
      %v1094 = vsel %vm286, %v1091, %v1093
      %v1095 = vrot.slane %v229, 2
      %v1096 = vrot.slane %v230, 2
      %v1097 = vsel %vm367, %v1095, %v1096
      %v1098 = vrot.slane %v231, 2
      %v1099 = vsel %vm367, %v1096, %v1098
      %v1104 = vrot.slane %v229, 3
      %v1105 = vrot.slane %v230, 3
      %v1106 = vsel %vm480, %v1104, %v1105
      %v1107 = vrot.slane %v231, 3
      %v1108 = vsel %vm480, %v1105, %v1107
      %v1109 = vrot.slane %v229, 4
      %v1110 = vrot.slane %v230, 4
      %v1111 = vsel %vm561, %v1109, %v1110
      %v1112 = vrot.slane %v231, 4
      %v1113 = vsel %vm561, %v1110, %v1112
      %v1118 = vrot.slane %v229, 5
      %v1119 = vrot.slane %v230, 5
      %v1120 = vsel %vm674, %v1118, %v1119
      %v1121 = vrot.slane %v231, 5
      %v1122 = vsel %vm674, %v1119, %v1121
      %v1123 = vrot.slane %v229, 6
      %v1124 = vrot.slane %v230, 6
      %v1125 = vsel %vm755, %v1123, %v1124
      %v1126 = vrot.slane %v231, 6
      %v1127 = vsel %vm755, %v1124, %v1126
      %v1135 = vrot.slane %v232, 1
      %v1136 = vrot.slane %v233, 1
      %v1137 = vsel %vm286, %v1135, %v1136
      %v1138 = vrot.slane %v234, 1
      %v1139 = vsel %vm286, %v1136, %v1138
      %v1144 = vrot.slane %v232, 2
      %v1145 = vrot.slane %v233, 2
      %v1146 = vsel %vm367, %v1144, %v1145
      %v1147 = vrot.slane %v234, 2
      %v1148 = vsel %vm367, %v1145, %v1147
      %v1149 = vrot.slane %v232, 3
      %v1150 = vrot.slane %v233, 3
      %v1151 = vsel %vm480, %v1149, %v1150
      %v1152 = vrot.slane %v234, 3
      %v1153 = vsel %vm480, %v1150, %v1152
      %v1158 = vrot.slane %v232, 4
      %v1159 = vrot.slane %v233, 4
      %v1160 = vsel %vm561, %v1158, %v1159
      %v1161 = vrot.slane %v234, 4
      %v1162 = vsel %vm561, %v1159, %v1161
      %v1163 = vrot.slane %v232, 5
      %v1164 = vrot.slane %v233, 5
      %v1165 = vsel %vm674, %v1163, %v1164
      %v1166 = vrot.slane %v234, 5
      %v1167 = vsel %vm674, %v1164, %v1166
      %v1172 = vrot.slane %v232, 6
      %v1173 = vrot.slane %v233, 6
      %v1174 = vsel %vm755, %v1172, %v1173
      %v1175 = vrot.slane %v234, 6
      %v1176 = vsel %vm755, %v1173, %v1175
      %v1180 = vrot.slane %v235, 1
      %v1181 = vrot.slane %v236, 1
      %v1182 = vsel %vm286, %v1180, %v1181
      %v1183 = vrot.slane %v237, 1
      %v1184 = vsel %vm286, %v1181, %v1183
      %v1185 = vrot.slane %v235, 2
      %v1186 = vrot.slane %v236, 2
      %v1187 = vsel %vm367, %v1185, %v1186
      %v1188 = vrot.slane %v237, 2
      %v1189 = vsel %vm367, %v1186, %v1188
      %v1194 = vrot.slane %v235, 3
      %v1195 = vrot.slane %v236, 3
      %v1196 = vsel %vm480, %v1194, %v1195
      %v1197 = vrot.slane %v237, 3
      %v1198 = vsel %vm480, %v1195, %v1197
      %v1199 = vrot.slane %v235, 4
      %v1200 = vrot.slane %v236, 4
      %v1201 = vsel %vm561, %v1199, %v1200
      %v1202 = vrot.slane %v237, 4
      %v1203 = vsel %vm561, %v1200, %v1202
      %v1208 = vrot.slane %v235, 5
      %v1209 = vrot.slane %v236, 5
      %v1210 = vsel %vm674, %v1208, %v1209
      %v1211 = vrot.slane %v237, 5
      %v1212 = vsel %vm674, %v1209, %v1211
      %v1213 = vrot.slane %v235, 6
      %v1214 = vrot.slane %v236, 6
      %v1215 = vsel %vm755, %v1213, %v1214
      %v1216 = vrot.slane %v237, 6
      %v1217 = vsel %vm755, %v1214, %v1216
      %1222 = vrot.lane.b32.xlu0 %v289, 64
      %v1223 = vpop.permute.xlu0 %1222
      %1224 = vrot.lane.b32.xlu0 %v291, 64
      %v1225 = vpop.permute.xlu0 %1224
      %1226 = vrot.lane.b32.xlu0 %v294, 64
      %v1227 = vpop.permute.xlu0 %1226
      %1228 = vrot.lane.b32.xlu0 %v296, 64
      %v1229 = vpop.permute.xlu0 %1228
      %1230 = vrot.lane.b32.xlu0 %v299, 64
      %v1231 = vpop.permute.xlu0 %1230
      %1232 = vrot.lane.b32.xlu0 %v301, 64
      %v1233 = vpop.permute.xlu0 %1232
      %1234 = vrot.lane.b32.xlu0 %v304, 64
      %v1235 = vpop.permute.xlu0 %1234
      %1236 = vrot.lane.b32.xlu0 %v306, 64
      %v1237 = vpop.permute.xlu0 %1236
      %1238 = vrot.lane.b32.xlu0 %v309, 64
      %v1239 = vpop.permute.xlu0 %1238
      %1240 = vrot.lane.b32.xlu0 %v311, 64
      %v1241 = vpop.permute.xlu0 %1240
      %1242 = vrot.lane.b32.xlu0 %v314, 64
      %v1243 = vpop.permute.xlu0 %1242
      %1244 = vrot.lane.b32.xlu0 %v316, 64
      %v1245 = vpop.permute.xlu0 %1244
      %1246 = vrot.lane.b32.xlu0 %v319, 64
      %v1247 = vpop.permute.xlu0 %1246
      %1248 = vrot.lane.b32.xlu0 %v321, 64
      %v1249 = vpop.permute.xlu0 %1248
      %1250 = vrot.lane.b32.xlu0 %v324, 64
      %v1251 = vpop.permute.xlu0 %1250
      %1252 = vrot.lane.b32.xlu0 %v326, 64
      %v1253 = vpop.permute.xlu0 %1252
      %1254 = vrot.lane.b32.xlu0 %v329, 64
      %v1255 = vpop.permute.xlu0 %1254
      %1256 = vrot.lane.b32.xlu0 %v331, 64
      %v1257 = vpop.permute.xlu0 %1256
      %1258 = vrot.lane.b32.xlu0 %v334, 64
      %v1259 = vpop.permute.xlu0 %1258
      %1260 = vrot.lane.b32.xlu0 %v336, 64
      %v1261 = vpop.permute.xlu0 %1260
      %1262 = vrot.lane.b32.xlu0 %v339, 64
      %v1263 = vpop.permute.xlu0 %1262
      %1264 = vrot.lane.b32.xlu0 %v341, 64
      %v1265 = vpop.permute.xlu0 %1264
      %1266 = vrot.lane.b32.xlu0 %v344, 64
      %v1267 = vpop.permute.xlu0 %1266
      %1268 = vrot.lane.b32.xlu0 %v346, 64
      %v1269 = vpop.permute.xlu0 %1268
      %1270 = vrot.lane.b32.xlu0 %v349, 64
      %v1271 = vpop.permute.xlu0 %1270
      %1272 = vrot.lane.b32.xlu0 %v351, 64
      %v1273 = vpop.permute.xlu0 %1272
      %1274 = vrot.lane.b32.xlu0 %v354, 64
      %v1275 = vpop.permute.xlu0 %1274
      %1276 = vrot.lane.b32.xlu0 %v356, 64
      %v1277 = vpop.permute.xlu0 %1276
      %1278 = vrot.lane.b32.xlu0 %v359, 64
      %v1279 = vpop.permute.xlu0 %1278
      %1280 = vrot.lane.b32.xlu0 %v361, 64
      %v1281 = vpop.permute.xlu0 %1280
      %1282 = vrot.lane.b32.xlu0 %v364, 64
      %v1283 = vpop.permute.xlu0 %1282
      %1284 = vrot.lane.b32.xlu0 %v366, 64
      %v1285 = vpop.permute.xlu0 %1284
      %1318 = vrot.lane.b32.xlu0 %v483, 64
      %v1319 = vpop.permute.xlu0 %1318
      %1320 = vrot.lane.b32.xlu0 %v485, 64
      %v1321 = vpop.permute.xlu0 %1320
      %1322 = vrot.lane.b32.xlu0 %v488, 64
      %v1323 = vpop.permute.xlu0 %1322
      %1324 = vrot.lane.b32.xlu0 %v490, 64
      %v1325 = vpop.permute.xlu0 %1324
      %1326 = vrot.lane.b32.xlu0 %v493, 64
      %v1327 = vpop.permute.xlu0 %1326
      %1328 = vrot.lane.b32.xlu0 %v495, 64
      %v1329 = vpop.permute.xlu0 %1328
      %1330 = vrot.lane.b32.xlu0 %v498, 64
      %v1331 = vpop.permute.xlu0 %1330
      %1332 = vrot.lane.b32.xlu0 %v500, 64
      %v1333 = vpop.permute.xlu0 %1332
      %1334 = vrot.lane.b32.xlu0 %v503, 64
      %v1335 = vpop.permute.xlu0 %1334
      %1336 = vrot.lane.b32.xlu0 %v505, 64
      %v1337 = vpop.permute.xlu0 %1336
      %1338 = vrot.lane.b32.xlu0 %v508, 64
      %v1339 = vpop.permute.xlu0 %1338
      %1340 = vrot.lane.b32.xlu0 %v510, 64
      %v1341 = vpop.permute.xlu0 %1340
      %1342 = vrot.lane.b32.xlu0 %v513, 64
      %v1343 = vpop.permute.xlu0 %1342
      %1344 = vrot.lane.b32.xlu0 %v515, 64
      %v1345 = vpop.permute.xlu0 %1344
      %1346 = vrot.lane.b32.xlu0 %v518, 64
      %v1347 = vpop.permute.xlu0 %1346
      %1348 = vrot.lane.b32.xlu0 %v520, 64
      %v1349 = vpop.permute.xlu0 %1348
      %1350 = vrot.lane.b32.xlu0 %v523, 64
      %v1351 = vpop.permute.xlu0 %1350
      %1352 = vrot.lane.b32.xlu0 %v525, 64
      %v1353 = vpop.permute.xlu0 %1352
      %1354 = vrot.lane.b32.xlu0 %v528, 64
      %v1355 = vpop.permute.xlu0 %1354
      %1356 = vrot.lane.b32.xlu0 %v530, 64
      %v1357 = vpop.permute.xlu0 %1356
      %1358 = vrot.lane.b32.xlu0 %v533, 64
      %v1359 = vpop.permute.xlu0 %1358
      %1360 = vrot.lane.b32.xlu0 %v535, 64
      %v1361 = vpop.permute.xlu0 %1360
      %1362 = vrot.lane.b32.xlu0 %v538, 64
      %v1363 = vpop.permute.xlu0 %1362
      %1364 = vrot.lane.b32.xlu0 %v540, 64
      %v1365 = vpop.permute.xlu0 %1364
      %1366 = vrot.lane.b32.xlu0 %v543, 64
      %v1367 = vpop.permute.xlu0 %1366
      %1368 = vrot.lane.b32.xlu0 %v545, 64
      %v1369 = vpop.permute.xlu0 %1368
      %1370 = vrot.lane.b32.xlu0 %v548, 64
      %v1371 = vpop.permute.xlu0 %1370
      %1372 = vrot.lane.b32.xlu0 %v550, 64
      %v1373 = vpop.permute.xlu0 %1372
      %1374 = vrot.lane.b32.xlu0 %v553, 64
      %v1375 = vpop.permute.xlu0 %1374
      %1376 = vrot.lane.b32.xlu0 %v555, 64
      %v1377 = vpop.permute.xlu0 %1376
      %1378 = vrot.lane.b32.xlu0 %v558, 64
      %v1379 = vpop.permute.xlu0 %1378
      %1380 = vrot.lane.b32.xlu0 %v560, 64
      %v1381 = vpop.permute.xlu0 %1380
      %1414 = vrot.lane.b32.xlu0 %v677, 64
      %v1415 = vpop.permute.xlu0 %1414
      %1416 = vrot.lane.b32.xlu0 %v679, 64
      %v1417 = vpop.permute.xlu0 %1416
      %1418 = vrot.lane.b32.xlu0 %v682, 64
      %v1419 = vpop.permute.xlu0 %1418
      %1420 = vrot.lane.b32.xlu0 %v684, 64
      %v1421 = vpop.permute.xlu0 %1420
      %1422 = vrot.lane.b32.xlu0 %v687, 64
      %v1423 = vpop.permute.xlu0 %1422
      %1424 = vrot.lane.b32.xlu0 %v689, 64
      %v1425 = vpop.permute.xlu0 %1424
      %1426 = vrot.lane.b32.xlu0 %v692, 64
      %v1427 = vpop.permute.xlu0 %1426
      %1428 = vrot.lane.b32.xlu0 %v694, 64
      %v1429 = vpop.permute.xlu0 %1428
      %1430 = vrot.lane.b32.xlu0 %v697, 64
      %v1431 = vpop.permute.xlu0 %1430
      %1432 = vrot.lane.b32.xlu0 %v699, 64
      %v1433 = vpop.permute.xlu0 %1432
      %1434 = vrot.lane.b32.xlu0 %v702, 64
      %v1435 = vpop.permute.xlu0 %1434
      %1436 = vrot.lane.b32.xlu0 %v704, 64
      %v1437 = vpop.permute.xlu0 %1436
      %1438 = vrot.lane.b32.xlu0 %v707, 64
      %v1439 = vpop.permute.xlu0 %1438
      %1440 = vrot.lane.b32.xlu0 %v709, 64
      %v1441 = vpop.permute.xlu0 %1440
      %1442 = vrot.lane.b32.xlu0 %v712, 64
      %v1443 = vpop.permute.xlu0 %1442
      %1444 = vrot.lane.b32.xlu0 %v714, 64
      %v1445 = vpop.permute.xlu0 %1444
      %1446 = vrot.lane.b32.xlu0 %v717, 64
      %v1447 = vpop.permute.xlu0 %1446
      %1448 = vrot.lane.b32.xlu0 %v719, 64
      %v1449 = vpop.permute.xlu0 %1448
      %1450 = vrot.lane.b32.xlu0 %v722, 64
      %v1451 = vpop.permute.xlu0 %1450
      %1452 = vrot.lane.b32.xlu0 %v724, 64
      %v1453 = vpop.permute.xlu0 %1452
      %1454 = vrot.lane.b32.xlu0 %v727, 64
      %v1455 = vpop.permute.xlu0 %1454
      %1456 = vrot.lane.b32.xlu0 %v729, 64
      %v1457 = vpop.permute.xlu0 %1456
      %1458 = vrot.lane.b32.xlu0 %v732, 64
      %v1459 = vpop.permute.xlu0 %1458
      %1460 = vrot.lane.b32.xlu0 %v734, 64
      %v1461 = vpop.permute.xlu0 %1460
      %1462 = vrot.lane.b32.xlu0 %v737, 64
      %v1463 = vpop.permute.xlu0 %1462
      %1464 = vrot.lane.b32.xlu0 %v739, 64
      %v1465 = vpop.permute.xlu0 %1464
      %1466 = vrot.lane.b32.xlu0 %v742, 64
      %v1467 = vpop.permute.xlu0 %1466
      %1468 = vrot.lane.b32.xlu0 %v744, 64
      %v1469 = vpop.permute.xlu0 %1468
      %1470 = vrot.lane.b32.xlu0 %v747, 64
      %v1471 = vpop.permute.xlu0 %1470
      %1472 = vrot.lane.b32.xlu0 %v749, 64
      %v1473 = vpop.permute.xlu0 %1472
      %1474 = vrot.lane.b32.xlu0 %v752, 64
      %v1475 = vpop.permute.xlu0 %1474
      %1476 = vrot.lane.b32.xlu0 %v754, 64
      %v1477 = vpop.permute.xlu0 %1476
      %1510 = vrot.lane.b32.xlu0 %v175, 64
      %v1511 = vpop.permute.xlu0 %1510
      %1512 = vrot.lane.b32.xlu0 %v176, 64
      %v1513 = vpop.permute.xlu0 %1512
      %1514 = vrot.lane.b32.xlu0 %v178, 64
      %v1515 = vpop.permute.xlu0 %1514
      %1516 = vrot.lane.b32.xlu0 %v179, 64
      %v1517 = vpop.permute.xlu0 %1516
      %1518 = vrot.lane.b32.xlu0 %v181, 64
      %v1519 = vpop.permute.xlu0 %1518
      %1520 = vrot.lane.b32.xlu0 %v182, 64
      %v1521 = vpop.permute.xlu0 %1520
      %1522 = vrot.lane.b32.xlu0 %v184, 64
      %v1523 = vpop.permute.xlu0 %1522
      %1524 = vrot.lane.b32.xlu0 %v185, 64
      %v1525 = vpop.permute.xlu0 %1524
      %1526 = vrot.lane.b32.xlu0 %v187, 64
      %v1527 = vpop.permute.xlu0 %1526
      %1528 = vrot.lane.b32.xlu0 %v188, 64
      %v1529 = vpop.permute.xlu0 %1528
      %1530 = vrot.lane.b32.xlu0 %v190, 64
      %v1531 = vpop.permute.xlu0 %1530
      %1532 = vrot.lane.b32.xlu0 %v191, 64
      %v1533 = vpop.permute.xlu0 %1532
      %1534 = vrot.lane.b32.xlu0 %v193, 64
      %v1535 = vpop.permute.xlu0 %1534
      %1536 = vrot.lane.b32.xlu0 %v194, 64
      %v1537 = vpop.permute.xlu0 %1536
      %1538 = vrot.lane.b32.xlu0 %v196, 64
      %v1539 = vpop.permute.xlu0 %1538
      %1540 = vrot.lane.b32.xlu0 %v197, 64
      %v1541 = vpop.permute.xlu0 %1540
      %1542 = vrot.lane.b32.xlu0 %v199, 64
      %v1543 = vpop.permute.xlu0 %1542
      %1544 = vrot.lane.b32.xlu0 %v200, 64
      %v1545 = vpop.permute.xlu0 %1544
      %1546 = vrot.lane.b32.xlu0 %v202, 64
      %v1547 = vpop.permute.xlu0 %1546
      %1548 = vrot.lane.b32.xlu0 %v203, 64
      %v1549 = vpop.permute.xlu0 %1548
      %1550 = vrot.lane.b32.xlu0 %v205, 64
      %v1551 = vpop.permute.xlu0 %1550
      %1552 = vrot.lane.b32.xlu0 %v206, 64
      %v1553 = vpop.permute.xlu0 %1552
      %1554 = vrot.lane.b32.xlu0 %v208, 64
      %v1555 = vpop.permute.xlu0 %1554
      %1556 = vrot.lane.b32.xlu0 %v209, 64
      %v1557 = vpop.permute.xlu0 %1556
      %1558 = vrot.lane.b32.xlu0 %v211, 64
      %v1559 = vpop.permute.xlu0 %1558
      %1560 = vrot.lane.b32.xlu0 %v212, 64
      %v1561 = vpop.permute.xlu0 %1560
      %1562 = vrot.lane.b32.xlu0 %v214, 64
      %v1563 = vpop.permute.xlu0 %1562
      %1564 = vrot.lane.b32.xlu0 %v215, 64
      %v1565 = vpop.permute.xlu0 %1564
      %1566 = vrot.lane.b32.xlu0 %v217, 64
      %v1567 = vpop.permute.xlu0 %1566
      %1568 = vrot.lane.b32.xlu0 %v218, 64
      %v1569 = vpop.permute.xlu0 %1568
      %1570 = vrot.lane.b32.xlu0 %v220, 64
      %v1571 = vpop.permute.xlu0 %1570
      %1572 = vrot.lane.b32.xlu0 %v221, 64
      %v1573 = vpop.permute.xlu0 %1572
      %1606 = vrot.lane.b32.xlu0 %v375, 64
      %v1607 = vpop.permute.xlu0 %1606
      %1608 = vrot.lane.b32.xlu0 %v377, 64
      %v1609 = vpop.permute.xlu0 %1608
      %1610 = vrot.lane.b32.xlu0 %v380, 64
      %v1611 = vpop.permute.xlu0 %1610
      %1612 = vrot.lane.b32.xlu0 %v382, 64
      %v1613 = vpop.permute.xlu0 %1612
      %1614 = vrot.lane.b32.xlu0 %v385, 64
      %v1615 = vpop.permute.xlu0 %1614
      %1616 = vrot.lane.b32.xlu0 %v387, 64
      %v1617 = vpop.permute.xlu0 %1616
      %1618 = vrot.lane.b32.xlu0 %v390, 64
      %v1619 = vpop.permute.xlu0 %1618
      %1620 = vrot.lane.b32.xlu0 %v392, 64
      %v1621 = vpop.permute.xlu0 %1620
      %1622 = vrot.lane.b32.xlu0 %v395, 64
      %v1623 = vpop.permute.xlu0 %1622
      %1624 = vrot.lane.b32.xlu0 %v397, 64
      %v1625 = vpop.permute.xlu0 %1624
      %1626 = vrot.lane.b32.xlu0 %v400, 64
      %v1627 = vpop.permute.xlu0 %1626
      %1628 = vrot.lane.b32.xlu0 %v402, 64
      %v1629 = vpop.permute.xlu0 %1628
      %1630 = vrot.lane.b32.xlu0 %v405, 64
      %v1631 = vpop.permute.xlu0 %1630
      %1632 = vrot.lane.b32.xlu0 %v407, 64
      %v1633 = vpop.permute.xlu0 %1632
      %1634 = vrot.lane.b32.xlu0 %v410, 64
      %v1635 = vpop.permute.xlu0 %1634
      %1636 = vrot.lane.b32.xlu0 %v412, 64
      %v1637 = vpop.permute.xlu0 %1636
      %1638 = vrot.lane.b32.xlu0 %v415, 64
      %v1639 = vpop.permute.xlu0 %1638
      %1640 = vrot.lane.b32.xlu0 %v417, 64
      %v1641 = vpop.permute.xlu0 %1640
      %1642 = vrot.lane.b32.xlu0 %v420, 64
      %v1643 = vpop.permute.xlu0 %1642
      %1644 = vrot.lane.b32.xlu0 %v422, 64
      %v1645 = vpop.permute.xlu0 %1644
      %1646 = vrot.lane.b32.xlu0 %v425, 64
      %v1647 = vpop.permute.xlu0 %1646
      %1648 = vrot.lane.b32.xlu0 %v427, 64
      %v1649 = vpop.permute.xlu0 %1648
      %1650 = vrot.lane.b32.xlu0 %v430, 64
      %v1651 = vpop.permute.xlu0 %1650
      %1652 = vrot.lane.b32.xlu0 %v432, 64
      %v1653 = vpop.permute.xlu0 %1652
      %1654 = vrot.lane.b32.xlu0 %v435, 64
      %v1655 = vpop.permute.xlu0 %1654
      %1656 = vrot.lane.b32.xlu0 %v437, 64
      %v1657 = vpop.permute.xlu0 %1656
      %1658 = vrot.lane.b32.xlu0 %v440, 64
      %v1659 = vpop.permute.xlu0 %1658
      %1660 = vrot.lane.b32.xlu0 %v442, 64
      %v1661 = vpop.permute.xlu0 %1660
      %1662 = vrot.lane.b32.xlu0 %v445, 64
      %v1663 = vpop.permute.xlu0 %1662
      %1664 = vrot.lane.b32.xlu0 %v447, 64
      %v1665 = vpop.permute.xlu0 %1664
      %1666 = vrot.lane.b32.xlu0 %v910, 64
      %v1667 = vpop.permute.xlu0 %1666
      %1668 = vrot.lane.b32.xlu0 %v912, 64
      %v1669 = vpop.permute.xlu0 %1668
      %1702 = vrot.lane.b32.xlu0 %v569, 64
      %v1703 = vpop.permute.xlu0 %1702
      %1704 = vrot.lane.b32.xlu0 %v571, 64
      %v1705 = vpop.permute.xlu0 %1704
      %1706 = vrot.lane.b32.xlu0 %v574, 64
      %v1707 = vpop.permute.xlu0 %1706
      %1708 = vrot.lane.b32.xlu0 %v576, 64
      %v1709 = vpop.permute.xlu0 %1708
      %1710 = vrot.lane.b32.xlu0 %v579, 64
      %v1711 = vpop.permute.xlu0 %1710
      %1712 = vrot.lane.b32.xlu0 %v581, 64
      %v1713 = vpop.permute.xlu0 %1712
      %1714 = vrot.lane.b32.xlu0 %v584, 64
      %v1715 = vpop.permute.xlu0 %1714
      %1716 = vrot.lane.b32.xlu0 %v586, 64
      %v1717 = vpop.permute.xlu0 %1716
      %1718 = vrot.lane.b32.xlu0 %v589, 64
      %v1719 = vpop.permute.xlu0 %1718
      %1720 = vrot.lane.b32.xlu0 %v591, 64
      %v1721 = vpop.permute.xlu0 %1720
      %1722 = vrot.lane.b32.xlu0 %v594, 64
      %v1723 = vpop.permute.xlu0 %1722
      %1724 = vrot.lane.b32.xlu0 %v596, 64
      %v1725 = vpop.permute.xlu0 %1724
      %1726 = vrot.lane.b32.xlu0 %v599, 64
      %v1727 = vpop.permute.xlu0 %1726
      %1728 = vrot.lane.b32.xlu0 %v601, 64
      %v1729 = vpop.permute.xlu0 %1728
      %1730 = vrot.lane.b32.xlu0 %v604, 64
      %v1731 = vpop.permute.xlu0 %1730
      %1732 = vrot.lane.b32.xlu0 %v606, 64
      %v1733 = vpop.permute.xlu0 %1732
      %1734 = vrot.lane.b32.xlu0 %v609, 64
      %v1735 = vpop.permute.xlu0 %1734
      %1736 = vrot.lane.b32.xlu0 %v611, 64
      %v1737 = vpop.permute.xlu0 %1736
      %1738 = vrot.lane.b32.xlu0 %v614, 64
      %v1739 = vpop.permute.xlu0 %1738
      %1740 = vrot.lane.b32.xlu0 %v616, 64
      %v1741 = vpop.permute.xlu0 %1740
      %1742 = vrot.lane.b32.xlu0 %v619, 64
      %v1743 = vpop.permute.xlu0 %1742
      %1744 = vrot.lane.b32.xlu0 %v621, 64
      %v1745 = vpop.permute.xlu0 %1744
      %1746 = vrot.lane.b32.xlu0 %v624, 64
      %v1747 = vpop.permute.xlu0 %1746
      %1748 = vrot.lane.b32.xlu0 %v626, 64
      %v1749 = vpop.permute.xlu0 %1748
      %1750 = vrot.lane.b32.xlu0 %v629, 64
      %v1751 = vpop.permute.xlu0 %1750
      %1752 = vrot.lane.b32.xlu0 %v631, 64
      %v1753 = vpop.permute.xlu0 %1752
      %1754 = vrot.lane.b32.xlu0 %v634, 64
      %v1755 = vpop.permute.xlu0 %1754
      %1756 = vrot.lane.b32.xlu0 %v636, 64
      %v1757 = vpop.permute.xlu0 %1756
      %1758 = vrot.lane.b32.xlu0 %v639, 64
      %v1759 = vpop.permute.xlu0 %1758
      %1760 = vrot.lane.b32.xlu0 %v641, 64
      %v1761 = vpop.permute.xlu0 %1760
      %1762 = vrot.lane.b32.xlu0 %v952, 64
      %v1763 = vpop.permute.xlu0 %1762
      %1764 = vrot.lane.b32.xlu0 %v954, 64
      %v1765 = vpop.permute.xlu0 %1764
      %1798 = vrot.lane.b32.xlu0 %v763, 64
      %v1799 = vpop.permute.xlu0 %1798
      %1800 = vrot.lane.b32.xlu0 %v765, 64
      %v1801 = vpop.permute.xlu0 %1800
      %1802 = vrot.lane.b32.xlu0 %v768, 64
      %v1803 = vpop.permute.xlu0 %1802
      %1804 = vrot.lane.b32.xlu0 %v770, 64
      %v1805 = vpop.permute.xlu0 %1804
      %1806 = vrot.lane.b32.xlu0 %v773, 64
      %v1807 = vpop.permute.xlu0 %1806
      %1808 = vrot.lane.b32.xlu0 %v775, 64
      %v1809 = vpop.permute.xlu0 %1808
      %1810 = vrot.lane.b32.xlu0 %v778, 64
      %v1811 = vpop.permute.xlu0 %1810
      %1812 = vrot.lane.b32.xlu0 %v780, 64
      %v1813 = vpop.permute.xlu0 %1812
      %1814 = vrot.lane.b32.xlu0 %v783, 64
      %v1815 = vpop.permute.xlu0 %1814
      %1816 = vrot.lane.b32.xlu0 %v785, 64
      %v1817 = vpop.permute.xlu0 %1816
      %1818 = vrot.lane.b32.xlu0 %v788, 64
      %v1819 = vpop.permute.xlu0 %1818
      %1820 = vrot.lane.b32.xlu0 %v790, 64
      %v1821 = vpop.permute.xlu0 %1820
      %1822 = vrot.lane.b32.xlu0 %v793, 64
      %v1823 = vpop.permute.xlu0 %1822
      %1824 = vrot.lane.b32.xlu0 %v795, 64
      %v1825 = vpop.permute.xlu0 %1824
      %1826 = vrot.lane.b32.xlu0 %v798, 64
      %v1827 = vpop.permute.xlu0 %1826
      %1828 = vrot.lane.b32.xlu0 %v800, 64
      %v1829 = vpop.permute.xlu0 %1828
      %1830 = vrot.lane.b32.xlu0 %v803, 64
      %v1831 = vpop.permute.xlu0 %1830
      %1832 = vrot.lane.b32.xlu0 %v805, 64
      %v1833 = vpop.permute.xlu0 %1832
      %1834 = vrot.lane.b32.xlu0 %v808, 64
      %v1835 = vpop.permute.xlu0 %1834
      %1836 = vrot.lane.b32.xlu0 %v810, 64
      %v1837 = vpop.permute.xlu0 %1836
      %1838 = vrot.lane.b32.xlu0 %v813, 64
      %v1839 = vpop.permute.xlu0 %1838
      %1840 = vrot.lane.b32.xlu0 %v815, 64
      %v1841 = vpop.permute.xlu0 %1840
      %1842 = vrot.lane.b32.xlu0 %v818, 64
      %v1843 = vpop.permute.xlu0 %1842
      %1844 = vrot.lane.b32.xlu0 %v820, 64
      %v1845 = vpop.permute.xlu0 %1844
      %1846 = vrot.lane.b32.xlu0 %v823, 64
      %v1847 = vpop.permute.xlu0 %1846
      %1848 = vrot.lane.b32.xlu0 %v825, 64
      %v1849 = vpop.permute.xlu0 %1848
      %1850 = vrot.lane.b32.xlu0 %v828, 64
      %v1851 = vpop.permute.xlu0 %1850
      %1852 = vrot.lane.b32.xlu0 %v830, 64
      %v1853 = vpop.permute.xlu0 %1852
      %1854 = vrot.lane.b32.xlu0 %v833, 64
      %v1855 = vpop.permute.xlu0 %1854
      %1856 = vrot.lane.b32.xlu0 %v835, 64
      %v1857 = vpop.permute.xlu0 %1856
      %1858 = vrot.lane.b32.xlu0 %v994, 64
      %v1859 = vpop.permute.xlu0 %1858
      %1860 = vrot.lane.b32.xlu0 %v996, 64
      %v1861 = vpop.permute.xlu0 %1860
      %1894 = vrot.lane.b32.xlu0 %v873, 64
      %v1895 = vpop.permute.xlu0 %1894
      %1896 = vrot.lane.b32.xlu0 %v875, 64
      %v1897 = vpop.permute.xlu0 %1896
      %1898 = vrot.lane.b32.xlu0 %v1002, 64
      %v1899 = vpop.permute.xlu0 %1898
      %1900 = vrot.lane.b32.xlu0 %v1004, 64
      %v1901 = vpop.permute.xlu0 %1900
      %vm1906 = vcmask 523264
      %v1907 = vsel %vm1906, %v172, %v1223
      %v1908 = vsel %vm1906, %v173, %v1225
      %v1909 = vsel %vm1906, %v175, %v1227
      %v1910 = vsel %vm1906, %v176, %v1229
      %v1911 = vsel %vm1906, %v178, %v1231
      %v1912 = vsel %vm1906, %v179, %v1233
      %v1913 = vsel %vm1906, %v181, %v1235
      %v1914 = vsel %vm1906, %v182, %v1237
      %v1915 = vsel %vm1906, %v184, %v1239
      %v1916 = vsel %vm1906, %v185, %v1241
      %v1917 = vsel %vm1906, %v187, %v1243
      %v1918 = vsel %vm1906, %v188, %v1245
      %v1919 = vsel %vm1906, %v190, %v1247
      %v1920 = vsel %vm1906, %v191, %v1249
      %v1921 = vsel %vm1906, %v193, %v1251
      %v1922 = vsel %vm1906, %v194, %v1253
      %v1923 = vsel %vm1906, %v196, %v1255
      %v1924 = vsel %vm1906, %v197, %v1257
      %v1925 = vsel %vm1906, %v199, %v1259
      %v1926 = vsel %vm1906, %v200, %v1261
      %v1927 = vsel %vm1906, %v202, %v1263
      %v1928 = vsel %vm1906, %v203, %v1265
      %v1929 = vsel %vm1906, %v205, %v1267
      %v1930 = vsel %vm1906, %v206, %v1269
      %v1931 = vsel %vm1906, %v208, %v1271
      %v1932 = vsel %vm1906, %v209, %v1273
      %v1933 = vsel %vm1906, %v211, %v1275
      %v1934 = vsel %vm1906, %v212, %v1277
      %v1935 = vsel %vm1906, %v214, %v1279
      %v1936 = vsel %vm1906, %v215, %v1281
      %v1937 = vsel %vm1906, %v217, %v1283
      %v1938 = vsel %vm1906, %v218, %v1285
      %v1939 = vsel %vm1906, %v370, %v1319
      %v1940 = vsel %vm1906, %v372, %v1321
      %v1941 = vsel %vm1906, %v375, %v1323
      %v1942 = vsel %vm1906, %v377, %v1325
      %v1943 = vsel %vm1906, %v380, %v1327
      %v1944 = vsel %vm1906, %v382, %v1329
      %v1945 = vsel %vm1906, %v385, %v1331
      %v1946 = vsel %vm1906, %v387, %v1333
      %v1947 = vsel %vm1906, %v390, %v1335
      %v1948 = vsel %vm1906, %v392, %v1337
      %v1949 = vsel %vm1906, %v395, %v1339
      %v1950 = vsel %vm1906, %v397, %v1341
      %v1951 = vsel %vm1906, %v400, %v1343
      %v1952 = vsel %vm1906, %v402, %v1345
      %v1953 = vsel %vm1906, %v405, %v1347
      %v1954 = vsel %vm1906, %v407, %v1349
      %v1955 = vsel %vm1906, %v410, %v1351
      %v1956 = vsel %vm1906, %v412, %v1353
      %v1957 = vsel %vm1906, %v415, %v1355
      %v1958 = vsel %vm1906, %v417, %v1357
      %v1959 = vsel %vm1906, %v420, %v1359
      %v1960 = vsel %vm1906, %v422, %v1361
      %v1961 = vsel %vm1906, %v425, %v1363
      %v1962 = vsel %vm1906, %v427, %v1365
      %v1963 = vsel %vm1906, %v430, %v1367
      %v1964 = vsel %vm1906, %v432, %v1369
      %v1965 = vsel %vm1906, %v435, %v1371
      %v1966 = vsel %vm1906, %v437, %v1373
      %v1967 = vsel %vm1906, %v440, %v1375
      %v1968 = vsel %vm1906, %v442, %v1377
      %v1969 = vsel %vm1906, %v445, %v1379
      %v1970 = vsel %vm1906, %v447, %v1381
      %v1971 = vsel %vm1906, %v564, %v1415
      %v1972 = vsel %vm1906, %v566, %v1417
      %v1973 = vsel %vm1906, %v569, %v1419
      %v1974 = vsel %vm1906, %v571, %v1421
      %v1975 = vsel %vm1906, %v574, %v1423
      %v1976 = vsel %vm1906, %v576, %v1425
      %v1977 = vsel %vm1906, %v579, %v1427
      %v1978 = vsel %vm1906, %v581, %v1429
      %v1979 = vsel %vm1906, %v584, %v1431
      %v1980 = vsel %vm1906, %v586, %v1433
      %v1981 = vsel %vm1906, %v589, %v1435
      %v1982 = vsel %vm1906, %v591, %v1437
      %v1983 = vsel %vm1906, %v594, %v1439
      %v1984 = vsel %vm1906, %v596, %v1441
      %v1985 = vsel %vm1906, %v599, %v1443
      %v1986 = vsel %vm1906, %v601, %v1445
      %v1987 = vsel %vm1906, %v604, %v1447
      %v1988 = vsel %vm1906, %v606, %v1449
      %v1989 = vsel %vm1906, %v609, %v1451
      %v1990 = vsel %vm1906, %v611, %v1453
      %v1991 = vsel %vm1906, %v614, %v1455
      %v1992 = vsel %vm1906, %v616, %v1457
      %v1993 = vsel %vm1906, %v619, %v1459
      %v1994 = vsel %vm1906, %v621, %v1461
      %v1995 = vsel %vm1906, %v624, %v1463
      %v1996 = vsel %vm1906, %v626, %v1465
      %v1997 = vsel %vm1906, %v629, %v1467
      %v1998 = vsel %vm1906, %v631, %v1469
      %v1999 = vsel %vm1906, %v634, %v1471
      %v2000 = vsel %vm1906, %v636, %v1473
      %v2001 = vsel %vm1906, %v639, %v1475
      %v2002 = vsel %vm1906, %v641, %v1477
      %v2003 = vsel %vm1906, %v758, %v1511
      %v2004 = vsel %vm1906, %v760, %v1513
      %v2005 = vsel %vm1906, %v763, %v1515
      %v2006 = vsel %vm1906, %v765, %v1517
      %v2007 = vsel %vm1906, %v768, %v1519
      %v2008 = vsel %vm1906, %v770, %v1521
      %v2009 = vsel %vm1906, %v773, %v1523
      %v2010 = vsel %vm1906, %v775, %v1525
      %v2011 = vsel %vm1906, %v778, %v1527
      %v2012 = vsel %vm1906, %v780, %v1529
      %v2013 = vsel %vm1906, %v783, %v1531
      %v2014 = vsel %vm1906, %v785, %v1533
      %v2015 = vsel %vm1906, %v788, %v1535
      %v2016 = vsel %vm1906, %v790, %v1537
      %v2017 = vsel %vm1906, %v793, %v1539
      %v2018 = vsel %vm1906, %v795, %v1541
      %v2019 = vsel %vm1906, %v798, %v1543
      %v2020 = vsel %vm1906, %v800, %v1545
      %v2021 = vsel %vm1906, %v803, %v1547
      %v2022 = vsel %vm1906, %v805, %v1549
      %v2023 = vsel %vm1906, %v808, %v1551
      %v2024 = vsel %vm1906, %v810, %v1553
      %v2025 = vsel %vm1906, %v813, %v1555
      %v2026 = vsel %vm1906, %v815, %v1557
      %v2027 = vsel %vm1906, %v818, %v1559
      %v2028 = vsel %vm1906, %v820, %v1561
      %v2029 = vsel %vm1906, %v823, %v1563
      %v2030 = vsel %vm1906, %v825, %v1565
      %v2031 = vsel %vm1906, %v828, %v1567
      %v2032 = vsel %vm1906, %v830, %v1569
      %v2033 = vsel %vm1906, %v833, %v1571
      %v2034 = vsel %vm1906, %v835, %v1573
      %v2035 = vsel %vm1906, %v294, %v1607
      %v2036 = vsel %vm1906, %v296, %v1609
      %v2037 = vsel %vm1906, %v299, %v1611
      %v2038 = vsel %vm1906, %v301, %v1613
      %v2039 = vsel %vm1906, %v304, %v1615
      %v2040 = vsel %vm1906, %v306, %v1617
      %v2041 = vsel %vm1906, %v309, %v1619
      %v2042 = vsel %vm1906, %v311, %v1621
      %v2043 = vsel %vm1906, %v314, %v1623
      %v2044 = vsel %vm1906, %v316, %v1625
      %v2045 = vsel %vm1906, %v319, %v1627
      %v2046 = vsel %vm1906, %v321, %v1629
      %v2047 = vsel %vm1906, %v324, %v1631
      %v2048 = vsel %vm1906, %v326, %v1633
      %v2049 = vsel %vm1906, %v329, %v1635
      %v2050 = vsel %vm1906, %v331, %v1637
      %v2051 = vsel %vm1906, %v334, %v1639
      %v2052 = vsel %vm1906, %v336, %v1641
      %v2053 = vsel %vm1906, %v339, %v1643
      %v2054 = vsel %vm1906, %v341, %v1645
      %v2055 = vsel %vm1906, %v344, %v1647
      %v2056 = vsel %vm1906, %v346, %v1649
      %v2057 = vsel %vm1906, %v349, %v1651
      %v2058 = vsel %vm1906, %v351, %v1653
      %v2059 = vsel %vm1906, %v354, %v1655
      %v2060 = vsel %vm1906, %v356, %v1657
      %v2061 = vsel %vm1906, %v359, %v1659
      %v2062 = vsel %vm1906, %v361, %v1661
      %v2063 = vsel %vm1906, %v364, %v1663
      %v2064 = vsel %vm1906, %v366, %v1665
      %v2065 = vsel %vm1906, %v873, %v1667
      %v2066 = vsel %vm1906, %v875, %v1669
      %v2067 = vsel %vm1906, %v488, %v1703
      %v2068 = vsel %vm1906, %v490, %v1705
      %v2069 = vsel %vm1906, %v493, %v1707
      %v2070 = vsel %vm1906, %v495, %v1709
      %v2071 = vsel %vm1906, %v498, %v1711
      %v2072 = vsel %vm1906, %v500, %v1713
      %v2073 = vsel %vm1906, %v503, %v1715
      %v2074 = vsel %vm1906, %v505, %v1717
      %v2075 = vsel %vm1906, %v508, %v1719
      %v2076 = vsel %vm1906, %v510, %v1721
      %v2077 = vsel %vm1906, %v513, %v1723
      %v2078 = vsel %vm1906, %v515, %v1725
      %v2079 = vsel %vm1906, %v518, %v1727
      %v2080 = vsel %vm1906, %v520, %v1729
      %v2081 = vsel %vm1906, %v523, %v1731
      %v2082 = vsel %vm1906, %v525, %v1733
      %v2083 = vsel %vm1906, %v528, %v1735
      %v2084 = vsel %vm1906, %v530, %v1737
      %v2085 = vsel %vm1906, %v533, %v1739
      %v2086 = vsel %vm1906, %v535, %v1741
      %v2087 = vsel %vm1906, %v538, %v1743
      %v2088 = vsel %vm1906, %v540, %v1745
      %v2089 = vsel %vm1906, %v543, %v1747
      %v2090 = vsel %vm1906, %v545, %v1749
      %v2091 = vsel %vm1906, %v548, %v1751
      %v2092 = vsel %vm1906, %v550, %v1753
      %v2093 = vsel %vm1906, %v553, %v1755
      %v2094 = vsel %vm1906, %v555, %v1757
      %v2095 = vsel %vm1906, %v558, %v1759
      %v2096 = vsel %vm1906, %v560, %v1761
      %v2097 = vsel %vm1906, %v915, %v1763
      %v2098 = vsel %vm1906, %v917, %v1765
      %v2099 = vsel %vm1906, %v682, %v1799
      %v2100 = vsel %vm1906, %v684, %v1801
      %v2101 = vsel %vm1906, %v687, %v1803
      %v2102 = vsel %vm1906, %v689, %v1805
      %v2103 = vsel %vm1906, %v692, %v1807
      %v2104 = vsel %vm1906, %v694, %v1809
      %v2105 = vsel %vm1906, %v697, %v1811
      %v2106 = vsel %vm1906, %v699, %v1813
      %v2107 = vsel %vm1906, %v702, %v1815
      %v2108 = vsel %vm1906, %v704, %v1817
      %v2109 = vsel %vm1906, %v707, %v1819
      %v2110 = vsel %vm1906, %v709, %v1821
      %v2111 = vsel %vm1906, %v712, %v1823
      %v2112 = vsel %vm1906, %v714, %v1825
      %v2113 = vsel %vm1906, %v717, %v1827
      %v2114 = vsel %vm1906, %v719, %v1829
      %v2115 = vsel %vm1906, %v722, %v1831
      %v2116 = vsel %vm1906, %v724, %v1833
      %v2117 = vsel %vm1906, %v727, %v1835
      %v2118 = vsel %vm1906, %v729, %v1837
      %v2119 = vsel %vm1906, %v732, %v1839
      %v2120 = vsel %vm1906, %v734, %v1841
      %v2121 = vsel %vm1906, %v737, %v1843
      %v2122 = vsel %vm1906, %v739, %v1845
      %v2123 = vsel %vm1906, %v742, %v1847
      %v2124 = vsel %vm1906, %v744, %v1849
      %v2125 = vsel %vm1906, %v747, %v1851
      %v2126 = vsel %vm1906, %v749, %v1853
      %v2127 = vsel %vm1906, %v752, %v1855
      %v2128 = vsel %vm1906, %v754, %v1857
      %v2129 = vsel %vm1906, %v957, %v1859
      %v2130 = vsel %vm1906, %v959, %v1861
      %v2131 = vsel %vm1906, %v220, %v1895
      %v2132 = vsel %vm1906, %v221, %v1897
      %v2133 = vsel %vm1906, %v223, %v1899
      %v2134 = vsel %vm1906, %v224, %v1901
      %2135 = vrot.lane.b32.xlu0 %v915, 64
      %v2136 = vpop.permute.xlu0 %2135
      %2137 = vrot.lane.b32.xlu0 %v917, 64
      %v2138 = vpop.permute.xlu0 %2137
      %2139 = vrot.lane.b32.xlu0 %v1016, 64
      %v2140 = vpop.permute.xlu0 %2139
      %2141 = vrot.lane.b32.xlu0 %v1018, 64
      %v2142 = vpop.permute.xlu0 %2141
      %2147 = vrot.lane.b32.xlu0 %v957, 64
      %v2148 = vpop.permute.xlu0 %2147
      %2149 = vrot.lane.b32.xlu0 %v959, 64
      %v2150 = vpop.permute.xlu0 %2149
      %2151 = vrot.lane.b32.xlu0 %v1030, 64
      %v2152 = vpop.permute.xlu0 %2151
      %2153 = vrot.lane.b32.xlu0 %v1032, 64
      %v2154 = vpop.permute.xlu0 %2153
      %2159 = vrot.lane.b32.xlu0 %v223, 64
      %v2160 = vpop.permute.xlu0 %2159
      %2161 = vrot.lane.b32.xlu0 %v224, 64
      %v2162 = vpop.permute.xlu0 %2161
      %2163 = vrot.lane.b32.xlu0 %v226, 64
      %v2164 = vpop.permute.xlu0 %2163
      %2165 = vrot.lane.b32.xlu0 %v227, 64
      %v2166 = vpop.permute.xlu0 %2165
      %2171 = vrot.lane.b32.xlu0 %v1007, 64
      %v2172 = vpop.permute.xlu0 %2171
      %2173 = vrot.lane.b32.xlu0 %v1009, 64
      %v2174 = vpop.permute.xlu0 %2173
      %2175 = vrot.lane.b32.xlu0 %v1056, 64
      %v2176 = vpop.permute.xlu0 %2175
      %2177 = vrot.lane.b32.xlu0 %v1058, 64
      %v2178 = vpop.permute.xlu0 %2177
      %2183 = vrot.lane.b32.xlu0 %v1021, 64
      %v2184 = vpop.permute.xlu0 %2183
      %2185 = vrot.lane.b32.xlu0 %v1023, 64
      %v2186 = vpop.permute.xlu0 %2185
      %2187 = vrot.lane.b32.xlu0 %v1070, 64
      %v2188 = vpop.permute.xlu0 %2187
      %2189 = vrot.lane.b32.xlu0 %v1072, 64
      %v2190 = vpop.permute.xlu0 %2189
      %2195 = vrot.lane.b32.xlu0 %v1035, 64
      %v2196 = vpop.permute.xlu0 %2195
      %2197 = vrot.lane.b32.xlu0 %v1037, 64
      %v2198 = vpop.permute.xlu0 %2197
      %2199 = vrot.lane.b32.xlu0 %v1084, 64
      %v2200 = vpop.permute.xlu0 %2199
      %2201 = vrot.lane.b32.xlu0 %v1086, 64
      %v2202 = vpop.permute.xlu0 %2201
      %2207 = vrot.lane.b32.xlu0 %v1047, 64
      %v2208 = vpop.permute.xlu0 %2207
      %2209 = vrot.lane.b32.xlu0 %v1049, 64
      %v2210 = vpop.permute.xlu0 %2209
      %2211 = vrot.lane.b32.xlu0 %v1092, 64
      %v2212 = vpop.permute.xlu0 %2211
      %2213 = vrot.lane.b32.xlu0 %v1094, 64
      %v2214 = vpop.permute.xlu0 %2213
      %2219 = vrot.lane.b32.xlu0 %v1061, 64
      %v2220 = vpop.permute.xlu0 %2219
      %2221 = vrot.lane.b32.xlu0 %v1063, 64
      %v2222 = vpop.permute.xlu0 %2221
      %2223 = vrot.lane.b32.xlu0 %v1106, 64
      %v2224 = vpop.permute.xlu0 %2223
      %2225 = vrot.lane.b32.xlu0 %v1108, 64
      %v2226 = vpop.permute.xlu0 %2225
      %v2231 = vsel %vm1906, %v910, %v2136
      %v2232 = vsel %vm1906, %v912, %v2138
      %v2233 = vsel %vm1906, %v1007, %v2140
      %v2234 = vsel %vm1906, %v1009, %v2142
      %v2235 = vsel %vm1906, %v952, %v2148
      %v2236 = vsel %vm1906, %v954, %v2150
      %v2237 = vsel %vm1906, %v1021, %v2152
      %v2238 = vsel %vm1906, %v1023, %v2154
      %v2239 = vsel %vm1906, %v994, %v2160
      %v2240 = vsel %vm1906, %v996, %v2162
      %v2241 = vsel %vm1906, %v1035, %v2164
      %v2242 = vsel %vm1906, %v1037, %v2166
      %v2243 = vsel %vm1906, %v1002, %v2172
      %v2244 = vsel %vm1906, %v1004, %v2174
      %v2245 = vsel %vm1906, %v1047, %v2176
      %v2246 = vsel %vm1906, %v1049, %v2178
      %v2247 = vsel %vm1906, %v1016, %v2184
      %v2248 = vsel %vm1906, %v1018, %v2186
      %v2249 = vsel %vm1906, %v1061, %v2188
      %v2250 = vsel %vm1906, %v1063, %v2190
      %v2251 = vsel %vm1906, %v1030, %v2196
      %v2252 = vsel %vm1906, %v1032, %v2198
      %v2253 = vsel %vm1906, %v1075, %v2200
      %v2254 = vsel %vm1906, %v1077, %v2202
      %v2255 = vsel %vm1906, %v226, %v2208
      %v2256 = vsel %vm1906, %v227, %v2210
      %v2257 = vsel %vm1906, %v229, %v2212
      %v2258 = vsel %vm1906, %v230, %v2214
      %v2259 = vsel %vm1906, %v1056, %v2220
      %v2260 = vsel %vm1906, %v1058, %v2222
      %v2261 = vsel %vm1906, %v1097, %v2224
      %v2262 = vsel %vm1906, %v1099, %v2226
      %2263 = vrot.lane.b32.xlu0 %v1075, 64
      %v2264 = vpop.permute.xlu0 %2263
      %2265 = vrot.lane.b32.xlu0 %v1077, 64
      %v2266 = vpop.permute.xlu0 %2265
      %2267 = vrot.lane.b32.xlu0 %v1120, 64
      %v2268 = vpop.permute.xlu0 %2267
      %2269 = vrot.lane.b32.xlu0 %v1122, 64
      %v2270 = vpop.permute.xlu0 %2269
      %2275 = vrot.lane.b32.xlu0 %v229, 64
      %v2276 = vpop.permute.xlu0 %2275
      %2277 = vrot.lane.b32.xlu0 %v230, 64
      %v2278 = vpop.permute.xlu0 %2277
      %2279 = vrot.lane.b32.xlu0 %v232, 64
      %v2280 = vpop.permute.xlu0 %2279
      %2281 = vrot.lane.b32.xlu0 %v233, 64
      %v2282 = vpop.permute.xlu0 %2281
      %2287 = vrot.lane.b32.xlu0 %v1097, 64
      %v2288 = vpop.permute.xlu0 %2287
      %2289 = vrot.lane.b32.xlu0 %v1099, 64
      %v2290 = vpop.permute.xlu0 %2289
      %2291 = vrot.lane.b32.xlu0 %v1146, 64
      %v2292 = vpop.permute.xlu0 %2291
      %2293 = vrot.lane.b32.xlu0 %v1148, 64
      %v2294 = vpop.permute.xlu0 %2293
      %2299 = vrot.lane.b32.xlu0 %v1111, 64
      %v2300 = vpop.permute.xlu0 %2299
      %2301 = vrot.lane.b32.xlu0 %v1113, 64
      %v2302 = vpop.permute.xlu0 %2301
      %2303 = vrot.lane.b32.xlu0 %v1160, 64
      %v2304 = vpop.permute.xlu0 %2303
      %2305 = vrot.lane.b32.xlu0 %v1162, 64
      %v2306 = vpop.permute.xlu0 %2305
      %2311 = vrot.lane.b32.xlu0 %v1125, 64
      %v2312 = vpop.permute.xlu0 %2311
      %2313 = vrot.lane.b32.xlu0 %v1127, 64
      %v2314 = vpop.permute.xlu0 %2313
      %2315 = vrot.lane.b32.xlu0 %v1174, 64
      %v2316 = vpop.permute.xlu0 %2315
      %2317 = vrot.lane.b32.xlu0 %v1176, 64
      %v2318 = vpop.permute.xlu0 %2317
      %2323 = vrot.lane.b32.xlu0 %v1137, 64
      %v2324 = vpop.permute.xlu0 %2323
      %2325 = vrot.lane.b32.xlu0 %v1139, 64
      %v2326 = vpop.permute.xlu0 %2325
      %2327 = vrot.lane.b32.xlu0 %v1182, 64
      %v2328 = vpop.permute.xlu0 %2327
      %2329 = vrot.lane.b32.xlu0 %v1184, 64
      %v2330 = vpop.permute.xlu0 %2329
      %2335 = vrot.lane.b32.xlu0 %v1151, 64
      %v2336 = vpop.permute.xlu0 %2335
      %2337 = vrot.lane.b32.xlu0 %v1153, 64
      %v2338 = vpop.permute.xlu0 %2337
      %2339 = vrot.lane.b32.xlu0 %v1196, 64
      %v2340 = vpop.permute.xlu0 %2339
      %2341 = vrot.lane.b32.xlu0 %v1198, 64
      %v2342 = vpop.permute.xlu0 %2341
      %2347 = vrot.lane.b32.xlu0 %v1165, 64
      %v2348 = vpop.permute.xlu0 %2347
      %2349 = vrot.lane.b32.xlu0 %v1167, 64
      %v2350 = vpop.permute.xlu0 %2349
      %2351 = vrot.lane.b32.xlu0 %v1210, 64
      %v2352 = vpop.permute.xlu0 %2351
      %2353 = vrot.lane.b32.xlu0 %v1212, 64
      %v2354 = vpop.permute.xlu0 %2353
      %v2359 = vsel %vm1906, %v1070, %v2264
      %v2360 = vsel %vm1906, %v1072, %v2266
      %v2361 = vsel %vm1906, %v1111, %v2268
      %v2362 = vsel %vm1906, %v1113, %v2270
      %v2363 = vsel %vm1906, %v1084, %v2276
      %v2364 = vsel %vm1906, %v1086, %v2278
      %v2365 = vsel %vm1906, %v1125, %v2280
      %v2366 = vsel %vm1906, %v1127, %v2282
      %v2367 = vsel %vm1906, %v1092, %v2288
      %v2368 = vsel %vm1906, %v1094, %v2290
      %v2369 = vsel %vm1906, %v1137, %v2292
      %v2370 = vsel %vm1906, %v1139, %v2294
      %v2371 = vsel %vm1906, %v1106, %v2300
      %v2372 = vsel %vm1906, %v1108, %v2302
      %v2373 = vsel %vm1906, %v1151, %v2304
      %v2374 = vsel %vm1906, %v1153, %v2306
      %v2375 = vsel %vm1906, %v1120, %v2312
      %v2376 = vsel %vm1906, %v1122, %v2314
      %v2377 = vsel %vm1906, %v1165, %v2316
      %v2378 = vsel %vm1906, %v1167, %v2318
      %v2379 = vsel %vm1906, %v232, %v2324
      %v2380 = vsel %vm1906, %v233, %v2326
      %v2381 = vsel %vm1906, %v235, %v2328
      %v2382 = vsel %vm1906, %v236, %v2330
      %v2383 = vsel %vm1906, %v1146, %v2336
      %v2384 = vsel %vm1906, %v1148, %v2338
      %v2385 = vsel %vm1906, %v1187, %v2340
      %v2386 = vsel %vm1906, %v1189, %v2342
      %v2387 = vsel %vm1906, %v1160, %v2348
      %v2388 = vsel %vm1906, %v1162, %v2350
      %v2389 = vsel %vm1906, %v1201, %v2352
      %v2390 = vsel %vm1906, %v1203, %v2354
      %v2391 = vpack.c.bf16 %v1908, %v1907
      %v2392 = vpack.c.bf16 %v1940, %v1939
      %v2393 = vpack.c.bf16 %v1972, %v1971
      %v2394 = vpack.c.bf16 %v2004, %v2003
      %v2395 = vpack.c.bf16 %v2036, %v2035
      %v2396 = vpack.c.bf16 %v2068, %v2067
      %v2397 = vpack.c.bf16 %v2100, %v2099
      %v2398 = vpack.c.bf16 %v1912, %v1911
      %v2399 = vpack.c.bf16 %v1944, %v1943
      %v2400 = vpack.c.bf16 %v1976, %v1975
      %v2401 = vpack.c.bf16 %v2008, %v2007
      %v2402 = vpack.c.bf16 %v2040, %v2039
      %v2403 = vpack.c.bf16 %v2072, %v2071
      %v2404 = vpack.c.bf16 %v2104, %v2103
      %v2405 = vpack.c.bf16 %v1916, %v1915
      %v2406 = vpack.c.bf16 %v1948, %v1947
      %v2407 = vpack.c.bf16 %v1980, %v1979
      %v2408 = vpack.c.bf16 %v2012, %v2011
      %v2409 = vpack.c.bf16 %v2044, %v2043
      %v2410 = vpack.c.bf16 %v2076, %v2075
      %v2411 = vpack.c.bf16 %v2108, %v2107
      %v2412 = vpack.c.bf16 %v1920, %v1919
      %v2413 = vpack.c.bf16 %v1952, %v1951
      %v2414 = vpack.c.bf16 %v1984, %v1983
      %v2415 = vpack.c.bf16 %v790, %v788
      %v2416 = vpack.c.bf16 %v1910, %v1909
      %v2417 = vpack.c.bf16 %v1942, %v1941
      %v2418 = vpack.c.bf16 %v1974, %v1973
      %v2419 = vpack.c.bf16 %v2006, %v2005
      %v2420 = vpack.c.bf16 %v2038, %v2037
      %v2421 = vpack.c.bf16 %v2070, %v2069
      %v2422 = vpack.c.bf16 %v2102, %v2101
      %v2423 = vpack.c.bf16 %v1914, %v1913
      %v2424 = vpack.c.bf16 %v1946, %v1945
      %v2425 = vpack.c.bf16 %v1978, %v1977
      %v2426 = vpack.c.bf16 %v2010, %v2009
      %v2427 = vpack.c.bf16 %v2042, %v2041
      %v2428 = vpack.c.bf16 %v2074, %v2073
      %v2429 = vpack.c.bf16 %v2106, %v2105
      %v2430 = vpack.c.bf16 %v1918, %v1917
      %v2431 = vpack.c.bf16 %v1950, %v1949
      %v2432 = vpack.c.bf16 %v1982, %v1981
      %v2433 = vpack.c.bf16 %v2014, %v2013
      %v2434 = vpack.c.bf16 %v2046, %v2045
      %v2435 = vpack.c.bf16 %v2078, %v2077
      %v2436 = vpack.c.bf16 %v2110, %v2109
      %v2437 = vpack.c.bf16 %v1922, %v1921
      %v2438 = vpack.c.bf16 %v1954, %v1953
      %v2439 = vpack.c.bf16 %v1986, %v1985
      %v2440 = vpack.c.bf16 %v795, %v793
      %v2441 = vpack.c.bf16 %v2016, %v2015
      %v2442 = vpack.c.bf16 %v2048, %v2047
      %v2443 = vpack.c.bf16 %v2080, %v2079
      %v2444 = vpack.c.bf16 %v2112, %v2111
      %v2445 = vpack.c.bf16 %v1924, %v1923
      %v2446 = vpack.c.bf16 %v1956, %v1955
      %v2447 = vpack.c.bf16 %v1988, %v1987
      %v2448 = vpack.c.bf16 %v800, %v798
      %v2449 = vpack.c.bf16 %v2018, %v2017
      %v2450 = vpack.c.bf16 %v2050, %v2049
      %v2451 = vpack.c.bf16 %v2082, %v2081
      %v2452 = vpack.c.bf16 %v2114, %v2113
      %v2453 = vpack.c.bf16 %v1926, %v1925
      %v2454 = vpack.c.bf16 %v1958, %v1957
      %v2455 = vpack.c.bf16 %v1990, %v1989
      %v2456 = vpack.c.bf16 %v805, %v803
      %v2457 = vpack.c.bf16 %v2020, %v2019
      %v2458 = vpack.c.bf16 %v2052, %v2051
      %v2459 = vpack.c.bf16 %v2084, %v2083
      %v2460 = vpack.c.bf16 %v2116, %v2115
      %v2461 = vpack.c.bf16 %v1928, %v1927
      %v2462 = vpack.c.bf16 %v1960, %v1959
      %v2463 = vpack.c.bf16 %v1992, %v1991
      %v2464 = vpack.c.bf16 %v810, %v808
      %v2465 = vpack.c.bf16 %v2022, %v2021
      %v2466 = vpack.c.bf16 %v2054, %v2053
      %v2467 = vpack.c.bf16 %v2086, %v2085
      %v2468 = vpack.c.bf16 %v2118, %v2117
      %v2469 = vpack.c.bf16 %v1930, %v1929
      %v2470 = vpack.c.bf16 %v1962, %v1961
      %v2471 = vpack.c.bf16 %v1994, %v1993
      %v2472 = vpack.c.bf16 %v815, %v813
      %v2473 = vpack.c.bf16 %v2024, %v2023
      %v2474 = vpack.c.bf16 %v2056, %v2055
      %v2475 = vpack.c.bf16 %v2088, %v2087
      %v2476 = vpack.c.bf16 %v2120, %v2119
      %v2477 = vpack.c.bf16 %v1932, %v1931
      %v2478 = vpack.c.bf16 %v1964, %v1963
      %v2479 = vpack.c.bf16 %v1996, %v1995
      %v2480 = vpack.c.bf16 %v820, %v818
      %v2481 = vpack.c.bf16 %v2026, %v2025
      %v2482 = vpack.c.bf16 %v2058, %v2057
      %v2483 = vpack.c.bf16 %v2090, %v2089
      %v2484 = vpack.c.bf16 %v2122, %v2121
      %v2485 = vpack.c.bf16 %v1934, %v1933
      %v2486 = vpack.c.bf16 %v1966, %v1965
      %v2487 = vpack.c.bf16 %v1998, %v1997
      %v2488 = vpack.c.bf16 %v825, %v823
      %v2489 = vpack.c.bf16 %v2028, %v2027
      %v2490 = vpack.c.bf16 %v2060, %v2059
      %v2491 = vpack.c.bf16 %v2092, %v2091
      %v2492 = vpack.c.bf16 %v2124, %v2123
      %v2493 = vpack.c.bf16 %v1936, %v1935
      %v2494 = vpack.c.bf16 %v1968, %v1967
      %v2495 = vpack.c.bf16 %v2000, %v1999
      %v2496 = vpack.c.bf16 %v830, %v828
      %v2497 = vpack.c.bf16 %v2030, %v2029
      %v2498 = vpack.c.bf16 %v2062, %v2061
      %v2499 = vpack.c.bf16 %v2094, %v2093
      %v2500 = vpack.c.bf16 %v2126, %v2125
      %v2501 = vpack.c.bf16 %v1938, %v1937
      %v2502 = vpack.c.bf16 %v1970, %v1969
      %v2503 = vpack.c.bf16 %v2002, %v2001
      %v2504 = vpack.c.bf16 %v835, %v833
      %v2505 = vpack.c.bf16 %v2032, %v2031
      %v2506 = vpack.c.bf16 %v2064, %v2063
      %v2507 = vpack.c.bf16 %v2096, %v2095
      %v2508 = vpack.c.bf16 %v2128, %v2127
      %v2509 = vpack.c.bf16 %v2132, %v2131
      %v2510 = vpack.c.bf16 %v2232, %v2231
      %v2511 = vpack.c.bf16 %v2236, %v2235
      %v2512 = vpack.c.bf16 %v996, %v994
      %v2513 = vpack.c.bf16 %v2034, %v2033
      %v2514 = vpack.c.bf16 %v2066, %v2065
      %v2515 = vpack.c.bf16 %v2098, %v2097
      %v2516 = vpack.c.bf16 %v2130, %v2129
      %v2517 = vpack.c.bf16 %v2134, %v2133
      %v2518 = vpack.c.bf16 %v2234, %v2233
      %v2519 = vpack.c.bf16 %v2238, %v2237
      %v2520 = vpack.c.bf16 %v1037, %v1035
      %v2521 = vpack.c.bf16 %v2240, %v2239
      %v2522 = vpack.c.bf16 %v2244, %v2243
      %v2523 = vpack.c.bf16 %v2248, %v2247
      %v2524 = vpack.c.bf16 %v2252, %v2251
      %v2525 = vpack.c.bf16 %v2256, %v2255
      %v2526 = vpack.c.bf16 %v2260, %v2259
      %v2527 = vpack.c.bf16 %v2360, %v2359
      %v2528 = vpack.c.bf16 %v1086, %v1084
      %v2529 = vpack.c.bf16 %v2242, %v2241
      %v2530 = vpack.c.bf16 %v2246, %v2245
      %v2531 = vpack.c.bf16 %v2250, %v2249
      %v2532 = vpack.c.bf16 %v2254, %v2253
      %v2533 = vpack.c.bf16 %v2258, %v2257
      %v2534 = vpack.c.bf16 %v2262, %v2261
      %v2535 = vpack.c.bf16 %v2362, %v2361
      %v2536 = vpack.c.bf16 %v1127, %v1125
      %v2537 = vpack.c.bf16 %v2364, %v2363
      %v2538 = vpack.c.bf16 %v2368, %v2367
      %v2539 = vpack.c.bf16 %v2372, %v2371
      %v2540 = vpack.c.bf16 %v2376, %v2375
      %v2541 = vpack.c.bf16 %v2380, %v2379
      %v2542 = vpack.c.bf16 %v2384, %v2383
      %v2543 = vpack.c.bf16 %v2388, %v2387
      %v2544 = vpack.c.bf16 %v1176, %v1174
      %v2545 = vpack.c.bf16 %v2366, %v2365
      %v2546 = vpack.c.bf16 %v2370, %v2369
      %v2547 = vpack.c.bf16 %v2374, %v2373
      %v2548 = vpack.c.bf16 %v2378, %v2377
      %v2549 = vpack.c.bf16 %v2382, %v2381
      %v2550 = vpack.c.bf16 %v2386, %v2385
      %v2551 = vpack.c.bf16 %v2390, %v2389
      %v2552 = vpack.c.bf16 %v1217, %v1215
      %v2553 = vld [vmem:[%s1] sm:$0xf]
      %v2554 = vld [vmem:[%s1 + $0x4] sm:$0xf]
      %v2555 = vld [vmem:[%s1 + $0x8] sm:$0xf]
      %v2556 = vld [vmem:[%s1 + $0xc] sm:$0xf]
      %v2557 = vld [vmem:[%s1 + $0x10] sm:$0xf]
      %v2558 = vld [vmem:[%s1 + $0x14] sm:$0xf]
      %v2559 = vld [vmem:[%s1 + $0x18] sm:$0xf]
      %v2560 = vld [vmem:[%s1 + $0x1c] sm:$0xf]
      %v2561 = vld [vmem:[%s1 + $0x20] sm:$0xf]
      %v2562 = vld [vmem:[%s1 + $0x24] sm:$0xf]
      %v2563 = vld [vmem:[%s1 + $0x28] sm:$0xf]
      %v2564 = vld [vmem:[%s1 + $0x2c] sm:$0xf]
      %v2565 = vld [vmem:[%s1 + $0x30] sm:$0xf]
      %v2566 = vld [vmem:[%s1 + $0x34] sm:$0xf]
      %v2567 = vld [vmem:[%s1 + $0x38] sm:$0xf]
      %v2568 = vld [vmem:[%s1 + $0x3c] sm:$0xf]
      %v2569 = vld [vmem:[%s1 + $0x40] sm:$0xf]
      %v2570 = vld [vmem:[%s1 + $0x44] sm:$0xf]
      %v2571 = vld [vmem:[%s1 + $0x48] sm:$0xf]
      %v2572 = vld [vmem:[%s1 + $0x4c] sm:$0xf]
      %v2573 = vld [vmem:[%s1 + $0x50] sm:$0xf]
      %v2574 = vld [vmem:[%s1 + $0x54] sm:$0xf]
      %v2575 = vld [vmem:[%s1 + $0x58] sm:$0xf]
      %v2576 = vld [vmem:[%s1 + $0x5c] sm:$0xf]
      %v2577 = vld [vmem:[%s1 + $0x60] sm:$0xf]
      %v2578 = vld [vmem:[%s1 + $0x64] sm:$0xf]
      %v2579 = vld [vmem:[%s1 + $0x68] sm:$0xf]
      %v2580 = vld [vmem:[%s1 + $0x6c] sm:$0xf]
      %v2581 = vld [vmem:[%s1 + $0x70] sm:$0xf]
      %v2582 = vld [vmem:[%s1 + $0x74] sm:$0xf]
      %v2583 = vld [vmem:[%s1 + $0x78] sm:$0xf]
      %v2584 = vld [vmem:[%s1 + $0x7c] sm:$0xf]
      %v2585 = vld [vmem:[%s1 + $0x80] sm:$0xf]
      %v2586 = vld [vmem:[%s1 + $0x84] sm:$0xf]
      %v2587 = vld [vmem:[%s1 + $0x88] sm:$0xf]
      %v2588 = vld [vmem:[%s1 + $0x8c] sm:$0xf]
      %v2589 = vld [vmem:[%s1 + $0x90] sm:$0xf]
      %v2590 = vld [vmem:[%s1 + $0x94] sm:$0xf]
      %v2591 = vld [vmem:[%s1 + $0x98] sm:$0xf]
      %v2592 = vld [vmem:[%s1 + $0x9c] sm:$0xf]
      %v2593 = vld [vmem:[%s1 + $0xa0] sm:$0xf]
      %v2594 = vld [vmem:[%s1 + $0xa4] sm:$0xf]
      %v2595 = vld [vmem:[%s1 + $0xa8] sm:$0xf]
      %v2596 = vld [vmem:[%s1 + $0xac] sm:$0xf]
      %v2597 = vld [vmem:[%s1 + $0xb0] sm:$0xf]
      %v2598 = vld [vmem:[%s1 + $0xb4] sm:$0xf]
      %v2599 = vld [vmem:[%s1 + $0xb8] sm:$0xf]
      %v2600 = vld [vmem:[%s1 + $0xbc] sm:$0xf]
      %v2601 = vld [vmem:[%s1 + $0xc0] sm:$0xf]
      %v2602 = vld [vmem:[%s1 + $0xc4] sm:$0xf]
      %v2603 = vld [vmem:[%s1 + $0xc8] sm:$0xf]
      %v2604 = vld [vmem:[%s1 + $0xcc] sm:$0xf]
      %v2605 = vld [vmem:[%s1 + $0xd0] sm:$0xf]
      %v2606 = vld [vmem:[%s1 + $0xd4] sm:$0xf]
      %v2607 = vld [vmem:[%s1 + $0xd8] sm:$0xf]
      %v2608 = vld [vmem:[%s1 + $0xdc] sm:$0xf]
      %v2609 = vld [vmem:[%s1 + $0xe0] sm:$0xf]
      %v2610 = vld [vmem:[%s1 + $0xe4] sm:$0xf]
      %v2611 = vld [vmem:[%s1 + $0xe8] sm:$0xf]
      %v2612 = vld [vmem:[%s1 + $0xec] sm:$0xf]
      %v2613 = vld [vmem:[%s1 + $0xf0] sm:$0xf]
      %v2614 = vld [vmem:[%s1 + $0xf4] sm:$0xf]
      %v2615 = vld [vmem:[%s1 + $0xf8] sm:$0xf]
      %v2616 = vld [vmem:[%s1 + $0xfc] sm:$0xf]
      %v2617 = vld [vmem:[%s1 + $0x100] sm:$0xf]
      %v2618 = vld [vmem:[%s1 + $0x104] sm:$0xf]
      %v2619 = vld [vmem:[%s1 + $0x108] sm:$0xf]
      %v2620 = vld [vmem:[%s1 + $0x10c] sm:$0xf]
      %v2621 = vld [vmem:[%s1 + $0x110] sm:$0xf]
      %v2622 = vld [vmem:[%s1 + $0x114] sm:$0xf]
      %v2623 = vld [vmem:[%s1 + $0x118] sm:$0xf]
      %v2624 = vld [vmem:[%s1 + $0x11c] sm:$0xf]
      %v2625 = vld [vmem:[%s1 + $0x120] sm:$0xf]
      %v2626 = vld [vmem:[%s1 + $0x124] sm:$0xf]
      %v2627 = vld [vmem:[%s1 + $0x128] sm:$0xf]
      %v2628 = vld [vmem:[%s1 + $0x12c] sm:$0xf]
      %v2629 = vld [vmem:[%s1 + $0x130] sm:$0xf]
      %v2630 = vld [vmem:[%s1 + $0x134] sm:$0xf]
      %v2631 = vld [vmem:[%s1 + $0x138] sm:$0xf]
      %v2632 = vld [vmem:[%s1 + $0x13c] sm:$0xf]
      %v2633 = vld [vmem:[%s1 + $0x140] sm:$0xf]
      %v2634 = vld [vmem:[%s1 + $0x144] sm:$0xf]
      %v2635 = vld [vmem:[%s1 + $0x148] sm:$0xf]
      %v2636 = vld [vmem:[%s1 + $0x14c] sm:$0xf]
      %v2637 = vld [vmem:[%s1 + $0x150] sm:$0xf]
      %v2638 = vld [vmem:[%s1 + $0x154] sm:$0xf]
      %v2639 = vld [vmem:[%s1 + $0x158] sm:$0xf]
      %v2640 = vld [vmem:[%s1 + $0x15c] sm:$0xf]
      %v2641 = vld [vmem:[%s1 + $0x160] sm:$0xf]
      %v2642 = vld [vmem:[%s1 + $0x164] sm:$0xf]
      %v2643 = vld [vmem:[%s1 + $0x168] sm:$0xf]
      %v2644 = vld [vmem:[%s1 + $0x16c] sm:$0xf]
      %v2645 = vld [vmem:[%s1 + $0x170] sm:$0xf]
      %v2646 = vld [vmem:[%s1 + $0x174] sm:$0xf]
      %v2647 = vld [vmem:[%s1 + $0x178] sm:$0xf]
      %v2648 = vld [vmem:[%s1 + $0x17c] sm:$0xf]
      %v2649 = vld [vmem:[%s1 + $0x180] sm:$0xf]
      %v2650 = vld [vmem:[%s1 + $0x184] sm:$0xf]
      %v2651 = vld [vmem:[%s1 + $0x188] sm:$0xf]
      %v2652 = vld [vmem:[%s1 + $0x18c] sm:$0xf]
      %v2653 = vld [vmem:[%s1 + $0x190] sm:$0xf]
      %v2654 = vld [vmem:[%s1 + $0x194] sm:$0xf]
      %v2655 = vld [vmem:[%s1 + $0x198] sm:$0xf]
      %v2656 = vld [vmem:[%s1 + $0x19c] sm:$0xf]
      %v2657 = vld [vmem:[%s1 + $0x1a0] sm:$0xf]
      %v2658 = vld [vmem:[%s1 + $0x1a4] sm:$0xf]
      %v2659 = vld [vmem:[%s1 + $0x1a8] sm:$0xf]
      %v2660 = vld [vmem:[%s1 + $0x1ac] sm:$0xf]
      %v2661 = vld [vmem:[%s1 + $0x1b0] sm:$0xf]
      %v2662 = vld [vmem:[%s1 + $0x1b4] sm:$0xf]
      %v2663 = vld [vmem:[%s1 + $0x1b8] sm:$0xf]
      %v2664 = vld [vmem:[%s1 + $0x1bc] sm:$0xf]
      %v2665 = vld [vmem:[%s1 + $0x1c0] sm:$0xf]
      %v2666 = vld [vmem:[%s1 + $0x1c4] sm:$0xf]
      %v2667 = vld [vmem:[%s1 + $0x1c8] sm:$0xf]
      %v2668 = vld [vmem:[%s1 + $0x1cc] sm:$0xf]
      %v2669 = vld [vmem:[%s1 + $0x1d0] sm:$0xf]
      %v2670 = vld [vmem:[%s1 + $0x1d4] sm:$0xf]
      %v2671 = vld [vmem:[%s1 + $0x1d8] sm:$0xf]
      %v2672 = vld [vmem:[%s1 + $0x1dc] sm:$0xf]
      %v2673 = vld [vmem:[%s1 + $0x1e0] sm:$0xf]
      %v2674 = vld [vmem:[%s1 + $0x1e4] sm:$0xf]
      %v2675 = vld [vmem:[%s1 + $0x1e8] sm:$0xf]
      %v2676 = vld [vmem:[%s1 + $0x1ec] sm:$0xf]
      %v2677 = vld [vmem:[%s1 + $0x1f0] sm:$0xf]
      %v2678 = vld [vmem:[%s1 + $0x1f4] sm:$0xf]
      %v2679 = vld [vmem:[%s1 + $0x1f8] sm:$0xf]
      %v2680 = vld [vmem:[%s1 + $0x1fc] sm:$0xf]
      %v2681 = vld [vmem:[%s1 + $0x200] sm:$0xf]
      %v2682 = vld [vmem:[%s1 + $0x204] sm:$0xf]
      %v2683 = vld [vmem:[%s1 + $0x208] sm:$0xf]
      %v2684 = vld [vmem:[%s1 + $0x20c] sm:$0xf]
      %v2685 = vld [vmem:[%s1 + $0x210] sm:$0xf]
      %v2686 = vld [vmem:[%s1 + $0x214] sm:$0xf]
      %v2687 = vld [vmem:[%s1 + $0x218] sm:$0xf]
      %v2688 = vld [vmem:[%s1 + $0x21c] sm:$0xf]
      %v2689 = vld [vmem:[%s1 + $0x220] sm:$0xf]
      %v2690 = vld [vmem:[%s1 + $0x224] sm:$0xf]
      %v2691 = vld [vmem:[%s1 + $0x228] sm:$0xf]
      %v2692 = vld [vmem:[%s1 + $0x22c] sm:$0xf]
      %v2693 = vld [vmem:[%s1 + $0x230] sm:$0xf]
      %v2694 = vld [vmem:[%s1 + $0x234] sm:$0xf]
      %v2695 = vld [vmem:[%s1 + $0x238] sm:$0xf]
      %v2696 = vld [vmem:[%s1 + $0x23c] sm:$0xf]
      %v2697 = vld [vmem:[%s1 + $0x240] sm:$0xf]
      %v2698 = vld [vmem:[%s1 + $0x244] sm:$0xf]
      %v2699 = vld [vmem:[%s1 + $0x248] sm:$0xf]
      %v2700 = vld [vmem:[%s1 + $0x24c] sm:$0xf]
      %v2701 = vld [vmem:[%s1 + $0x250] sm:$0xf]
      %v2702 = vld [vmem:[%s1 + $0x254] sm:$0xf]
      %v2703 = vld [vmem:[%s1 + $0x258] sm:$0xf]
      %v2704 = vld [vmem:[%s1 + $0x25c] sm:$0xf]
      %v2705 = vld [vmem:[%s1 + $0x260] sm:$0xf]
      %v2706 = vld [vmem:[%s1 + $0x264] sm:$0xf]
      %v2707 = vld [vmem:[%s1 + $0x268] sm:$0xf]
      %v2708 = vld [vmem:[%s1 + $0x26c] sm:$0xf]
      %v2709 = vld [vmem:[%s1 + $0x270] sm:$0xf]
      %v2710 = vld [vmem:[%s1 + $0x274] sm:$0xf]
      %v2711 = vld [vmem:[%s1 + $0x278] sm:$0xf]
      %v2712 = vld [vmem:[%s1 + $0x27c] sm:$0xf]
      %v2713 = vld [vmem:[%s1 + $0x280] sm:$0xf]
      %v2714 = vld [vmem:[%s1 + $0x284] sm:$0xf]
      %v2715 = vld [vmem:[%s1 + $0x288] sm:$0xf]
      %v2716 = vld [vmem:[%s1 + $0x28c] sm:$0xf]
      %v2717 = vld [vmem:[%s1 + $0x290] sm:$0xf]
      %v2718 = vld [vmem:[%s1 + $0x294] sm:$0xf]
      %v2719 = vld [vmem:[%s1 + $0x298] sm:$0xf]
      %v2720 = vld [vmem:[%s1 + $0x29c] sm:$0xf]
      %v2721 = vld [vmem:[%s1 + $0x2a0] sm:$0xf]
      %v2722 = vld [vmem:[%s1 + $0x2a4] sm:$0xf]
      %v2723 = vld [vmem:[%s1 + $0x2a8] sm:$0xf]
      %v2724 = vld [vmem:[%s1 + $0x2ac] sm:$0xf]
      %v2725 = vld [vmem:[%s1 + $0x2b0] sm:$0xf]
      %v2726 = vld [vmem:[%s1 + $0x2b4] sm:$0xf]
      %v2727 = vld [vmem:[%s1 + $0x2b8] sm:$0xf]
      %v2728 = vld [vmem:[%s1 + $0x2bc] sm:$0xf]
      %v2729 = vld [vmem:[%s1 + $0x2c0] sm:$0xf]
      %v2730 = vld [vmem:[%s1 + $0x2c4] sm:$0xf]
      %v2731 = vld [vmem:[%s1 + $0x2c8] sm:$0xf]
      %v2732 = vld [vmem:[%s1 + $0x2cc] sm:$0xf]
      %v2733 = vld [vmem:[%s1 + $0x2d0] sm:$0xf]
      %v2734 = vld [vmem:[%s1 + $0x2d4] sm:$0xf]
      %v2735 = vld [vmem:[%s1 + $0x2d8] sm:$0xf]
      %v2736 = vld [vmem:[%s1 + $0x2dc] sm:$0xf]
      %v2737 = vld [vmem:[%s1 + $0x2e0] sm:$0xf]
      %v2738 = vld [vmem:[%s1 + $0x2e4] sm:$0xf]
      %v2739 = vld [vmem:[%s1 + $0x2e8] sm:$0xf]
      %v2740 = vld [vmem:[%s1 + $0x2ec] sm:$0xf]
      %v2741 = vld [vmem:[%s1 + $0x2f0] sm:$0xf]
      %v2742 = vld [vmem:[%s1 + $0x2f4] sm:$0xf]
      %v2743 = vld [vmem:[%s1 + $0x2f8] sm:$0xf]
      %v2744 = vld [vmem:[%s1 + $0x2fc] sm:$0xf]
      %v2745 = vld [vmem:[%s1 + $0x300] sm:$0xf]
      %v2746 = vld [vmem:[%s1 + $0x304] sm:$0xf]
      %v2747 = vld [vmem:[%s1 + $0x308] sm:$0xf]
      %v2748 = vld [vmem:[%s1 + $0x30c] sm:$0xf]
      %v2749 = vld [vmem:[%s1 + $0x310] sm:$0xf]
      %v2750 = vld [vmem:[%s1 + $0x314] sm:$0xf]
      %v2751 = vld [vmem:[%s1 + $0x318] sm:$0xf]
      %v2752 = vld [vmem:[%s1 + $0x31c] sm:$0xf]
      %v2753 = vld [vmem:[%s1 + $0x320] sm:$0xf]
      %v2754 = vld [vmem:[%s1 + $0x324] sm:$0xf]
      %v2755 = vld [vmem:[%s1 + $0x328] sm:$0xf]
      %v2756 = vld [vmem:[%s1 + $0x32c] sm:$0xf]
      %v2757 = vld [vmem:[%s1 + $0x330] sm:$0xf]
      %v2758 = vld [vmem:[%s1 + $0x334] sm:$0xf]
      %v2759 = vld [vmem:[%s1 + $0x338] sm:$0xf]
      %v2760 = vld [vmem:[%s1 + $0x33c] sm:$0xf]
      %v2761 = vld [vmem:[%s1 + $0x340] sm:$0xf]
      %v2762 = vld [vmem:[%s1 + $0x344] sm:$0xf]
      %v2763 = vld [vmem:[%s1 + $0x348] sm:$0xf]
      %v2764 = vld [vmem:[%s1 + $0x34c] sm:$0xf]
      %v2765 = vld [vmem:[%s1 + $0x350] sm:$0xf]
      %v2766 = vld [vmem:[%s1 + $0x354] sm:$0xf]
      %v2767 = vld [vmem:[%s1 + $0x358] sm:$0xf]
      %v2768 = vld [vmem:[%s1 + $0x35c] sm:$0xf]
      %v2769 = vld [vmem:[%s1 + $0x360] sm:$0xf]
      %v2770 = vld [vmem:[%s1 + $0x364] sm:$0xf]
      %v2771 = vld [vmem:[%s1 + $0x368] sm:$0xf]
      %v2772 = vld [vmem:[%s1 + $0x36c] sm:$0xf]
      %v2773 = vld [vmem:[%s1 + $0x370] sm:$0xf]
      %v2774 = vld [vmem:[%s1 + $0x374] sm:$0xf]
      %v2775 = vld [vmem:[%s1 + $0x378] sm:$0xf]
      %v2776 = vld [vmem:[%s1 + $0x37c] sm:$0xf]
      %v2777 = vld [vmem:[%s1 + $0x380] sm:$0xf]
      %v2778 = vld [vmem:[%s1 + $0x384] sm:$0xf]
      %v2779 = vld [vmem:[%s1 + $0x388] sm:$0xf]
      %v2780 = vld [vmem:[%s1 + $0x38c] sm:$0xf]
      %v2781 = vld [vmem:[%s1 + $0x390] sm:$0xf]
      %v2782 = vld [vmem:[%s1 + $0x394] sm:$0xf]
      %v2783 = vld [vmem:[%s1 + $0x398] sm:$0xf]
      %v2784 = vld [vmem:[%s1 + $0x39c] sm:$0xf]
      %v2785 = vld [vmem:[%s1 + $0x3a0] sm:$0xf]
      %v2786 = vld [vmem:[%s1 + $0x3a4] sm:$0xf]
      %v2787 = vld [vmem:[%s1 + $0x3a8] sm:$0xf]
      %v2788 = vld [vmem:[%s1 + $0x3ac] sm:$0xf]
      %v2789 = vld [vmem:[%s1 + $0x3b0] sm:$0xf]
      %v2790 = vld [vmem:[%s1 + $0x3b4] sm:$0xf]
      %v2791 = vld [vmem:[%s1 + $0x3b8] sm:$0xf]
      %v2792 = vld [vmem:[%s1 + $0x3bc] sm:$0xf]
      %v2793 = vld [vmem:[%s1 + $0x3c0] sm:$0xf]
      %v2794 = vld [vmem:[%s1 + $0x3c4] sm:$0xf]
      %v2795 = vld [vmem:[%s1 + $0x3c8] sm:$0xf]
      %v2796 = vld [vmem:[%s1 + $0x3cc] sm:$0xf]
      %v2797 = vld [vmem:[%s1 + $0x3d0] sm:$0xf]
      %v2798 = vld [vmem:[%s1 + $0x3d4] sm:$0xf]
      %v2799 = vld [vmem:[%s1 + $0x3d8] sm:$0xf]
      %v2800 = vld [vmem:[%s1 + $0x3dc] sm:$0xf]
      %v2801 = vld [vmem:[%s1 + $0x3e0] sm:$0xf]
      %v2802 = vld [vmem:[%s1 + $0x3e4] sm:$0xf]
      %v2803 = vld [vmem:[%s1 + $0x3e8] sm:$0xf]
      %v2804 = vld [vmem:[%s1 + $0x3ec] sm:$0xf]
      %v2805 = vld [vmem:[%s1 + $0x3f0] sm:$0xf]
      %v2806 = vld [vmem:[%s1 + $0x3f4] sm:$0xf]
      %v2807 = vld [vmem:[%s1 + $0x3f8] sm:$0xf]
      %v2808 = vld [vmem:[%s1 + $0x3fc] sm:$0xf]
      %v2809 = vld [vmem:[%s1 + $0x400] sm:$0xf]
      %v2810 = vld [vmem:[%s1 + $0x404] sm:$0xf]
      %v2811 = vld [vmem:[%s1 + $0x408] sm:$0xf]
      %v2812 = vld [vmem:[%s1 + $0x40c] sm:$0xf]
      %v2813 = vld [vmem:[%s1 + $0x410] sm:$0xf]
      %v2814 = vld [vmem:[%s1 + $0x414] sm:$0xf]
      %v2815 = vld [vmem:[%s1 + $0x418] sm:$0xf]
      %v2816 = vld [vmem:[%s1 + $0x41c] sm:$0xf]
      %v2817 = vld [vmem:[%s1 + $0x420] sm:$0xf]
      %v2818 = vld [vmem:[%s1 + $0x424] sm:$0xf]
      %v2819 = vld [vmem:[%s1 + $0x428] sm:$0xf]
      %v2820 = vld [vmem:[%s1 + $0x42c] sm:$0xf]
      %v2821 = vld [vmem:[%s1 + $0x430] sm:$0xf]
      %v2822 = vld [vmem:[%s1 + $0x434] sm:$0xf]
      %v2823 = vld [vmem:[%s1 + $0x438] sm:$0xf]
      %v2824 = vld [vmem:[%s1 + $0x43c] sm:$0xf]
      %v2825 = vld [vmem:[%s1 + $0x440] sm:$0xf]
      %v2826 = vld [vmem:[%s1 + $0x444] sm:$0xf]
      %v2827 = vld [vmem:[%s1 + $0x448] sm:$0xf]
      %v2828 = vld [vmem:[%s1 + $0x44c] sm:$0xf]
      %v2829 = vld [vmem:[%s1 + $0x450] sm:$0xf]
      %v2830 = vld [vmem:[%s1 + $0x454] sm:$0xf]
      %v2831 = vld [vmem:[%s1 + $0x458] sm:$0xf]
      %v2832 = vld [vmem:[%s1 + $0x45c] sm:$0xf]
      %v2833 = vld [vmem:[%s1 + $0x460] sm:$0xf]
      %v2834 = vld [vmem:[%s1 + $0x464] sm:$0xf]
      %v2835 = vld [vmem:[%s1 + $0x468] sm:$0xf]
      %v2836 = vld [vmem:[%s1 + $0x46c] sm:$0xf]
      %v2837 = vld [vmem:[%s1 + $0x470] sm:$0xf]
      %v2838 = vld [vmem:[%s1 + $0x474] sm:$0xf]
      %v2839 = vld [vmem:[%s1 + $0x478] sm:$0xf]
      %v2840 = vld [vmem:[%s1 + $0x47c] sm:$0xf]
      %v2841 = vld [vmem:[%s1 + $0x480] sm:$0xf]
      %v2842 = vld [vmem:[%s1 + $0x484] sm:$0xf]
      %v2843 = vld [vmem:[%s1 + $0x488] sm:$0xf]
      %v2844 = vld [vmem:[%s1 + $0x48c] sm:$0xf]
      %v2845 = vld [vmem:[%s1 + $0x490] sm:$0xf]
      %v2846 = vld [vmem:[%s1 + $0x494] sm:$0xf]
      %v2847 = vld [vmem:[%s1 + $0x498] sm:$0xf]
      %v2848 = vld [vmem:[%s1 + $0x49c] sm:$0xf]
      %v2849 = vld [vmem:[%s1 + $0x4a0] sm:$0xf]
      %v2850 = vld [vmem:[%s1 + $0x4a4] sm:$0xf]
      %v2851 = vld [vmem:[%s1 + $0x4a8] sm:$0xf]
      %v2852 = vld [vmem:[%s1 + $0x4ac] sm:$0xf]
      %v2853 = vld [vmem:[%s1 + $0x4b0] sm:$0xf]
      %v2854 = vld [vmem:[%s1 + $0x4b4] sm:$0xf]
      %v2855 = vld [vmem:[%s1 + $0x4b8] sm:$0xf]
      %v2856 = vld [vmem:[%s1 + $0x4bc] sm:$0xf]
      %v2857 = vld [vmem:[%s1 + $0x4c0] sm:$0xf]
      %v2858 = vld [vmem:[%s1 + $0x4c4] sm:$0xf]
      %v2859 = vld [vmem:[%s1 + $0x4c8] sm:$0xf]
      %v2860 = vld [vmem:[%s1 + $0x4cc] sm:$0xf]
      %v2861 = vld [vmem:[%s1 + $0x4d0] sm:$0xf]
      %v2862 = vld [vmem:[%s1 + $0x4d4] sm:$0xf]
      %v2863 = vld [vmem:[%s1 + $0x4d8] sm:$0xf]
      %v2864 = vld [vmem:[%s1 + $0x4dc] sm:$0xf]
      %v2865 = vld [vmem:[%s1 + $0x4e0] sm:$0xf]
      %v2866 = vld [vmem:[%s1 + $0x4e4] sm:$0xf]
      %v2867 = vld [vmem:[%s1 + $0x4e8] sm:$0xf]
      %v2868 = vld [vmem:[%s1 + $0x4ec] sm:$0xf]
      %v2869 = vld [vmem:[%s1 + $0x4f0] sm:$0xf]
      %v2870 = vld [vmem:[%s1 + $0x4f4] sm:$0xf]
      %v2871 = vld [vmem:[%s1 + $0x4f8] sm:$0xf]
      %v2872 = vld [vmem:[%s1 + $0x4fc] sm:$0xf]
      %v2873 = vld [vmem:[%s1 + $0x500] sm:$0xf]
      %v2874 = vld [vmem:[%s1 + $0x504] sm:$0xf]
      %v2875 = vld [vmem:[%s1 + $0x508] sm:$0xf]
      %v2876 = vld [vmem:[%s1 + $0x50c] sm:$0xf]
      %v2877 = vld [vmem:[%s1 + $0x510] sm:$0xf]
      %v2878 = vld [vmem:[%s1 + $0x514] sm:$0xf]
      %v2879 = vld [vmem:[%s1 + $0x518] sm:$0xf]
      %v2880 = vld [vmem:[%s1 + $0x51c] sm:$0xf]
      %v2881 = vld [vmem:[%s1 + $0x520] sm:$0xf]
      %v2882 = vld [vmem:[%s1 + $0x524] sm:$0xf]
      %v2883 = vld [vmem:[%s1 + $0x528] sm:$0xf]
      %v2884 = vld [vmem:[%s1 + $0x52c] sm:$0xf]
      %v2885 = vld [vmem:[%s1 + $0x530] sm:$0xf]
      %v2886 = vld [vmem:[%s1 + $0x534] sm:$0xf]
      %v2887 = vld [vmem:[%s1 + $0x538] sm:$0xf]
      %v2888 = vld [vmem:[%s1 + $0x53c] sm:$0xf]
      %v2889 = vld [vmem:[%s1 + $0x540] sm:$0xf]
      %v2890 = vld [vmem:[%s1 + $0x544] sm:$0xf]
      %v2891 = vld [vmem:[%s1 + $0x548] sm:$0xf]
      %v2892 = vld [vmem:[%s1 + $0x54c] sm:$0xf]
      %v2893 = vld [vmem:[%s1 + $0x550] sm:$0xf]
      %v2894 = vld [vmem:[%s1 + $0x554] sm:$0xf]
      %v2895 = vld [vmem:[%s1 + $0x558] sm:$0xf]
      %v2896 = vld [vmem:[%s1 + $0x55c] sm:$0xf]
      %v2897 = vld [vmem:[%s1 + $0x560] sm:$0xf]
      %v2898 = vld [vmem:[%s1 + $0x564] sm:$0xf]
      %v2899 = vld [vmem:[%s1 + $0x568] sm:$0xf]
      %v2900 = vld [vmem:[%s1 + $0x56c] sm:$0xf]
      %v2901 = vld [vmem:[%s1 + $0x570] sm:$0xf]
      %v2902 = vld [vmem:[%s1 + $0x574] sm:$0xf]
      %v2903 = vld [vmem:[%s1 + $0x578] sm:$0xf]
      %v2904 = vld [vmem:[%s1 + $0x57c] sm:$0xf]
      %v2905 = vld [vmem:[%s1 + $0x580] sm:$0xf]
      %v2906 = vld [vmem:[%s1 + $0x584] sm:$0xf]
      %v2907 = vld [vmem:[%s1 + $0x588] sm:$0xf]
      %v2908 = vld [vmem:[%s1 + $0x58c] sm:$0xf]
      %v2909 = vld [vmem:[%s1 + $0x590] sm:$0xf]
      %v2910 = vld [vmem:[%s1 + $0x594] sm:$0xf]
      %v2911 = vld [vmem:[%s1 + $0x598] sm:$0xf]
      %v2912 = vld [vmem:[%s1 + $0x59c] sm:$0xf]
      %v2913 = vld [vmem:[%s1 + $0x5a0] sm:$0xf]
      %v2914 = vld [vmem:[%s1 + $0x5a4] sm:$0xf]
      %v2915 = vld [vmem:[%s1 + $0x5a8] sm:$0xf]
      %v2916 = vld [vmem:[%s1 + $0x5ac] sm:$0xf]
      %v2917 = vld [vmem:[%s1 + $0x5b0] sm:$0xf]
      %v2918 = vld [vmem:[%s1 + $0x5b4] sm:$0xf]
      %v2919 = vld [vmem:[%s1 + $0x5b8] sm:$0xf]
      %v2920 = vld [vmem:[%s1 + $0x5bc] sm:$0xf]
      %v2921 = vld [vmem:[%s1 + $0x5c0] sm:$0xf]
      %v2922 = vld [vmem:[%s1 + $0x5c4] sm:$0xf]
      %v2923 = vld [vmem:[%s1 + $0x5c8] sm:$0xf]
      %v2924 = vld [vmem:[%s1 + $0x5cc] sm:$0xf]
      %v2925 = vld [vmem:[%s1 + $0x5d0] sm:$0xf]
      %v2926 = vld [vmem:[%s1 + $0x5d4] sm:$0xf]
      %v2927 = vld [vmem:[%s1 + $0x5d8] sm:$0xf]
      %v2928 = vld [vmem:[%s1 + $0x5dc] sm:$0xf]
      %v2929 = vld [vmem:[%s1 + $0x5e0] sm:$0xf]
      %v2930 = vld [vmem:[%s1 + $0x5e4] sm:$0xf]
      %v2931 = vld [vmem:[%s1 + $0x5e8] sm:$0xf]
      %v2932 = vld [vmem:[%s1 + $0x5ec] sm:$0xf]
      %v2933 = vld [vmem:[%s1 + $0x5f0] sm:$0xf]
      %v2934 = vld [vmem:[%s1 + $0x5f4] sm:$0xf]
      %v2935 = vld [vmem:[%s1 + $0x5f8] sm:$0xf]
      %v2936 = vld [vmem:[%s1 + $0x5fc] sm:$0xf]
      %v2937 = vld [vmem:[%s1 + $0x600] sm:$0xf]
      %v2938 = vld [vmem:[%s1 + $0x604] sm:$0xf]
      %v2939 = vld [vmem:[%s1 + $0x608] sm:$0xf]
      %v2940 = vld [vmem:[%s1 + $0x60c] sm:$0xf]
      %v2941 = vld [vmem:[%s1 + $0x610] sm:$0xf]
      %v2942 = vld [vmem:[%s1 + $0x614] sm:$0xf]
      %v2943 = vld [vmem:[%s1 + $0x618] sm:$0xf]
      %v2944 = vld [vmem:[%s1 + $0x61c] sm:$0xf]
      %v2945 = vld [vmem:[%s2] sm:$0x1]
      %v2947 = vperm.slane %v2945, 0
      %v3341 = vunpack.c.l.b16 %v2553
      %v3342 = vunpack.c.l.b16 %v2554
      %v3343 = vunpack.c.l.b16 %v2555
      %v3344 = vunpack.c.l.b16 %v2556
      %v3345 = vunpack.c.l.b16 %v2557
      %v3346 = vunpack.c.l.b16 %v2558
      %v3347 = vunpack.c.l.b16 %v2559
      %v3348 = vunpack.c.l.b16 %v2560
      %v3349 = vunpack.c.l.b16 %v2561
      %v3350 = vunpack.c.l.b16 %v2562
      %v3351 = vunpack.c.l.b16 %v2563
      %v3352 = vunpack.c.l.b16 %v2564
      %v3353 = vunpack.c.l.b16 %v2565
      %v3354 = vunpack.c.l.b16 %v2566
      %v3355 = vunpack.c.l.b16 %v2567
      %v3356 = vunpack.c.l.b16 %v2568
      %v3357 = vunpack.c.l.b16 %v2569
      %v3358 = vunpack.c.l.b16 %v2570
      %v3359 = vunpack.c.l.b16 %v2571
      %v3360 = vunpack.c.l.b16 %v2572
      %v3361 = vunpack.c.l.b16 %v2573
      %v3362 = vunpack.c.l.b16 %v2574
      %v3363 = vunpack.c.l.b16 %v2575
      %v3364 = vunpack.c.l.b16 %v2576
      %v3365 = vunpack.c.l.b16 %v2577
      %v3366 = vunpack.c.l.b16 %v2578
      %v3367 = vunpack.c.l.b16 %v2579
      %v3368 = vunpack.c.l.b16 %v2580
      %v3369 = vunpack.c.l.b16 %v2581
      %v3370 = vunpack.c.l.b16 %v2582
      %v3371 = vunpack.c.l.b16 %v2583
      %v3372 = vunpack.c.l.b16 %v2584
      %v3373 = vunpack.c.l.b16 %v2585
      %v3374 = vunpack.c.l.b16 %v2586
      %v3375 = vunpack.c.l.b16 %v2587
      %v3376 = vunpack.c.l.b16 %v2588
      %v3377 = vunpack.c.l.b16 %v2589
      %v3378 = vunpack.c.l.b16 %v2590
      %v3379 = vunpack.c.l.b16 %v2591
      %v3380 = vunpack.c.l.b16 %v2592
      %v3381 = vunpack.c.l.b16 %v2593
      %v3382 = vunpack.c.l.b16 %v2594
      %v3383 = vunpack.c.l.b16 %v2595
      %v3384 = vunpack.c.l.b16 %v2596
      %v3385 = vunpack.c.l.b16 %v2597
      %v3386 = vunpack.c.l.b16 %v2598
      %v3387 = vunpack.c.l.b16 %v2599
      %v3388 = vunpack.c.l.b16 %v2600
      %v3389 = vunpack.c.l.b16 %v2601
      %v3390 = vunpack.c.l.b16 %v2602
      %v3391 = vunpack.c.l.b16 %v2603
      %v3392 = vunpack.c.l.b16 %v2604
      %v3393 = vunpack.c.l.b16 %v2605
      %v3394 = vunpack.c.l.b16 %v2606
      %v3395 = vunpack.c.l.b16 %v2607
      %v3396 = vunpack.c.l.b16 %v2608
      %v3397 = vunpack.c.l.b16 %v2609
      %v3398 = vunpack.c.l.b16 %v2610
      %v3399 = vunpack.c.l.b16 %v2611
      %v3400 = vunpack.c.l.b16 %v2612
      %v3401 = vunpack.c.l.b16 %v2613
      %v3402 = vunpack.c.l.b16 %v2614
      %v3403 = vunpack.c.l.b16 %v2615
      %v3404 = vunpack.c.l.b16 %v2616
      %v3405 = vunpack.c.l.b16 %v2617
      %v3406 = vunpack.c.l.b16 %v2618
      %v3407 = vunpack.c.l.b16 %v2619
      %v3408 = vunpack.c.l.b16 %v2620
      %v3409 = vunpack.c.l.b16 %v2621
      %v3410 = vunpack.c.l.b16 %v2622
      %v3411 = vunpack.c.l.b16 %v2623
      %v3412 = vunpack.c.l.b16 %v2624
      %v3413 = vunpack.c.l.b16 %v2625
      %v3414 = vunpack.c.l.b16 %v2626
      %v3415 = vunpack.c.l.b16 %v2627
      %v3416 = vunpack.c.l.b16 %v2628
      %v3417 = vunpack.c.l.b16 %v2629
      %v3418 = vunpack.c.l.b16 %v2630
      %v3419 = vunpack.c.l.b16 %v2631
      %v3420 = vunpack.c.l.b16 %v2632
      %v3421 = vunpack.c.l.b16 %v2633
      %v3422 = vunpack.c.l.b16 %v2634
      %v3423 = vunpack.c.l.b16 %v2635
      %v3424 = vunpack.c.l.b16 %v2636
      %v3425 = vunpack.c.l.b16 %v2637
      %v3426 = vunpack.c.l.b16 %v2638
      %v3427 = vunpack.c.l.b16 %v2639
      %v3428 = vunpack.c.l.b16 %v2640
      %v3429 = vunpack.c.l.b16 %v2641
      %v3430 = vunpack.c.l.b16 %v2642
      %v3431 = vunpack.c.l.b16 %v2643
      %v3432 = vunpack.c.l.b16 %v2644
      %v3433 = vunpack.c.l.b16 %v2645
      %v3434 = vunpack.c.l.b16 %v2646
      %v3435 = vunpack.c.l.b16 %v2647
      %v3436 = vunpack.c.l.b16 %v2648
      %v3437 = vunpack.c.l.b16 %v2649
      %v3438 = vunpack.c.l.b16 %v2650
      %v3439 = vunpack.c.l.b16 %v2651
      %v3440 = vunpack.c.l.b16 %v2652
      %v3441 = vunpack.c.l.b16 %v2653
      %v3442 = vunpack.c.l.b16 %v2654
      %v3443 = vunpack.c.l.b16 %v2655
      %v3444 = vunpack.c.l.b16 %v2656
      %v3445 = vunpack.c.l.b16 %v2657
      %v3446 = vunpack.c.l.b16 %v2658
      %v3447 = vunpack.c.l.b16 %v2659
      %v3448 = vunpack.c.l.b16 %v2660
      %v3449 = vunpack.c.l.b16 %v2661
      %v3450 = vunpack.c.l.b16 %v2662
      %v3451 = vunpack.c.l.b16 %v2663
      %v3452 = vunpack.c.l.b16 %v2664
      %v3453 = vunpack.c.l.b16 %v2665
      %v3454 = vunpack.c.l.b16 %v2666
      %v3455 = vunpack.c.l.b16 %v2667
      %v3456 = vunpack.c.l.b16 %v2668
      %v3457 = vunpack.c.l.b16 %v2669
      %v3458 = vunpack.c.l.b16 %v2670
      %v3459 = vunpack.c.l.b16 %v2671
      %v3460 = vunpack.c.l.b16 %v2672
      %v3461 = vunpack.c.l.b16 %v2673
      %v3462 = vunpack.c.l.b16 %v2674
      %v3463 = vunpack.c.l.b16 %v2675
      %v3464 = vunpack.c.l.b16 %v2676
      %v3465 = vunpack.c.l.b16 %v2677
      %v3466 = vunpack.c.l.b16 %v2678
      %v3467 = vunpack.c.l.b16 %v2679
      %v3468 = vunpack.c.l.b16 %v2680
      %v3469 = vunpack.c.l.b16 %v2681
      %v3470 = vunpack.c.l.b16 %v2682
      %v3471 = vunpack.c.l.b16 %v2683
      %v3472 = vunpack.c.l.b16 %v2684
      %v3473 = vunpack.c.l.b16 %v2685
      %v3474 = vunpack.c.l.b16 %v2686
      %v3475 = vunpack.c.l.b16 %v2687
      %v3476 = vunpack.c.l.b16 %v2688
      %v3477 = vunpack.c.l.b16 %v2689
      %v3478 = vunpack.c.l.b16 %v2690
      %v3479 = vunpack.c.l.b16 %v2691
      %v3480 = vunpack.c.l.b16 %v2692
      %v3481 = vunpack.c.l.b16 %v2693
      %v3482 = vunpack.c.l.b16 %v2694
      %v3483 = vunpack.c.l.b16 %v2695
      %v3484 = vunpack.c.l.b16 %v2696
      %v3485 = vunpack.c.l.b16 %v2697
      %v3486 = vunpack.c.l.b16 %v2698
      %v3487 = vunpack.c.l.b16 %v2699
      %v3488 = vunpack.c.l.b16 %v2700
      %v3489 = vunpack.c.l.b16 %v2701
      %v3490 = vunpack.c.l.b16 %v2702
      %v3491 = vunpack.c.l.b16 %v2703
      %v3492 = vunpack.c.l.b16 %v2704
      %v3493 = vunpack.c.l.b16 %v2705
      %v3494 = vunpack.c.l.b16 %v2706
      %v3495 = vunpack.c.l.b16 %v2707
      %v3496 = vunpack.c.l.b16 %v2708
      %v3497 = vunpack.c.l.b16 %v2709
      %v3498 = vunpack.c.l.b16 %v2710
      %v3499 = vunpack.c.l.b16 %v2711
      %v3500 = vunpack.c.l.b16 %v2712
      %v3501 = vunpack.c.l.b16 %v2713
      %v3502 = vunpack.c.l.b16 %v2714
      %v3503 = vunpack.c.l.b16 %v2715
      %v3504 = vunpack.c.l.b16 %v2716
      %v3505 = vunpack.c.l.b16 %v2717
      %v3506 = vunpack.c.l.b16 %v2718
      %v3507 = vunpack.c.l.b16 %v2719
      %v3508 = vunpack.c.l.b16 %v2720
      %v3509 = vunpack.c.l.b16 %v2721
      %v3510 = vunpack.c.l.b16 %v2722
      %v3511 = vunpack.c.l.b16 %v2723
      %v3512 = vunpack.c.l.b16 %v2724
      %v3513 = vunpack.c.l.b16 %v2725
      %v3514 = vunpack.c.l.b16 %v2726
      %v3515 = vunpack.c.l.b16 %v2727
      %v3516 = vunpack.c.l.b16 %v2728
      %v3517 = vunpack.c.l.b16 %v2729
      %v3518 = vunpack.c.l.b16 %v2730
      %v3519 = vunpack.c.l.b16 %v2731
      %v3520 = vunpack.c.l.b16 %v2732
      %v3521 = vunpack.c.l.b16 %v2733
      %v3522 = vunpack.c.l.b16 %v2734
      %v3523 = vunpack.c.l.b16 %v2735
      %v3524 = vunpack.c.l.b16 %v2736
      %v3525 = vunpack.c.l.b16 %v2737
      %v3526 = vunpack.c.l.b16 %v2738
      %v3527 = vunpack.c.l.b16 %v2739
      %v3528 = vunpack.c.l.b16 %v2740
      %v3529 = vunpack.c.l.b16 %v2741
      %v3530 = vunpack.c.l.b16 %v2742
      %v3531 = vunpack.c.l.b16 %v2743
      %v3532 = vunpack.c.l.b16 %v2744
      %v3533 = vunpack.c.l.b16 %v2745
      %v3534 = vunpack.c.l.b16 %v2746
      %v3535 = vunpack.c.l.b16 %v2747
      %v3536 = vunpack.c.l.b16 %v2748
      %v3537 = vunpack.c.l.b16 %v2749
      %v3538 = vunpack.c.l.b16 %v2750
      %v3539 = vunpack.c.l.b16 %v2751
      %v3540 = vunpack.c.l.b16 %v2752
      %v3541 = vunpack.c.l.b16 %v2753
      %v3542 = vunpack.c.l.b16 %v2754
      %v3543 = vunpack.c.l.b16 %v2755
      %v3544 = vunpack.c.l.b16 %v2756
      %v3545 = vunpack.c.l.b16 %v2757
      %v3546 = vunpack.c.l.b16 %v2758
      %v3547 = vunpack.c.l.b16 %v2759
      %v3548 = vunpack.c.l.b16 %v2760
      %v3549 = vunpack.c.l.b16 %v2761
      %v3550 = vunpack.c.l.b16 %v2762
      %v3551 = vunpack.c.l.b16 %v2763
      %v3552 = vunpack.c.l.b16 %v2764
      %v3553 = vunpack.c.l.b16 %v2765
      %v3554 = vunpack.c.l.b16 %v2766
      %v3555 = vunpack.c.l.b16 %v2767
      %v3556 = vunpack.c.l.b16 %v2768
      %v3557 = vunpack.c.l.b16 %v2769
      %v3558 = vunpack.c.l.b16 %v2770
      %v3559 = vunpack.c.l.b16 %v2771
      %v3560 = vunpack.c.l.b16 %v2772
      %v3561 = vunpack.c.l.b16 %v2773
      %v3562 = vunpack.c.l.b16 %v2774
      %v3563 = vunpack.c.l.b16 %v2775
      %v3564 = vunpack.c.l.b16 %v2776
      %v3565 = vunpack.c.l.b16 %v2777
      %v3566 = vunpack.c.l.b16 %v2778
      %v3567 = vunpack.c.l.b16 %v2779
      %v3568 = vunpack.c.l.b16 %v2780
      %v3569 = vunpack.c.l.b16 %v2781
      %v3570 = vunpack.c.l.b16 %v2782
      %v3571 = vunpack.c.l.b16 %v2783
      %v3572 = vunpack.c.l.b16 %v2784
      %v3573 = vunpack.c.l.b16 %v2785
      %v3574 = vunpack.c.l.b16 %v2786
      %v3575 = vunpack.c.l.b16 %v2787
      %v3576 = vunpack.c.l.b16 %v2788
      %v3577 = vunpack.c.l.b16 %v2789
      %v3578 = vunpack.c.l.b16 %v2790
      %v3579 = vunpack.c.l.b16 %v2791
      %v3580 = vunpack.c.l.b16 %v2792
      %v3581 = vunpack.c.l.b16 %v2793
      %v3582 = vunpack.c.l.b16 %v2794
      %v3583 = vunpack.c.l.b16 %v2795
      %v3584 = vunpack.c.l.b16 %v2796
      %v3585 = vunpack.c.l.b16 %v2797
      %v3586 = vunpack.c.l.b16 %v2798
      %v3587 = vunpack.c.l.b16 %v2799
      %v3588 = vunpack.c.l.b16 %v2800
      %v3589 = vunpack.c.l.b16 %v2801
      %v3590 = vunpack.c.l.b16 %v2802
      %v3591 = vunpack.c.l.b16 %v2803
      %v3592 = vunpack.c.l.b16 %v2804
      %v3593 = vunpack.c.l.b16 %v2805
      %v3594 = vunpack.c.l.b16 %v2806
      %v3595 = vunpack.c.l.b16 %v2807
      %v3596 = vunpack.c.l.b16 %v2808
      %v3597 = vunpack.c.l.b16 %v2809
      %v3598 = vunpack.c.l.b16 %v2810
      %v3599 = vunpack.c.l.b16 %v2811
      %v3600 = vunpack.c.l.b16 %v2812
      %v3601 = vunpack.c.l.b16 %v2813
      %v3602 = vunpack.c.l.b16 %v2814
      %v3603 = vunpack.c.l.b16 %v2815
      %v3604 = vunpack.c.l.b16 %v2816
      %v3605 = vunpack.c.l.b16 %v2817
      %v3606 = vunpack.c.l.b16 %v2818
      %v3607 = vunpack.c.l.b16 %v2819
      %v3608 = vunpack.c.l.b16 %v2820
      %v3609 = vunpack.c.l.b16 %v2821
      %v3610 = vunpack.c.l.b16 %v2822
      %v3611 = vunpack.c.l.b16 %v2823
      %v3612 = vunpack.c.l.b16 %v2824
      %v3613 = vunpack.c.l.b16 %v2825
      %v3614 = vunpack.c.l.b16 %v2826
      %v3615 = vunpack.c.l.b16 %v2827
      %v3616 = vunpack.c.l.b16 %v2828
      %v3617 = vunpack.c.l.b16 %v2829
      %v3618 = vunpack.c.l.b16 %v2830
      %v3619 = vunpack.c.l.b16 %v2831
      %v3620 = vunpack.c.l.b16 %v2832
      %v3621 = vunpack.c.l.b16 %v2833
      %v3622 = vunpack.c.l.b16 %v2834
      %v3623 = vunpack.c.l.b16 %v2835
      %v3624 = vunpack.c.l.b16 %v2836
      %v3625 = vunpack.c.l.b16 %v2837
      %v3626 = vunpack.c.l.b16 %v2838
      %v3627 = vunpack.c.l.b16 %v2839
      %v3628 = vunpack.c.l.b16 %v2840
      %v3629 = vunpack.c.l.b16 %v2841
      %v3630 = vunpack.c.l.b16 %v2842
      %v3631 = vunpack.c.l.b16 %v2843
      %v3632 = vunpack.c.l.b16 %v2844
      %v3633 = vunpack.c.l.b16 %v2845
      %v3634 = vunpack.c.l.b16 %v2846
      %v3635 = vunpack.c.l.b16 %v2847
      %v3636 = vunpack.c.l.b16 %v2848
      %v3637 = vunpack.c.l.b16 %v2849
      %v3638 = vunpack.c.l.b16 %v2850
      %v3639 = vunpack.c.l.b16 %v2851
      %v3640 = vunpack.c.l.b16 %v2852
      %v3641 = vunpack.c.l.b16 %v2853
      %v3642 = vunpack.c.l.b16 %v2854
      %v3643 = vunpack.c.l.b16 %v2855
      %v3644 = vunpack.c.l.b16 %v2856
      %v3645 = vunpack.c.l.b16 %v2857
      %v3646 = vunpack.c.l.b16 %v2858
      %v3647 = vunpack.c.l.b16 %v2859
      %v3648 = vunpack.c.l.b16 %v2860
      %v3649 = vunpack.c.l.b16 %v2861
      %v3650 = vunpack.c.l.b16 %v2862
      %v3651 = vunpack.c.l.b16 %v2863
      %v3652 = vunpack.c.l.b16 %v2864
      %v3653 = vunpack.c.l.b16 %v2865
      %v3654 = vunpack.c.l.b16 %v2866
      %v3655 = vunpack.c.l.b16 %v2867
      %v3656 = vunpack.c.l.b16 %v2868
      %v3657 = vunpack.c.l.b16 %v2869
      %v3658 = vunpack.c.l.b16 %v2870
      %v3659 = vunpack.c.l.b16 %v2871
      %v3660 = vunpack.c.l.b16 %v2872
      %v3661 = vunpack.c.l.b16 %v2873
      %v3662 = vunpack.c.l.b16 %v2874
      %v3663 = vunpack.c.l.b16 %v2875
      %v3664 = vunpack.c.l.b16 %v2876
      %v3665 = vunpack.c.l.b16 %v2877
      %v3666 = vunpack.c.l.b16 %v2878
      %v3667 = vunpack.c.l.b16 %v2879
      %v3668 = vunpack.c.l.b16 %v2880
      %v3669 = vunpack.c.l.b16 %v2881
      %v3670 = vunpack.c.l.b16 %v2882
      %v3671 = vunpack.c.l.b16 %v2883
      %v3672 = vunpack.c.l.b16 %v2884
      %v3673 = vunpack.c.l.b16 %v2885
      %v3674 = vunpack.c.l.b16 %v2886
      %v3675 = vunpack.c.l.b16 %v2887
      %v3676 = vunpack.c.l.b16 %v2888
      %v3677 = vunpack.c.l.b16 %v2889
      %v3678 = vunpack.c.l.b16 %v2890
      %v3679 = vunpack.c.l.b16 %v2891
      %v3680 = vunpack.c.l.b16 %v2892
      %v3681 = vunpack.c.l.b16 %v2893
      %v3682 = vunpack.c.l.b16 %v2894
      %v3683 = vunpack.c.l.b16 %v2895
      %v3684 = vunpack.c.l.b16 %v2896
      %v3685 = vunpack.c.l.b16 %v2897
      %v3686 = vunpack.c.l.b16 %v2898
      %v3687 = vunpack.c.l.b16 %v2899
      %v3688 = vunpack.c.l.b16 %v2900
      %v3689 = vunpack.c.l.b16 %v2901
      %v3690 = vunpack.c.l.b16 %v2902
      %v3691 = vunpack.c.l.b16 %v2903
      %v3692 = vunpack.c.l.b16 %v2904
      %v3693 = vunpack.c.l.b16 %v2905
      %v3694 = vunpack.c.l.b16 %v2906
      %v3695 = vunpack.c.l.b16 %v2907
      %v3696 = vunpack.c.l.b16 %v2908
      %v3697 = vunpack.c.l.b16 %v2909
      %v3698 = vunpack.c.l.b16 %v2910
      %v3699 = vunpack.c.l.b16 %v2911
      %v3700 = vunpack.c.l.b16 %v2912
      %v3701 = vunpack.c.l.b16 %v2913
      %v3702 = vunpack.c.l.b16 %v2914
      %v3703 = vunpack.c.l.b16 %v2915
      %v3704 = vunpack.c.l.b16 %v2916
      %v3705 = vunpack.c.l.b16 %v2917
      %v3706 = vunpack.c.l.b16 %v2918
      %v3707 = vunpack.c.l.b16 %v2919
      %v3708 = vunpack.c.l.b16 %v2920
      %v3709 = vunpack.c.l.b16 %v2921
      %v3710 = vunpack.c.l.b16 %v2922
      %v3711 = vunpack.c.l.b16 %v2923
      %v3712 = vunpack.c.l.b16 %v2924
      %v3713 = vunpack.c.l.b16 %v2925
      %v3714 = vunpack.c.l.b16 %v2926
      %v3715 = vunpack.c.l.b16 %v2927
      %v3716 = vunpack.c.l.b16 %v2928
      %v3717 = vunpack.c.l.b16 %v2929
      %v3718 = vunpack.c.l.b16 %v2930
      %v3719 = vunpack.c.l.b16 %v2931
      %v3720 = vunpack.c.l.b16 %v2932
      %v3721 = vunpack.c.l.b16 %v2933
      %v3722 = vunpack.c.l.b16 %v2934
      %v3723 = vunpack.c.l.b16 %v2935
      %v3724 = vunpack.c.l.b16 %v2936
      %v3725 = vunpack.c.l.b16 %v2937
      %v3726 = vunpack.c.l.b16 %v2938
      %v3727 = vunpack.c.l.b16 %v2939
      %v3728 = vunpack.c.l.b16 %v2940
      %v3729 = vunpack.c.l.b16 %v2941
      %v3730 = vunpack.c.l.b16 %v2942
      %v3731 = vunpack.c.l.b16 %v2943
      %v3732 = vunpack.c.l.b16 %v2944
      %v3733 = vpack.c.b16 %v3342, %v3341
      %v3734 = vpack.c.b16 %v3344, %v3343
      %v3735 = vpack.c.b16 %v3346, %v3345
      %v3736 = vpack.c.b16 %v3348, %v3347
      %v3737 = vpack.c.b16 %v3350, %v3349
      %v3738 = vpack.c.b16 %v3352, %v3351
      %v3739 = vpack.c.b16 %v3354, %v3353
      %v3740 = vpack.c.b16 %v3356, %v3355
      %v3741 = vpack.c.b16 %v3358, %v3357
      %v3742 = vpack.c.b16 %v3360, %v3359
      %v3743 = vpack.c.b16 %v3362, %v3361
      %v3744 = vpack.c.b16 %v3364, %v3363
      %v3745 = vpack.c.b16 %v3366, %v3365
      %v3746 = vpack.c.b16 %v3368, %v3367
      %v3747 = vpack.c.b16 %v3370, %v3369
      %v3748 = vpack.c.b16 %v3372, %v3371
      %v3749 = vpack.c.b16 %v3374, %v3373
      %v3750 = vpack.c.b16 %v3376, %v3375
      %v3751 = vpack.c.b16 %v3378, %v3377
      %v3752 = vpack.c.b16 %v3380, %v3379
      %v3753 = vpack.c.b16 %v3382, %v3381
      %v3754 = vpack.c.b16 %v3384, %v3383
      %v3755 = vpack.c.b16 %v3386, %v3385
      %v3756 = vpack.c.b16 %v3388, %v3387
      %v3757 = vpack.c.b16 %v3390, %v3389
      %v3758 = vpack.c.b16 %v3392, %v3391
      %v3759 = vpack.c.b16 %v3394, %v3393
      %v3760 = vpack.c.b16 %v3396, %v3395
      %v3761 = vpack.c.b16 %v3398, %v3397
      %v3762 = vpack.c.b16 %v3400, %v3399
      %v3763 = vpack.c.b16 %v3402, %v3401
      %v3764 = vpack.c.b16 %v3404, %v3403
      %v3765 = vpack.c.b16 %v3406, %v3405
      %v3766 = vpack.c.b16 %v3408, %v3407
      %v3767 = vpack.c.b16 %v3410, %v3409
      %v3768 = vpack.c.b16 %v3412, %v3411
      %v3769 = vpack.c.b16 %v3414, %v3413
      %v3770 = vpack.c.b16 %v3416, %v3415
      %v3771 = vpack.c.b16 %v3418, %v3417
      %v3772 = vpack.c.b16 %v3420, %v3419
      %v3773 = vpack.c.b16 %v3422, %v3421
      %v3774 = vpack.c.b16 %v3424, %v3423
      %v3775 = vpack.c.b16 %v3426, %v3425
      %v3776 = vpack.c.b16 %v3428, %v3427
      %v3777 = vpack.c.b16 %v3430, %v3429
      %v3778 = vpack.c.b16 %v3432, %v3431
      %v3779 = vpack.c.b16 %v3434, %v3433
      %v3780 = vpack.c.b16 %v3436, %v3435
      %v3781 = vpack.c.b16 %v3438, %v3437
      %v3782 = vpack.c.b16 %v3440, %v3439
      %v3783 = vpack.c.b16 %v3442, %v3441
      %v3784 = vpack.c.b16 %v3444, %v3443
      %v3785 = vpack.c.b16 %v3446, %v3445
      %v3786 = vpack.c.b16 %v3448, %v3447
      %v3787 = vpack.c.b16 %v3450, %v3449
      %v3788 = vpack.c.b16 %v3452, %v3451
      %v3789 = vpack.c.b16 %v3454, %v3453
      %v3790 = vpack.c.b16 %v3456, %v3455
      %v3791 = vpack.c.b16 %v3458, %v3457
      %v3792 = vpack.c.b16 %v3460, %v3459
      %v3793 = vpack.c.b16 %v3462, %v3461
      %v3794 = vpack.c.b16 %v3464, %v3463
      %v3795 = vpack.c.b16 %v3466, %v3465
      %v3796 = vpack.c.b16 %v3468, %v3467
      %v3797 = vpack.c.b16 %v3470, %v3469
      %v3798 = vpack.c.b16 %v3472, %v3471
      %v3799 = vpack.c.b16 %v3474, %v3473
      %v3800 = vpack.c.b16 %v3476, %v3475
      %v3801 = vpack.c.b16 %v3478, %v3477
      %v3802 = vpack.c.b16 %v3480, %v3479
      %v3803 = vpack.c.b16 %v3482, %v3481
      %v3804 = vpack.c.b16 %v3484, %v3483
      %v3805 = vpack.c.b16 %v3486, %v3485
      %v3806 = vpack.c.b16 %v3488, %v3487
      %v3807 = vpack.c.b16 %v3490, %v3489
      %v3808 = vpack.c.b16 %v3492, %v3491
      %v3809 = vpack.c.b16 %v3494, %v3493
      %v3810 = vpack.c.b16 %v3496, %v3495
      %v3811 = vpack.c.b16 %v3498, %v3497
      %v3812 = vpack.c.b16 %v3500, %v3499
      %v3813 = vpack.c.b16 %v3502, %v3501
      %v3814 = vpack.c.b16 %v3504, %v3503
      %v3815 = vpack.c.b16 %v3506, %v3505
      %v3816 = vpack.c.b16 %v3508, %v3507
      %v3817 = vpack.c.b16 %v3510, %v3509
      %v3818 = vpack.c.b16 %v3512, %v3511
      %v3819 = vpack.c.b16 %v3514, %v3513
      %v3820 = vpack.c.b16 %v3516, %v3515
      %v3821 = vpack.c.b16 %v3518, %v3517
      %v3822 = vpack.c.b16 %v3520, %v3519
      %v3823 = vpack.c.b16 %v3522, %v3521
      %v3824 = vpack.c.b16 %v3524, %v3523
      %v3825 = vpack.c.b16 %v3526, %v3525
      %v3826 = vpack.c.b16 %v3528, %v3527
      %v3827 = vpack.c.b16 %v3530, %v3529
      %v3828 = vpack.c.b16 %v3532, %v3531
      %v3829 = vpack.c.b16 %v3534, %v3533
      %v3830 = vpack.c.b16 %v3536, %v3535
      %v3831 = vpack.c.b16 %v3538, %v3537
      %v3832 = vpack.c.b16 %v3540, %v3539
      %v3833 = vpack.c.b16 %v3542, %v3541
      %v3834 = vpack.c.b16 %v3544, %v3543
      %v3835 = vpack.c.b16 %v3546, %v3545
      %v3836 = vpack.c.b16 %v3548, %v3547
      %v3837 = vpack.c.b16 %v3550, %v3549
      %v3838 = vpack.c.b16 %v3552, %v3551
      %v3839 = vpack.c.b16 %v3554, %v3553
      %v3840 = vpack.c.b16 %v3556, %v3555
      %v3841 = vpack.c.b16 %v3558, %v3557
      %v3842 = vpack.c.b16 %v3560, %v3559
      %v3843 = vpack.c.b16 %v3562, %v3561
      %v3844 = vpack.c.b16 %v3564, %v3563
      %v3845 = vpack.c.b16 %v3566, %v3565
      %v3846 = vpack.c.b16 %v3568, %v3567
      %v3847 = vpack.c.b16 %v3570, %v3569
      %v3848 = vpack.c.b16 %v3572, %v3571
      %v3849 = vpack.c.b16 %v3574, %v3573
      %v3850 = vpack.c.b16 %v3576, %v3575
      %v3851 = vpack.c.b16 %v3578, %v3577
      %v3852 = vpack.c.b16 %v3580, %v3579
      %v3853 = vpack.c.b16 %v3582, %v3581
      %v3854 = vpack.c.b16 %v3584, %v3583
      %v3855 = vpack.c.b16 %v3586, %v3585
      %v3856 = vpack.c.b16 %v3588, %v3587
      %v3857 = vpack.c.b16 %v3590, %v3589
      %v3858 = vpack.c.b16 %v3592, %v3591
      %v3859 = vpack.c.b16 %v3594, %v3593
      %v3860 = vpack.c.b16 %v3596, %v3595
      %v3861 = vpack.c.b16 %v3598, %v3597
      %v3862 = vpack.c.b16 %v3600, %v3599
      %v3863 = vpack.c.b16 %v3602, %v3601
      %v3864 = vpack.c.b16 %v3604, %v3603
      %v3865 = vpack.c.b16 %v3606, %v3605
      %v3866 = vpack.c.b16 %v3608, %v3607
      %v3867 = vpack.c.b16 %v3610, %v3609
      %v3868 = vpack.c.b16 %v3612, %v3611
      %v3869 = vpack.c.b16 %v3614, %v3613
      %v3870 = vpack.c.b16 %v3616, %v3615
      %v3871 = vpack.c.b16 %v3618, %v3617
      %v3872 = vpack.c.b16 %v3620, %v3619
      %v3873 = vpack.c.b16 %v3622, %v3621
      %v3874 = vpack.c.b16 %v3624, %v3623
      %v3875 = vpack.c.b16 %v3626, %v3625
      %v3876 = vpack.c.b16 %v3628, %v3627
      %v3877 = vpack.c.b16 %v3630, %v3629
      %v3878 = vpack.c.b16 %v3632, %v3631
      %v3879 = vpack.c.b16 %v3634, %v3633
      %v3880 = vpack.c.b16 %v3636, %v3635
      %v3881 = vpack.c.b16 %v3638, %v3637
      %v3882 = vpack.c.b16 %v3640, %v3639
      %v3883 = vpack.c.b16 %v3642, %v3641
      %v3884 = vpack.c.b16 %v3644, %v3643
      %v3885 = vpack.c.b16 %v3646, %v3645
      %v3886 = vpack.c.b16 %v3648, %v3647
      %v3887 = vpack.c.b16 %v3650, %v3649
      %v3888 = vpack.c.b16 %v3652, %v3651
      %v3889 = vpack.c.b16 %v3654, %v3653
      %v3890 = vpack.c.b16 %v3656, %v3655
      %v3891 = vpack.c.b16 %v3658, %v3657
      %v3892 = vpack.c.b16 %v3660, %v3659
      %v3893 = vpack.c.b16 %v3662, %v3661
      %v3894 = vpack.c.b16 %v3664, %v3663
      %v3895 = vpack.c.b16 %v3666, %v3665
      %v3896 = vpack.c.b16 %v3668, %v3667
      %v3897 = vpack.c.b16 %v3670, %v3669
      %v3898 = vpack.c.b16 %v3672, %v3671
      %v3899 = vpack.c.b16 %v3674, %v3673
      %v3900 = vpack.c.b16 %v3676, %v3675
      %v3901 = vpack.c.b16 %v3678, %v3677
      %v3902 = vpack.c.b16 %v3680, %v3679
      %v3903 = vpack.c.b16 %v3682, %v3681
      %v3904 = vpack.c.b16 %v3684, %v3683
      %v3905 = vpack.c.b16 %v3686, %v3685
      %v3906 = vpack.c.b16 %v3688, %v3687
      %v3907 = vpack.c.b16 %v3690, %v3689
      %v3908 = vpack.c.b16 %v3692, %v3691
      %v3909 = vpack.c.b16 %v3694, %v3693
      %v3910 = vpack.c.b16 %v3696, %v3695
      %v3911 = vpack.c.b16 %v3698, %v3697
      %v3912 = vpack.c.b16 %v3700, %v3699
      %v3913 = vpack.c.b16 %v3702, %v3701
      %v3914 = vpack.c.b16 %v3704, %v3703
      %v3915 = vpack.c.b16 %v3706, %v3705
      %v3916 = vpack.c.b16 %v3708, %v3707
      %v3917 = vpack.c.b16 %v3710, %v3709
      %v3918 = vpack.c.b16 %v3712, %v3711
      %v3919 = vpack.c.b16 %v3714, %v3713
      %v3920 = vpack.c.b16 %v3716, %v3715
      %v3921 = vpack.c.b16 %v3718, %v3717
      %v3922 = vpack.c.b16 %v3720, %v3719
      %v3923 = vpack.c.b16 %v3722, %v3721
      %v3924 = vpack.c.b16 %v3724, %v3723
      %v3925 = vpack.c.b16 %v3726, %v3725
      %v3926 = vpack.c.b16 %v3728, %v3727
      %v3927 = vpack.c.b16 %v3730, %v3729
      %v3928 = vpack.c.b16 %v3732, %v3731
      %v4126 = vsel %vm1906, %v2415, 0
      %v4129 = vsel %vm1906, %v2440, 0
      %v4132 = vsel %vm1906, %v2448, 0
      %v4135 = vsel %vm1906, %v2456, 0
      %v4138 = vsel %vm1906, %v2464, 0
      %v4141 = vsel %vm1906, %v2472, 0
      %v4144 = vsel %vm1906, %v2480, 0
      %v4147 = vsel %vm1906, %v2488, 0
      %v4150 = vsel %vm1906, %v2496, 0
      %v4153 = vsel %vm1906, %v2504, 0
      %v4156 = vsel %vm1906, %v2512, 0
      %v4159 = vsel %vm1906, %v2520, 0
      %v4162 = vsel %vm1906, %v2528, 0
      %v4165 = vsel %vm1906, %v2536, 0
      %v4168 = vsel %vm1906, %v2544, 0
      %v4171 = vsel %vm1906, %v2552, 0
      %4173 = vmatpush.bf16.msra.mxu0 %v3740
      %4174 = vmatpush.bf16.msra.mxu0 %v3739
      %4175 = vmatpush.bf16.msra.mxu0 %v3738
      %4176 = vmatpush.bf16.msra.mxu0 %v3737
      %4177 = vmatpush.bf16.msra.mxu0 %v3736
      %4178 = vmatpush.bf16.msra.mxu0 %v3735
      %4179 = vmatpush.bf16.msra.mxu0 %v3734
      %4180 = vmatpush.bf16.msra.mxu0 %v3733
      %4181 = vmatmul.bf16.gmra.mxu0 %v2391
      %v4182 = vpop.f32.mrf.mxu0
      %v4183 = vadd.f32 %v2947, %v4182
      %v4184 = vpop.f32.mrf.mxu0
      %v4185 = vadd.f32 %v2947, %v4184
      %4186 = vmatmul.bf16.gmra.mxu0 %v2416
      %v4187 = vpop.f32.mrf.mxu0
      %v4188 = vadd.f32 %v2947, %v4187
      %v4189 = vpop.f32.mrf.mxu0
      %v4190 = vadd.f32 %v2947, %v4189
      %4191 = vmatmul.bf16.gmra.mxu0 %v2398
      %v4192 = vpop.f32.mrf.mxu0
      %v4193 = vadd.f32 %v2947, %v4192
      %v4194 = vpop.f32.mrf.mxu0
      %v4195 = vadd.f32 %v2947, %v4194
      %4196 = vmatmul.bf16.gmra.mxu0 %v2423
      %v4197 = vpop.f32.mrf.mxu0
      %v4198 = vadd.f32 %v2947, %v4197
      %v4199 = vpop.f32.mrf.mxu0
      %v4200 = vadd.f32 %v2947, %v4199
      %4201 = vmatmul.bf16.gmra.mxu0 %v2405
      %v4202 = vpop.f32.mrf.mxu0
      %v4203 = vadd.f32 %v2947, %v4202
      %v4204 = vpop.f32.mrf.mxu0
      %v4205 = vadd.f32 %v2947, %v4204
      %4206 = vmatmul.bf16.gmra.mxu0 %v2430
      %v4207 = vpop.f32.mrf.mxu0
      %v4208 = vadd.f32 %v2947, %v4207
      %v4209 = vpop.f32.mrf.mxu0
      %v4210 = vadd.f32 %v2947, %v4209
      %4211 = vmatmul.bf16.gmra.mxu0 %v2412
      %v4212 = vpop.f32.mrf.mxu0
      %v4213 = vadd.f32 %v2947, %v4212
      %v4214 = vpop.f32.mrf.mxu0
      %v4215 = vadd.f32 %v2947, %v4214
      %4216 = vmatmul.bf16.gmra.mxu0 %v2437
      %v4217 = vpop.f32.mrf.mxu0
      %v4218 = vadd.f32 %v2947, %v4217
      %v4219 = vpop.f32.mrf.mxu0
      %v4220 = vadd.f32 %v2947, %v4219
      %4221 = vmatmul.bf16.gmra.mxu0 %v2445
      %v4222 = vpop.f32.mrf.mxu0
      %v4223 = vadd.f32 %v2947, %v4222
      %v4224 = vpop.f32.mrf.mxu0
      %v4225 = vadd.f32 %v2947, %v4224
      %4226 = vmatmul.bf16.gmra.mxu0 %v2453
      %v4227 = vpop.f32.mrf.mxu0
      %v4228 = vadd.f32 %v2947, %v4227
      %v4229 = vpop.f32.mrf.mxu0
      %v4230 = vadd.f32 %v2947, %v4229
      %4231 = vmatmul.bf16.gmra.mxu0 %v2461
      %v4232 = vpop.f32.mrf.mxu0
      %v4233 = vadd.f32 %v2947, %v4232
      %v4234 = vpop.f32.mrf.mxu0
      %v4235 = vadd.f32 %v2947, %v4234
      %4236 = vmatmul.bf16.gmra.mxu0 %v2469
      %v4237 = vpop.f32.mrf.mxu0
      %v4238 = vadd.f32 %v2947, %v4237
      %v4239 = vpop.f32.mrf.mxu0
      %v4240 = vadd.f32 %v2947, %v4239
      %4241 = vmatmul.bf16.gmra.mxu0 %v2477
      %v4242 = vpop.f32.mrf.mxu0
      %v4243 = vadd.f32 %v2947, %v4242
      %v4244 = vpop.f32.mrf.mxu0
      %v4245 = vadd.f32 %v2947, %v4244
      %4246 = vmatmul.bf16.gmra.mxu0 %v2485
      %v4247 = vpop.f32.mrf.mxu0
      %v4248 = vadd.f32 %v2947, %v4247
      %v4249 = vpop.f32.mrf.mxu0
      %v4250 = vadd.f32 %v2947, %v4249
      %4251 = vmatmul.bf16.gmra.mxu0 %v2493
      %v4252 = vpop.f32.mrf.mxu0
      %v4253 = vadd.f32 %v2947, %v4252
      %v4254 = vpop.f32.mrf.mxu0
      %v4255 = vadd.f32 %v2947, %v4254
      %4256 = vmatmul.bf16.gmra.mxu0 %v2501
      %v4257 = vpop.f32.mrf.mxu0
      %v4258 = vadd.f32 %v2947, %v4257
      %v4259 = vpop.f32.mrf.mxu0
      %v4260 = vadd.f32 %v2947, %v4259
      %4261 = vdwg.mxu0
      %4262 = vmatpush.bf16.msra.mxu0 %v3748
      %4263 = vmatpush.bf16.msra.mxu0 %v3747
      %4264 = vmatpush.bf16.msra.mxu0 %v3746
      %4265 = vmatpush.bf16.msra.mxu0 %v3745
      %4266 = vmatpush.bf16.msra.mxu0 %v3744
      %4267 = vmatpush.bf16.msra.mxu0 %v3743
      %4268 = vmatpush.bf16.msra.mxu0 %v3742
      %4269 = vmatpush.bf16.msra.mxu0 %v3741
      %4270 = vmatmul.bf16.gmra.mxu0 %v2392
      %v4271 = vpop.f32.mrf.mxu0
      %v4272 = vadd.f32 %v4183, %v4271
      %v4273 = vpop.f32.mrf.mxu0
      %v4274 = vadd.f32 %v4185, %v4273
      %4275 = vmatmul.bf16.gmra.mxu0 %v2417
      %v4276 = vpop.f32.mrf.mxu0
      %v4277 = vadd.f32 %v4188, %v4276
      %v4278 = vpop.f32.mrf.mxu0
      %v4279 = vadd.f32 %v4190, %v4278
      %4280 = vmatmul.bf16.gmra.mxu0 %v2399
      %v4281 = vpop.f32.mrf.mxu0
      %v4282 = vadd.f32 %v4193, %v4281
      %v4283 = vpop.f32.mrf.mxu0
      %v4284 = vadd.f32 %v4195, %v4283
      %4285 = vmatmul.bf16.gmra.mxu0 %v2424
      %v4286 = vpop.f32.mrf.mxu0
      %v4287 = vadd.f32 %v4198, %v4286
      %v4288 = vpop.f32.mrf.mxu0
      %v4289 = vadd.f32 %v4200, %v4288
      %4290 = vmatmul.bf16.gmra.mxu0 %v2406
      %v4291 = vpop.f32.mrf.mxu0
      %v4292 = vadd.f32 %v4203, %v4291
      %v4293 = vpop.f32.mrf.mxu0
      %v4294 = vadd.f32 %v4205, %v4293
      %4295 = vmatmul.bf16.gmra.mxu0 %v2431
      %v4296 = vpop.f32.mrf.mxu0
      %v4297 = vadd.f32 %v4208, %v4296
      %v4298 = vpop.f32.mrf.mxu0
      %v4299 = vadd.f32 %v4210, %v4298
      %4300 = vmatmul.bf16.gmra.mxu0 %v2413
      %v4301 = vpop.f32.mrf.mxu0
      %v4302 = vadd.f32 %v4213, %v4301
      %v4303 = vpop.f32.mrf.mxu0
      %v4304 = vadd.f32 %v4215, %v4303
      %4305 = vmatmul.bf16.gmra.mxu0 %v2438
      %v4306 = vpop.f32.mrf.mxu0
      %v4307 = vadd.f32 %v4218, %v4306
      %v4308 = vpop.f32.mrf.mxu0
      %v4309 = vadd.f32 %v4220, %v4308
      %4310 = vmatmul.bf16.gmra.mxu0 %v2446
      %v4311 = vpop.f32.mrf.mxu0
      %v4312 = vadd.f32 %v4223, %v4311
      %v4313 = vpop.f32.mrf.mxu0
      %v4314 = vadd.f32 %v4225, %v4313
      %4315 = vmatmul.bf16.gmra.mxu0 %v2454
      %v4316 = vpop.f32.mrf.mxu0
      %v4317 = vadd.f32 %v4228, %v4316
      %v4318 = vpop.f32.mrf.mxu0
      %v4319 = vadd.f32 %v4230, %v4318
      %4320 = vmatmul.bf16.gmra.mxu0 %v2462
      %v4321 = vpop.f32.mrf.mxu0
      %v4322 = vadd.f32 %v4233, %v4321
      %v4323 = vpop.f32.mrf.mxu0
      %v4324 = vadd.f32 %v4235, %v4323
      %4325 = vmatmul.bf16.gmra.mxu0 %v2470
      %v4326 = vpop.f32.mrf.mxu0
      %v4327 = vadd.f32 %v4238, %v4326
      %v4328 = vpop.f32.mrf.mxu0
      %v4329 = vadd.f32 %v4240, %v4328
      %4330 = vmatmul.bf16.gmra.mxu0 %v2478
      %v4331 = vpop.f32.mrf.mxu0
      %v4332 = vadd.f32 %v4243, %v4331
      %v4333 = vpop.f32.mrf.mxu0
      %v4334 = vadd.f32 %v4245, %v4333
      %4335 = vmatmul.bf16.gmra.mxu0 %v2486
      %v4336 = vpop.f32.mrf.mxu0
      %v4337 = vadd.f32 %v4248, %v4336
      %v4338 = vpop.f32.mrf.mxu0
      %v4339 = vadd.f32 %v4250, %v4338
      %4340 = vmatmul.bf16.gmra.mxu0 %v2494
      %v4341 = vpop.f32.mrf.mxu0
      %v4342 = vadd.f32 %v4253, %v4341
      %v4343 = vpop.f32.mrf.mxu0
      %v4344 = vadd.f32 %v4255, %v4343
      %4345 = vmatmul.bf16.gmra.mxu0 %v2502
      %v4346 = vpop.f32.mrf.mxu0
      %v4347 = vadd.f32 %v4258, %v4346
      %v4348 = vpop.f32.mrf.mxu0
      %v4349 = vadd.f32 %v4260, %v4348
      %4350 = vdwg.mxu0
      %4351 = vmatpush.bf16.msra.mxu0 %v3756
      %4352 = vmatpush.bf16.msra.mxu0 %v3755
      %4353 = vmatpush.bf16.msra.mxu0 %v3754
      %4354 = vmatpush.bf16.msra.mxu0 %v3753
      %4355 = vmatpush.bf16.msra.mxu0 %v3752
      %4356 = vmatpush.bf16.msra.mxu0 %v3751
      %4357 = vmatpush.bf16.msra.mxu0 %v3750
      %4358 = vmatpush.bf16.msra.mxu0 %v3749
      %4359 = vmatmul.bf16.gmra.mxu0 %v2393
      %v4360 = vpop.f32.mrf.mxu0
      %v4361 = vadd.f32 %v4272, %v4360
      %v4362 = vpop.f32.mrf.mxu0
      %v4363 = vadd.f32 %v4274, %v4362
      %4364 = vmatmul.bf16.gmra.mxu0 %v2418
      %v4365 = vpop.f32.mrf.mxu0
      %v4366 = vadd.f32 %v4277, %v4365
      %v4367 = vpop.f32.mrf.mxu0
      %v4368 = vadd.f32 %v4279, %v4367
      %4369 = vmatmul.bf16.gmra.mxu0 %v2400
      %v4370 = vpop.f32.mrf.mxu0
      %v4371 = vadd.f32 %v4282, %v4370
      %v4372 = vpop.f32.mrf.mxu0
      %v4373 = vadd.f32 %v4284, %v4372
      %4374 = vmatmul.bf16.gmra.mxu0 %v2425
      %v4375 = vpop.f32.mrf.mxu0
      %v4376 = vadd.f32 %v4287, %v4375
      %v4377 = vpop.f32.mrf.mxu0
      %v4378 = vadd.f32 %v4289, %v4377
      %4379 = vmatmul.bf16.gmra.mxu0 %v2407
      %v4380 = vpop.f32.mrf.mxu0
      %v4381 = vadd.f32 %v4292, %v4380
      %v4382 = vpop.f32.mrf.mxu0
      %v4383 = vadd.f32 %v4294, %v4382
      %4384 = vmatmul.bf16.gmra.mxu0 %v2432
      %v4385 = vpop.f32.mrf.mxu0
      %v4386 = vadd.f32 %v4297, %v4385
      %v4387 = vpop.f32.mrf.mxu0
      %v4388 = vadd.f32 %v4299, %v4387
      %4389 = vmatmul.bf16.gmra.mxu0 %v2414
      %v4390 = vpop.f32.mrf.mxu0
      %v4391 = vadd.f32 %v4302, %v4390
      %v4392 = vpop.f32.mrf.mxu0
      %v4393 = vadd.f32 %v4304, %v4392
      %4394 = vmatmul.bf16.gmra.mxu0 %v2439
      %v4395 = vpop.f32.mrf.mxu0
      %v4396 = vadd.f32 %v4307, %v4395
      %v4397 = vpop.f32.mrf.mxu0
      %v4398 = vadd.f32 %v4309, %v4397
      %4399 = vmatmul.bf16.gmra.mxu0 %v2447
      %v4400 = vpop.f32.mrf.mxu0
      %v4401 = vadd.f32 %v4312, %v4400
      %v4402 = vpop.f32.mrf.mxu0
      %v4403 = vadd.f32 %v4314, %v4402
      %4404 = vmatmul.bf16.gmra.mxu0 %v2455
      %v4405 = vpop.f32.mrf.mxu0
      %v4406 = vadd.f32 %v4317, %v4405
      %v4407 = vpop.f32.mrf.mxu0
      %v4408 = vadd.f32 %v4319, %v4407
      %4409 = vmatmul.bf16.gmra.mxu0 %v2463
      %v4410 = vpop.f32.mrf.mxu0
      %v4411 = vadd.f32 %v4322, %v4410
      %v4412 = vpop.f32.mrf.mxu0
      %v4413 = vadd.f32 %v4324, %v4412
      %4414 = vmatmul.bf16.gmra.mxu0 %v2471
      %v4415 = vpop.f32.mrf.mxu0
      %v4416 = vadd.f32 %v4327, %v4415
      %v4417 = vpop.f32.mrf.mxu0
      %v4418 = vadd.f32 %v4329, %v4417
      %4419 = vmatmul.bf16.gmra.mxu0 %v2479
      %v4420 = vpop.f32.mrf.mxu0
      %v4421 = vadd.f32 %v4332, %v4420
      %v4422 = vpop.f32.mrf.mxu0
      %v4423 = vadd.f32 %v4334, %v4422
      %4424 = vmatmul.bf16.gmra.mxu0 %v2487
      %v4425 = vpop.f32.mrf.mxu0
      %v4426 = vadd.f32 %v4337, %v4425
      %v4427 = vpop.f32.mrf.mxu0
      %v4428 = vadd.f32 %v4339, %v4427
      %4429 = vmatmul.bf16.gmra.mxu0 %v2495
      %v4430 = vpop.f32.mrf.mxu0
      %v4431 = vadd.f32 %v4342, %v4430
      %v4432 = vpop.f32.mrf.mxu0
      %v4433 = vadd.f32 %v4344, %v4432
      %4434 = vmatmul.bf16.gmra.mxu0 %v2503
      %v4435 = vpop.f32.mrf.mxu0
      %v4436 = vadd.f32 %v4347, %v4435
      %v4437 = vpop.f32.mrf.mxu0
      %v4438 = vadd.f32 %v4349, %v4437
      %4439 = vdwg.mxu0
      %4440 = vmatpush.bf16.msra.mxu0 %v3764
      %4441 = vmatpush.bf16.msra.mxu0 %v3763
      %4442 = vmatpush.bf16.msra.mxu0 %v3762
      %4443 = vmatpush.bf16.msra.mxu0 %v3761
      %4444 = vmatpush.bf16.msra.mxu0 %v3760
      %4445 = vmatpush.bf16.msra.mxu0 %v3759
      %4446 = vmatpush.bf16.msra.mxu0 %v3758
      %4447 = vmatpush.bf16.msra.mxu0 %v3757
      %4448 = vmatmul.bf16.gmra.mxu0 %v2394
      %v4449 = vpop.f32.mrf.mxu0
      %v4450 = vadd.f32 %v4361, %v4449
      %v4451 = vpop.f32.mrf.mxu0
      %v4452 = vadd.f32 %v4363, %v4451
      %4453 = vmatmul.bf16.gmra.mxu0 %v2419
      %v4454 = vpop.f32.mrf.mxu0
      %v4455 = vadd.f32 %v4366, %v4454
      %v4456 = vpop.f32.mrf.mxu0
      %v4457 = vadd.f32 %v4368, %v4456
      %4458 = vmatmul.bf16.gmra.mxu0 %v2401
      %v4459 = vpop.f32.mrf.mxu0
      %v4460 = vadd.f32 %v4371, %v4459
      %v4461 = vpop.f32.mrf.mxu0
      %v4462 = vadd.f32 %v4373, %v4461
      %4463 = vmatmul.bf16.gmra.mxu0 %v2426
      %v4464 = vpop.f32.mrf.mxu0
      %v4465 = vadd.f32 %v4376, %v4464
      %v4466 = vpop.f32.mrf.mxu0
      %v4467 = vadd.f32 %v4378, %v4466
      %4468 = vmatmul.bf16.gmra.mxu0 %v2408
      %v4469 = vpop.f32.mrf.mxu0
      %v4470 = vadd.f32 %v4381, %v4469
      %v4471 = vpop.f32.mrf.mxu0
      %v4472 = vadd.f32 %v4383, %v4471
      %4473 = vmatmul.bf16.gmra.mxu0 %v2433
      %v4474 = vpop.f32.mrf.mxu0
      %v4475 = vadd.f32 %v4386, %v4474
      %v4476 = vpop.f32.mrf.mxu0
      %v4477 = vadd.f32 %v4388, %v4476
      %4478 = vmatmul.bf16.gmra.mxu0 %v2441
      %v4479 = vpop.f32.mrf.mxu0
      %v4480 = vadd.f32 %v4391, %v4479
      %v4481 = vpop.f32.mrf.mxu0
      %v4482 = vadd.f32 %v4393, %v4481
      %4483 = vmatmul.bf16.gmra.mxu0 %v2449
      %v4484 = vpop.f32.mrf.mxu0
      %v4485 = vadd.f32 %v4396, %v4484
      %v4486 = vpop.f32.mrf.mxu0
      %v4487 = vadd.f32 %v4398, %v4486
      %4488 = vmatmul.bf16.gmra.mxu0 %v2457
      %v4489 = vpop.f32.mrf.mxu0
      %v4490 = vadd.f32 %v4401, %v4489
      %v4491 = vpop.f32.mrf.mxu0
      %v4492 = vadd.f32 %v4403, %v4491
      %4493 = vmatmul.bf16.gmra.mxu0 %v2465
      %v4494 = vpop.f32.mrf.mxu0
      %v4495 = vadd.f32 %v4406, %v4494
      %v4496 = vpop.f32.mrf.mxu0
      %v4497 = vadd.f32 %v4408, %v4496
      %4498 = vmatmul.bf16.gmra.mxu0 %v2473
      %v4499 = vpop.f32.mrf.mxu0
      %v4500 = vadd.f32 %v4411, %v4499
      %v4501 = vpop.f32.mrf.mxu0
      %v4502 = vadd.f32 %v4413, %v4501
      %4503 = vmatmul.bf16.gmra.mxu0 %v2481
      %v4504 = vpop.f32.mrf.mxu0
      %v4505 = vadd.f32 %v4416, %v4504
      %v4506 = vpop.f32.mrf.mxu0
      %v4507 = vadd.f32 %v4418, %v4506
      %4508 = vmatmul.bf16.gmra.mxu0 %v2489
      %v4509 = vpop.f32.mrf.mxu0
      %v4510 = vadd.f32 %v4421, %v4509
      %v4511 = vpop.f32.mrf.mxu0
      %v4512 = vadd.f32 %v4423, %v4511
      %4513 = vmatmul.bf16.gmra.mxu0 %v2497
      %v4514 = vpop.f32.mrf.mxu0
      %v4515 = vadd.f32 %v4426, %v4514
      %v4516 = vpop.f32.mrf.mxu0
      %v4517 = vadd.f32 %v4428, %v4516
      %4518 = vmatmul.bf16.gmra.mxu0 %v2505
      %v4519 = vpop.f32.mrf.mxu0
      %v4520 = vadd.f32 %v4431, %v4519
      %v4521 = vpop.f32.mrf.mxu0
      %v4522 = vadd.f32 %v4433, %v4521
      %4523 = vmatmul.bf16.gmra.mxu0 %v2513
      %v4524 = vpop.f32.mrf.mxu0
      %v4525 = vadd.f32 %v4436, %v4524
      %v4526 = vpop.f32.mrf.mxu0
      %v4527 = vadd.f32 %v4438, %v4526
      %4528 = vdwg.mxu0
      %4529 = vmatpush.bf16.msra.mxu0 %v3772
      %4530 = vmatpush.bf16.msra.mxu0 %v3771
      %4531 = vmatpush.bf16.msra.mxu0 %v3770
      %4532 = vmatpush.bf16.msra.mxu0 %v3769
      %4533 = vmatpush.bf16.msra.mxu0 %v3768
      %4534 = vmatpush.bf16.msra.mxu0 %v3767
      %4535 = vmatpush.bf16.msra.mxu0 %v3766
      %4536 = vmatpush.bf16.msra.mxu0 %v3765
      %4537 = vmatmul.bf16.gmra.mxu0 %v2395
      %v4538 = vpop.f32.mrf.mxu0
      %v4539 = vadd.f32 %v4450, %v4538
      %v4540 = vpop.f32.mrf.mxu0
      %v4541 = vadd.f32 %v4452, %v4540
      %4542 = vmatmul.bf16.gmra.mxu0 %v2420
      %v4543 = vpop.f32.mrf.mxu0
      %v4544 = vadd.f32 %v4455, %v4543
      %v4545 = vpop.f32.mrf.mxu0
      %v4546 = vadd.f32 %v4457, %v4545
      %4547 = vmatmul.bf16.gmra.mxu0 %v2402
      %v4548 = vpop.f32.mrf.mxu0
      %v4549 = vadd.f32 %v4460, %v4548
      %v4550 = vpop.f32.mrf.mxu0
      %v4551 = vadd.f32 %v4462, %v4550
      %4552 = vmatmul.bf16.gmra.mxu0 %v2427
      %v4553 = vpop.f32.mrf.mxu0
      %v4554 = vadd.f32 %v4465, %v4553
      %v4555 = vpop.f32.mrf.mxu0
      %v4556 = vadd.f32 %v4467, %v4555
      %4557 = vmatmul.bf16.gmra.mxu0 %v2409
      %v4558 = vpop.f32.mrf.mxu0
      %v4559 = vadd.f32 %v4470, %v4558
      %v4560 = vpop.f32.mrf.mxu0
      %v4561 = vadd.f32 %v4472, %v4560
      %4562 = vmatmul.bf16.gmra.mxu0 %v2434
      %v4563 = vpop.f32.mrf.mxu0
      %v4564 = vadd.f32 %v4475, %v4563
      %v4565 = vpop.f32.mrf.mxu0
      %v4566 = vadd.f32 %v4477, %v4565
      %4567 = vmatmul.bf16.gmra.mxu0 %v2442
      %v4568 = vpop.f32.mrf.mxu0
      %v4569 = vadd.f32 %v4480, %v4568
      %v4570 = vpop.f32.mrf.mxu0
      %v4571 = vadd.f32 %v4482, %v4570
      %4572 = vmatmul.bf16.gmra.mxu0 %v2450
      %v4573 = vpop.f32.mrf.mxu0
      %v4574 = vadd.f32 %v4485, %v4573
      %v4575 = vpop.f32.mrf.mxu0
      %v4576 = vadd.f32 %v4487, %v4575
      %4577 = vmatmul.bf16.gmra.mxu0 %v2458
      %v4578 = vpop.f32.mrf.mxu0
      %v4579 = vadd.f32 %v4490, %v4578
      %v4580 = vpop.f32.mrf.mxu0
      %v4581 = vadd.f32 %v4492, %v4580
      %4582 = vmatmul.bf16.gmra.mxu0 %v2466
      %v4583 = vpop.f32.mrf.mxu0
      %v4584 = vadd.f32 %v4495, %v4583
      %v4585 = vpop.f32.mrf.mxu0
      %v4586 = vadd.f32 %v4497, %v4585
      %4587 = vmatmul.bf16.gmra.mxu0 %v2474
      %v4588 = vpop.f32.mrf.mxu0
      %v4589 = vadd.f32 %v4500, %v4588
      %v4590 = vpop.f32.mrf.mxu0
      %v4591 = vadd.f32 %v4502, %v4590
      %4592 = vmatmul.bf16.gmra.mxu0 %v2482
      %v4593 = vpop.f32.mrf.mxu0
      %v4594 = vadd.f32 %v4505, %v4593
      %v4595 = vpop.f32.mrf.mxu0
      %v4596 = vadd.f32 %v4507, %v4595
      %4597 = vmatmul.bf16.gmra.mxu0 %v2490
      %v4598 = vpop.f32.mrf.mxu0
      %v4599 = vadd.f32 %v4510, %v4598
      %v4600 = vpop.f32.mrf.mxu0
      %v4601 = vadd.f32 %v4512, %v4600
      %4602 = vmatmul.bf16.gmra.mxu0 %v2498
      %v4603 = vpop.f32.mrf.mxu0
      %v4604 = vadd.f32 %v4515, %v4603
      %v4605 = vpop.f32.mrf.mxu0
      %v4606 = vadd.f32 %v4517, %v4605
      %4607 = vmatmul.bf16.gmra.mxu0 %v2506
      %v4608 = vpop.f32.mrf.mxu0
      %v4609 = vadd.f32 %v4520, %v4608
      %v4610 = vpop.f32.mrf.mxu0
      %v4611 = vadd.f32 %v4522, %v4610
      %4612 = vmatmul.bf16.gmra.mxu0 %v2514
      %v4613 = vpop.f32.mrf.mxu0
      %v4614 = vadd.f32 %v4525, %v4613
      %v4615 = vpop.f32.mrf.mxu0
      %v4616 = vadd.f32 %v4527, %v4615
      %4617 = vdwg.mxu0
      %4618 = vmatpush.bf16.msra.mxu0 %v3780
      %4619 = vmatpush.bf16.msra.mxu0 %v3779
      %4620 = vmatpush.bf16.msra.mxu0 %v3778
      %4621 = vmatpush.bf16.msra.mxu0 %v3777
      %4622 = vmatpush.bf16.msra.mxu0 %v3776
      %4623 = vmatpush.bf16.msra.mxu0 %v3775
      %4624 = vmatpush.bf16.msra.mxu0 %v3774
      %4625 = vmatpush.bf16.msra.mxu0 %v3773
      %4626 = vmatmul.bf16.gmra.mxu0 %v2396
      %v4627 = vpop.f32.mrf.mxu0
      %v4628 = vadd.f32 %v4539, %v4627
      %v4629 = vpop.f32.mrf.mxu0
      %v4630 = vadd.f32 %v4541, %v4629
      %4631 = vmatmul.bf16.gmra.mxu0 %v2421
      %v4632 = vpop.f32.mrf.mxu0
      %v4633 = vadd.f32 %v4544, %v4632
      %v4634 = vpop.f32.mrf.mxu0
      %v4635 = vadd.f32 %v4546, %v4634
      %4636 = vmatmul.bf16.gmra.mxu0 %v2403
      %v4637 = vpop.f32.mrf.mxu0
      %v4638 = vadd.f32 %v4549, %v4637
      %v4639 = vpop.f32.mrf.mxu0
      %v4640 = vadd.f32 %v4551, %v4639
      %4641 = vmatmul.bf16.gmra.mxu0 %v2428
      %v4642 = vpop.f32.mrf.mxu0
      %v4643 = vadd.f32 %v4554, %v4642
      %v4644 = vpop.f32.mrf.mxu0
      %v4645 = vadd.f32 %v4556, %v4644
      %4646 = vmatmul.bf16.gmra.mxu0 %v2410
      %v4647 = vpop.f32.mrf.mxu0
      %v4648 = vadd.f32 %v4559, %v4647
      %v4649 = vpop.f32.mrf.mxu0
      %v4650 = vadd.f32 %v4561, %v4649
      %4651 = vmatmul.bf16.gmra.mxu0 %v2435
      %v4652 = vpop.f32.mrf.mxu0
      %v4653 = vadd.f32 %v4564, %v4652
      %v4654 = vpop.f32.mrf.mxu0
      %v4655 = vadd.f32 %v4566, %v4654
      %4656 = vmatmul.bf16.gmra.mxu0 %v2443
      %v4657 = vpop.f32.mrf.mxu0
      %v4658 = vadd.f32 %v4569, %v4657
      %v4659 = vpop.f32.mrf.mxu0
      %v4660 = vadd.f32 %v4571, %v4659
      %4661 = vmatmul.bf16.gmra.mxu0 %v2451
      %v4662 = vpop.f32.mrf.mxu0
      %v4663 = vadd.f32 %v4574, %v4662
      %v4664 = vpop.f32.mrf.mxu0
      %v4665 = vadd.f32 %v4576, %v4664
      %4666 = vmatmul.bf16.gmra.mxu0 %v2459
      %v4667 = vpop.f32.mrf.mxu0
      %v4668 = vadd.f32 %v4579, %v4667
      %v4669 = vpop.f32.mrf.mxu0
      %v4670 = vadd.f32 %v4581, %v4669
      %4671 = vmatmul.bf16.gmra.mxu0 %v2467
      %v4672 = vpop.f32.mrf.mxu0
      %v4673 = vadd.f32 %v4584, %v4672
      %v4674 = vpop.f32.mrf.mxu0
      %v4675 = vadd.f32 %v4586, %v4674
      %4676 = vmatmul.bf16.gmra.mxu0 %v2475
      %v4677 = vpop.f32.mrf.mxu0
      %v4678 = vadd.f32 %v4589, %v4677
      %v4679 = vpop.f32.mrf.mxu0
      %v4680 = vadd.f32 %v4591, %v4679
      %4681 = vmatmul.bf16.gmra.mxu0 %v2483
      %v4682 = vpop.f32.mrf.mxu0
      %v4683 = vadd.f32 %v4594, %v4682
      %v4684 = vpop.f32.mrf.mxu0
      %v4685 = vadd.f32 %v4596, %v4684
      %4686 = vmatmul.bf16.gmra.mxu0 %v2491
      %v4687 = vpop.f32.mrf.mxu0
      %v4688 = vadd.f32 %v4599, %v4687
      %v4689 = vpop.f32.mrf.mxu0
      %v4690 = vadd.f32 %v4601, %v4689
      %4691 = vmatmul.bf16.gmra.mxu0 %v2499
      %v4692 = vpop.f32.mrf.mxu0
      %v4693 = vadd.f32 %v4604, %v4692
      %v4694 = vpop.f32.mrf.mxu0
      %v4695 = vadd.f32 %v4606, %v4694
      %4696 = vmatmul.bf16.gmra.mxu0 %v2507
      %v4697 = vpop.f32.mrf.mxu0
      %v4698 = vadd.f32 %v4609, %v4697
      %v4699 = vpop.f32.mrf.mxu0
      %v4700 = vadd.f32 %v4611, %v4699
      %4701 = vmatmul.bf16.gmra.mxu0 %v2515
      %v4702 = vpop.f32.mrf.mxu0
      %v4703 = vadd.f32 %v4614, %v4702
      %v4704 = vpop.f32.mrf.mxu0
      %v4705 = vadd.f32 %v4616, %v4704
      %4706 = vdwg.mxu0
      %4707 = vmatpush.bf16.msra.mxu0 %v3788
      %4708 = vmatpush.bf16.msra.mxu0 %v3787
      %4709 = vmatpush.bf16.msra.mxu0 %v3786
      %4710 = vmatpush.bf16.msra.mxu0 %v3785
      %4711 = vmatpush.bf16.msra.mxu0 %v3784
      %4712 = vmatpush.bf16.msra.mxu0 %v3783
      %4713 = vmatpush.bf16.msra.mxu0 %v3782
      %4714 = vmatpush.bf16.msra.mxu0 %v3781
      %4715 = vmatmul.bf16.gmra.mxu0 %v2397
      %v4716 = vpop.f32.mrf.mxu0
      %v4717 = vadd.f32 %v4628, %v4716
      %v4718 = vpop.f32.mrf.mxu0
      %v4719 = vadd.f32 %v4630, %v4718
      %4720 = vmatmul.bf16.gmra.mxu0 %v2422
      %v4721 = vpop.f32.mrf.mxu0
      %v4722 = vadd.f32 %v4633, %v4721
      %v4723 = vpop.f32.mrf.mxu0
      %v4724 = vadd.f32 %v4635, %v4723
      %4725 = vmatmul.bf16.gmra.mxu0 %v2404
      %v4726 = vpop.f32.mrf.mxu0
      %v4727 = vadd.f32 %v4638, %v4726
      %v4728 = vpop.f32.mrf.mxu0
      %v4729 = vadd.f32 %v4640, %v4728
      %4730 = vmatmul.bf16.gmra.mxu0 %v2429
      %v4731 = vpop.f32.mrf.mxu0
      %v4732 = vadd.f32 %v4643, %v4731
      %v4733 = vpop.f32.mrf.mxu0
      %v4734 = vadd.f32 %v4645, %v4733
      %4735 = vmatmul.bf16.gmra.mxu0 %v2411
      %v4736 = vpop.f32.mrf.mxu0
      %v4737 = vadd.f32 %v4648, %v4736
      %v4738 = vpop.f32.mrf.mxu0
      %v4739 = vadd.f32 %v4650, %v4738
      %4740 = vmatmul.bf16.gmra.mxu0 %v2436
      %v4741 = vpop.f32.mrf.mxu0
      %v4742 = vadd.f32 %v4653, %v4741
      %v4743 = vpop.f32.mrf.mxu0
      %v4744 = vadd.f32 %v4655, %v4743
      %4745 = vmatmul.bf16.gmra.mxu0 %v2444
      %v4746 = vpop.f32.mrf.mxu0
      %v4747 = vadd.f32 %v4658, %v4746
      %v4748 = vpop.f32.mrf.mxu0
      %v4749 = vadd.f32 %v4660, %v4748
      %4750 = vmatmul.bf16.gmra.mxu0 %v2452
      %v4751 = vpop.f32.mrf.mxu0
      %v4752 = vadd.f32 %v4663, %v4751
      %v4753 = vpop.f32.mrf.mxu0
      %v4754 = vadd.f32 %v4665, %v4753
      %4755 = vmatmul.bf16.gmra.mxu0 %v2460
      %v4756 = vpop.f32.mrf.mxu0
      %v4757 = vadd.f32 %v4668, %v4756
      %v4758 = vpop.f32.mrf.mxu0
      %v4759 = vadd.f32 %v4670, %v4758
      %4760 = vmatmul.bf16.gmra.mxu0 %v2468
      %v4761 = vpop.f32.mrf.mxu0
      %v4762 = vadd.f32 %v4673, %v4761
      %v4763 = vpop.f32.mrf.mxu0
      %v4764 = vadd.f32 %v4675, %v4763
      %4765 = vmatmul.bf16.gmra.mxu0 %v2476
      %v4766 = vpop.f32.mrf.mxu0
      %v4767 = vadd.f32 %v4678, %v4766
      %v4768 = vpop.f32.mrf.mxu0
      %v4769 = vadd.f32 %v4680, %v4768
      %4770 = vmatmul.bf16.gmra.mxu0 %v2484
      %v4771 = vpop.f32.mrf.mxu0
      %v4772 = vadd.f32 %v4683, %v4771
      %v4773 = vpop.f32.mrf.mxu0
      %v4774 = vadd.f32 %v4685, %v4773
      %4775 = vmatmul.bf16.gmra.mxu0 %v2492
      %v4776 = vpop.f32.mrf.mxu0
      %v4777 = vadd.f32 %v4688, %v4776
      %v4778 = vpop.f32.mrf.mxu0
      %v4779 = vadd.f32 %v4690, %v4778
      %4780 = vmatmul.bf16.gmra.mxu0 %v2500
      %v4781 = vpop.f32.mrf.mxu0
      %v4782 = vadd.f32 %v4693, %v4781
      %v4783 = vpop.f32.mrf.mxu0
      %v4784 = vadd.f32 %v4695, %v4783
      %4785 = vmatmul.bf16.gmra.mxu0 %v2508
      %v4786 = vpop.f32.mrf.mxu0
      %v4787 = vadd.f32 %v4698, %v4786
      %v4788 = vpop.f32.mrf.mxu0
      %v4789 = vadd.f32 %v4700, %v4788
      %4790 = vmatmul.bf16.gmra.mxu0 %v2516
      %v4791 = vpop.f32.mrf.mxu0
      %v4792 = vadd.f32 %v4703, %v4791
      %v4793 = vpop.f32.mrf.mxu0
      %v4794 = vadd.f32 %v4705, %v4793
      %4795 = vdwg.mxu0
      %4796 = vmatpush.bf16.msra.mxu0 %v3796
      %4797 = vmatpush.bf16.msra.mxu0 %v3795
      %4798 = vmatpush.bf16.msra.mxu0 %v3794
      %4799 = vmatpush.bf16.msra.mxu0 %v3793
      %4800 = vmatpush.bf16.msra.mxu0 %v3792
      %4801 = vmatpush.bf16.msra.mxu0 %v3791
      %4802 = vmatpush.bf16.msra.mxu0 %v3790
      %4803 = vmatpush.bf16.msra.mxu0 %v3789
      %4804 = vmatmul.bf16.gmra.mxu0 %v2398
      %v4805 = vpop.f32.mrf.mxu0
      %v4806 = vadd.f32 %v4717, %v4805
      %v4807 = vpop.f32.mrf.mxu0
      %v4808 = vadd.f32 %v4719, %v4807
      %4809 = vmatmul.bf16.gmra.mxu0 %v2423
      %v4810 = vpop.f32.mrf.mxu0
      %v4811 = vadd.f32 %v4722, %v4810
      %v4812 = vpop.f32.mrf.mxu0
      %v4813 = vadd.f32 %v4724, %v4812
      %4814 = vmatmul.bf16.gmra.mxu0 %v2405
      %v4815 = vpop.f32.mrf.mxu0
      %v4816 = vadd.f32 %v4727, %v4815
      %v4817 = vpop.f32.mrf.mxu0
      %v4818 = vadd.f32 %v4729, %v4817
      %4819 = vmatmul.bf16.gmra.mxu0 %v2430
      %v4820 = vpop.f32.mrf.mxu0
      %v4821 = vadd.f32 %v4732, %v4820
      %v4822 = vpop.f32.mrf.mxu0
      %v4823 = vadd.f32 %v4734, %v4822
      %4824 = vmatmul.bf16.gmra.mxu0 %v2412
      %v4825 = vpop.f32.mrf.mxu0
      %v4826 = vadd.f32 %v4737, %v4825
      %v4827 = vpop.f32.mrf.mxu0
      %v4828 = vadd.f32 %v4739, %v4827
      %4829 = vmatmul.bf16.gmra.mxu0 %v2437
      %v4830 = vpop.f32.mrf.mxu0
      %v4831 = vadd.f32 %v4742, %v4830
      %v4832 = vpop.f32.mrf.mxu0
      %v4833 = vadd.f32 %v4744, %v4832
      %4834 = vmatmul.bf16.gmra.mxu0 %v2445
      %v4835 = vpop.f32.mrf.mxu0
      %v4836 = vadd.f32 %v4747, %v4835
      %v4837 = vpop.f32.mrf.mxu0
      %v4838 = vadd.f32 %v4749, %v4837
      %4839 = vmatmul.bf16.gmra.mxu0 %v2453
      %v4840 = vpop.f32.mrf.mxu0
      %v4841 = vadd.f32 %v4752, %v4840
      %v4842 = vpop.f32.mrf.mxu0
      %v4843 = vadd.f32 %v4754, %v4842
      %4844 = vmatmul.bf16.gmra.mxu0 %v2461
      %v4845 = vpop.f32.mrf.mxu0
      %v4846 = vadd.f32 %v4757, %v4845
      %v4847 = vpop.f32.mrf.mxu0
      %v4848 = vadd.f32 %v4759, %v4847
      %4849 = vmatmul.bf16.gmra.mxu0 %v2469
      %v4850 = vpop.f32.mrf.mxu0
      %v4851 = vadd.f32 %v4762, %v4850
      %v4852 = vpop.f32.mrf.mxu0
      %v4853 = vadd.f32 %v4764, %v4852
      %4854 = vmatmul.bf16.gmra.mxu0 %v2477
      %v4855 = vpop.f32.mrf.mxu0
      %v4856 = vadd.f32 %v4767, %v4855
      %v4857 = vpop.f32.mrf.mxu0
      %v4858 = vadd.f32 %v4769, %v4857
      %4859 = vmatmul.bf16.gmra.mxu0 %v2485
      %v4860 = vpop.f32.mrf.mxu0
      %v4861 = vadd.f32 %v4772, %v4860
      %v4862 = vpop.f32.mrf.mxu0
      %v4863 = vadd.f32 %v4774, %v4862
      %4864 = vmatmul.bf16.gmra.mxu0 %v2493
      %v4865 = vpop.f32.mrf.mxu0
      %v4866 = vadd.f32 %v4777, %v4865
      %v4867 = vpop.f32.mrf.mxu0
      %v4868 = vadd.f32 %v4779, %v4867
      %4869 = vmatmul.bf16.gmra.mxu0 %v2501
      %v4870 = vpop.f32.mrf.mxu0
      %v4871 = vadd.f32 %v4782, %v4870
      %v4872 = vpop.f32.mrf.mxu0
      %v4873 = vadd.f32 %v4784, %v4872
      %4874 = vmatmul.bf16.gmra.mxu0 %v2509
      %v4875 = vpop.f32.mrf.mxu0
      %v4876 = vadd.f32 %v4787, %v4875
      %v4877 = vpop.f32.mrf.mxu0
      %v4878 = vadd.f32 %v4789, %v4877
      %4879 = vmatmul.bf16.gmra.mxu0 %v2517
      %v4880 = vpop.f32.mrf.mxu0
      %v4881 = vadd.f32 %v4792, %v4880
      %v4882 = vpop.f32.mrf.mxu0
      %v4883 = vadd.f32 %v4794, %v4882
      %4884 = vdwg.mxu0
      %4885 = vmatpush.bf16.msra.mxu0 %v3804
      %4886 = vmatpush.bf16.msra.mxu0 %v3803
      %4887 = vmatpush.bf16.msra.mxu0 %v3802
      %4888 = vmatpush.bf16.msra.mxu0 %v3801
      %4889 = vmatpush.bf16.msra.mxu0 %v3800
      %4890 = vmatpush.bf16.msra.mxu0 %v3799
      %4891 = vmatpush.bf16.msra.mxu0 %v3798
      %4892 = vmatpush.bf16.msra.mxu0 %v3797
      %4893 = vmatmul.bf16.gmra.mxu0 %v2399
      %v4894 = vpop.f32.mrf.mxu0
      %v4895 = vadd.f32 %v4806, %v4894
      %v4896 = vpop.f32.mrf.mxu0
      %v4897 = vadd.f32 %v4808, %v4896
      %4898 = vmatmul.bf16.gmra.mxu0 %v2424
      %v4899 = vpop.f32.mrf.mxu0
      %v4900 = vadd.f32 %v4811, %v4899
      %v4901 = vpop.f32.mrf.mxu0
      %v4902 = vadd.f32 %v4813, %v4901
      %4903 = vmatmul.bf16.gmra.mxu0 %v2406
      %v4904 = vpop.f32.mrf.mxu0
      %v4905 = vadd.f32 %v4816, %v4904
      %v4906 = vpop.f32.mrf.mxu0
      %v4907 = vadd.f32 %v4818, %v4906
      %4908 = vmatmul.bf16.gmra.mxu0 %v2431
      %v4909 = vpop.f32.mrf.mxu0
      %v4910 = vadd.f32 %v4821, %v4909
      %v4911 = vpop.f32.mrf.mxu0
      %v4912 = vadd.f32 %v4823, %v4911
      %4913 = vmatmul.bf16.gmra.mxu0 %v2413
      %v4914 = vpop.f32.mrf.mxu0
      %v4915 = vadd.f32 %v4826, %v4914
      %v4916 = vpop.f32.mrf.mxu0
      %v4917 = vadd.f32 %v4828, %v4916
      %4918 = vmatmul.bf16.gmra.mxu0 %v2438
      %v4919 = vpop.f32.mrf.mxu0
      %v4920 = vadd.f32 %v4831, %v4919
      %v4921 = vpop.f32.mrf.mxu0
      %v4922 = vadd.f32 %v4833, %v4921
      %4923 = vmatmul.bf16.gmra.mxu0 %v2446
      %v4924 = vpop.f32.mrf.mxu0
      %v4925 = vadd.f32 %v4836, %v4924
      %v4926 = vpop.f32.mrf.mxu0
      %v4927 = vadd.f32 %v4838, %v4926
      %4928 = vmatmul.bf16.gmra.mxu0 %v2454
      %v4929 = vpop.f32.mrf.mxu0
      %v4930 = vadd.f32 %v4841, %v4929
      %v4931 = vpop.f32.mrf.mxu0
      %v4932 = vadd.f32 %v4843, %v4931
      %4933 = vmatmul.bf16.gmra.mxu0 %v2462
      %v4934 = vpop.f32.mrf.mxu0
      %v4935 = vadd.f32 %v4846, %v4934
      %v4936 = vpop.f32.mrf.mxu0
      %v4937 = vadd.f32 %v4848, %v4936
      %4938 = vmatmul.bf16.gmra.mxu0 %v2470
      %v4939 = vpop.f32.mrf.mxu0
      %v4940 = vadd.f32 %v4851, %v4939
      %v4941 = vpop.f32.mrf.mxu0
      %v4942 = vadd.f32 %v4853, %v4941
      %4943 = vmatmul.bf16.gmra.mxu0 %v2478
      %v4944 = vpop.f32.mrf.mxu0
      %v4945 = vadd.f32 %v4856, %v4944
      %v4946 = vpop.f32.mrf.mxu0
      %v4947 = vadd.f32 %v4858, %v4946
      %4948 = vmatmul.bf16.gmra.mxu0 %v2486
      %v4949 = vpop.f32.mrf.mxu0
      %v4950 = vadd.f32 %v4861, %v4949
      %v4951 = vpop.f32.mrf.mxu0
      %v4952 = vadd.f32 %v4863, %v4951
      %4953 = vmatmul.bf16.gmra.mxu0 %v2494
      %v4954 = vpop.f32.mrf.mxu0
      %v4955 = vadd.f32 %v4866, %v4954
      %v4956 = vpop.f32.mrf.mxu0
      %v4957 = vadd.f32 %v4868, %v4956
      %4958 = vmatmul.bf16.gmra.mxu0 %v2502
      %v4959 = vpop.f32.mrf.mxu0
      %v4960 = vadd.f32 %v4871, %v4959
      %v4961 = vpop.f32.mrf.mxu0
      %v4962 = vadd.f32 %v4873, %v4961
      %4963 = vmatmul.bf16.gmra.mxu0 %v2510
      %v4964 = vpop.f32.mrf.mxu0
      %v4965 = vadd.f32 %v4876, %v4964
      %v4966 = vpop.f32.mrf.mxu0
      %v4967 = vadd.f32 %v4878, %v4966
      %4968 = vmatmul.bf16.gmra.mxu0 %v2518
      %v4969 = vpop.f32.mrf.mxu0
      %v4970 = vadd.f32 %v4881, %v4969
      %v4971 = vpop.f32.mrf.mxu0
      %v4972 = vadd.f32 %v4883, %v4971
      %4973 = vdwg.mxu0
      %4974 = vmatpush.bf16.msra.mxu0 %v3812
      %4975 = vmatpush.bf16.msra.mxu0 %v3811
      %4976 = vmatpush.bf16.msra.mxu0 %v3810
      %4977 = vmatpush.bf16.msra.mxu0 %v3809
      %4978 = vmatpush.bf16.msra.mxu0 %v3808
      %4979 = vmatpush.bf16.msra.mxu0 %v3807
      %4980 = vmatpush.bf16.msra.mxu0 %v3806
      %4981 = vmatpush.bf16.msra.mxu0 %v3805
      %4982 = vmatmul.bf16.gmra.mxu0 %v2400
      %v4983 = vpop.f32.mrf.mxu0
      %v4984 = vadd.f32 %v4895, %v4983
      %v4985 = vpop.f32.mrf.mxu0
      %v4986 = vadd.f32 %v4897, %v4985
      %4987 = vmatmul.bf16.gmra.mxu0 %v2425
      %v4988 = vpop.f32.mrf.mxu0
      %v4989 = vadd.f32 %v4900, %v4988
      %v4990 = vpop.f32.mrf.mxu0
      %v4991 = vadd.f32 %v4902, %v4990
      %4992 = vmatmul.bf16.gmra.mxu0 %v2407
      %v4993 = vpop.f32.mrf.mxu0
      %v4994 = vadd.f32 %v4905, %v4993
      %v4995 = vpop.f32.mrf.mxu0
      %v4996 = vadd.f32 %v4907, %v4995
      %4997 = vmatmul.bf16.gmra.mxu0 %v2432
      %v4998 = vpop.f32.mrf.mxu0
      %v4999 = vadd.f32 %v4910, %v4998
      %v5000 = vpop.f32.mrf.mxu0
      %v5001 = vadd.f32 %v4912, %v5000
      %5002 = vmatmul.bf16.gmra.mxu0 %v2414
      %v5003 = vpop.f32.mrf.mxu0
      %v5004 = vadd.f32 %v4915, %v5003
      %v5005 = vpop.f32.mrf.mxu0
      %v5006 = vadd.f32 %v4917, %v5005
      %5007 = vmatmul.bf16.gmra.mxu0 %v2439
      %v5008 = vpop.f32.mrf.mxu0
      %v5009 = vadd.f32 %v4920, %v5008
      %v5010 = vpop.f32.mrf.mxu0
      %v5011 = vadd.f32 %v4922, %v5010
      %5012 = vmatmul.bf16.gmra.mxu0 %v2447
      %v5013 = vpop.f32.mrf.mxu0
      %v5014 = vadd.f32 %v4925, %v5013
      %v5015 = vpop.f32.mrf.mxu0
      %v5016 = vadd.f32 %v4927, %v5015
      %5017 = vmatmul.bf16.gmra.mxu0 %v2455
      %v5018 = vpop.f32.mrf.mxu0
      %v5019 = vadd.f32 %v4930, %v5018
      %v5020 = vpop.f32.mrf.mxu0
      %v5021 = vadd.f32 %v4932, %v5020
      %5022 = vmatmul.bf16.gmra.mxu0 %v2463
      %v5023 = vpop.f32.mrf.mxu0
      %v5024 = vadd.f32 %v4935, %v5023
      %v5025 = vpop.f32.mrf.mxu0
      %v5026 = vadd.f32 %v4937, %v5025
      %5027 = vmatmul.bf16.gmra.mxu0 %v2471
      %v5028 = vpop.f32.mrf.mxu0
      %v5029 = vadd.f32 %v4940, %v5028
      %v5030 = vpop.f32.mrf.mxu0
      %v5031 = vadd.f32 %v4942, %v5030
      %5032 = vmatmul.bf16.gmra.mxu0 %v2479
      %v5033 = vpop.f32.mrf.mxu0
      %v5034 = vadd.f32 %v4945, %v5033
      %v5035 = vpop.f32.mrf.mxu0
      %v5036 = vadd.f32 %v4947, %v5035
      %5037 = vmatmul.bf16.gmra.mxu0 %v2487
      %v5038 = vpop.f32.mrf.mxu0
      %v5039 = vadd.f32 %v4950, %v5038
      %v5040 = vpop.f32.mrf.mxu0
      %v5041 = vadd.f32 %v4952, %v5040
      %5042 = vmatmul.bf16.gmra.mxu0 %v2495
      %v5043 = vpop.f32.mrf.mxu0
      %v5044 = vadd.f32 %v4955, %v5043
      %v5045 = vpop.f32.mrf.mxu0
      %v5046 = vadd.f32 %v4957, %v5045
      %5047 = vmatmul.bf16.gmra.mxu0 %v2503
      %v5048 = vpop.f32.mrf.mxu0
      %v5049 = vadd.f32 %v4960, %v5048
      %v5050 = vpop.f32.mrf.mxu0
      %v5051 = vadd.f32 %v4962, %v5050
      %5052 = vmatmul.bf16.gmra.mxu0 %v2511
      %v5053 = vpop.f32.mrf.mxu0
      %v5054 = vadd.f32 %v4965, %v5053
      %v5055 = vpop.f32.mrf.mxu0
      %v5056 = vadd.f32 %v4967, %v5055
      %5057 = vmatmul.bf16.gmra.mxu0 %v2519
      %v5058 = vpop.f32.mrf.mxu0
      %v5059 = vadd.f32 %v4970, %v5058
      %v5060 = vpop.f32.mrf.mxu0
      %v5061 = vadd.f32 %v4972, %v5060
      %5062 = vdwg.mxu0
      %5063 = vmatpush.bf16.msra.mxu0 %v3820
      %5064 = vmatpush.bf16.msra.mxu0 %v3819
      %5065 = vmatpush.bf16.msra.mxu0 %v3818
      %5066 = vmatpush.bf16.msra.mxu0 %v3817
      %5067 = vmatpush.bf16.msra.mxu0 %v3816
      %5068 = vmatpush.bf16.msra.mxu0 %v3815
      %5069 = vmatpush.bf16.msra.mxu0 %v3814
      %5070 = vmatpush.bf16.msra.mxu0 %v3813
      %5071 = vmatmul.bf16.gmra.mxu0 %v2401
      %v5072 = vpop.f32.mrf.mxu0
      %v5073 = vadd.f32 %v4984, %v5072
      %v5074 = vpop.f32.mrf.mxu0
      %v5075 = vadd.f32 %v4986, %v5074
      %5076 = vmatmul.bf16.gmra.mxu0 %v2426
      %v5077 = vpop.f32.mrf.mxu0
      %v5078 = vadd.f32 %v4989, %v5077
      %v5079 = vpop.f32.mrf.mxu0
      %v5080 = vadd.f32 %v4991, %v5079
      %5081 = vmatmul.bf16.gmra.mxu0 %v2408
      %v5082 = vpop.f32.mrf.mxu0
      %v5083 = vadd.f32 %v4994, %v5082
      %v5084 = vpop.f32.mrf.mxu0
      %v5085 = vadd.f32 %v4996, %v5084
      %5086 = vmatmul.bf16.gmra.mxu0 %v2433
      %v5087 = vpop.f32.mrf.mxu0
      %v5088 = vadd.f32 %v4999, %v5087
      %v5089 = vpop.f32.mrf.mxu0
      %v5090 = vadd.f32 %v5001, %v5089
      %5091 = vmatmul.bf16.gmra.mxu0 %v2441
      %v5092 = vpop.f32.mrf.mxu0
      %v5093 = vadd.f32 %v5004, %v5092
      %v5094 = vpop.f32.mrf.mxu0
      %v5095 = vadd.f32 %v5006, %v5094
      %5096 = vmatmul.bf16.gmra.mxu0 %v2449
      %v5097 = vpop.f32.mrf.mxu0
      %v5098 = vadd.f32 %v5009, %v5097
      %v5099 = vpop.f32.mrf.mxu0
      %v5100 = vadd.f32 %v5011, %v5099
      %5101 = vmatmul.bf16.gmra.mxu0 %v2457
      %v5102 = vpop.f32.mrf.mxu0
      %v5103 = vadd.f32 %v5014, %v5102
      %v5104 = vpop.f32.mrf.mxu0
      %v5105 = vadd.f32 %v5016, %v5104
      %5106 = vmatmul.bf16.gmra.mxu0 %v2465
      %v5107 = vpop.f32.mrf.mxu0
      %v5108 = vadd.f32 %v5019, %v5107
      %v5109 = vpop.f32.mrf.mxu0
      %v5110 = vadd.f32 %v5021, %v5109
      %5111 = vmatmul.bf16.gmra.mxu0 %v2473
      %v5112 = vpop.f32.mrf.mxu0
      %v5113 = vadd.f32 %v5024, %v5112
      %v5114 = vpop.f32.mrf.mxu0
      %v5115 = vadd.f32 %v5026, %v5114
      %5116 = vmatmul.bf16.gmra.mxu0 %v2481
      %v5117 = vpop.f32.mrf.mxu0
      %v5118 = vadd.f32 %v5029, %v5117
      %v5119 = vpop.f32.mrf.mxu0
      %v5120 = vadd.f32 %v5031, %v5119
      %5121 = vmatmul.bf16.gmra.mxu0 %v2489
      %v5122 = vpop.f32.mrf.mxu0
      %v5123 = vadd.f32 %v5034, %v5122
      %v5124 = vpop.f32.mrf.mxu0
      %v5125 = vadd.f32 %v5036, %v5124
      %5126 = vmatmul.bf16.gmra.mxu0 %v2497
      %v5127 = vpop.f32.mrf.mxu0
      %v5128 = vadd.f32 %v5039, %v5127
      %v5129 = vpop.f32.mrf.mxu0
      %v5130 = vadd.f32 %v5041, %v5129
      %5131 = vmatmul.bf16.gmra.mxu0 %v2505
      %v5132 = vpop.f32.mrf.mxu0
      %v5133 = vadd.f32 %v5044, %v5132
      %v5134 = vpop.f32.mrf.mxu0
      %v5135 = vadd.f32 %v5046, %v5134
      %5136 = vmatmul.bf16.gmra.mxu0 %v2513
      %v5137 = vpop.f32.mrf.mxu0
      %v5138 = vadd.f32 %v5049, %v5137
      %v5139 = vpop.f32.mrf.mxu0
      %v5140 = vadd.f32 %v5051, %v5139
      %5141 = vmatmul.bf16.gmra.mxu0 %v2521
      %v5142 = vpop.f32.mrf.mxu0
      %v5143 = vadd.f32 %v5054, %v5142
      %v5144 = vpop.f32.mrf.mxu0
      %v5145 = vadd.f32 %v5056, %v5144
      %5146 = vmatmul.bf16.gmra.mxu0 %v2529
      %v5147 = vpop.f32.mrf.mxu0
      %v5148 = vadd.f32 %v5059, %v5147
      %v5149 = vpop.f32.mrf.mxu0
      %v5150 = vadd.f32 %v5061, %v5149
      %5151 = vdwg.mxu0
      %5152 = vmatpush.bf16.msra.mxu0 %v3828
      %5153 = vmatpush.bf16.msra.mxu0 %v3827
      %5154 = vmatpush.bf16.msra.mxu0 %v3826
      %5155 = vmatpush.bf16.msra.mxu0 %v3825
      %5156 = vmatpush.bf16.msra.mxu0 %v3824
      %5157 = vmatpush.bf16.msra.mxu0 %v3823
      %5158 = vmatpush.bf16.msra.mxu0 %v3822
      %5159 = vmatpush.bf16.msra.mxu0 %v3821
      %5160 = vmatmul.bf16.gmra.mxu0 %v2402
      %v5161 = vpop.f32.mrf.mxu0
      %v5162 = vadd.f32 %v5073, %v5161
      %v5163 = vpop.f32.mrf.mxu0
      %v5164 = vadd.f32 %v5075, %v5163
      %5165 = vmatmul.bf16.gmra.mxu0 %v2427
      %v5166 = vpop.f32.mrf.mxu0
      %v5167 = vadd.f32 %v5078, %v5166
      %v5168 = vpop.f32.mrf.mxu0
      %v5169 = vadd.f32 %v5080, %v5168
      %5170 = vmatmul.bf16.gmra.mxu0 %v2409
      %v5171 = vpop.f32.mrf.mxu0
      %v5172 = vadd.f32 %v5083, %v5171
      %v5173 = vpop.f32.mrf.mxu0
      %v5174 = vadd.f32 %v5085, %v5173
      %5175 = vmatmul.bf16.gmra.mxu0 %v2434
      %v5176 = vpop.f32.mrf.mxu0
      %v5177 = vadd.f32 %v5088, %v5176
      %v5178 = vpop.f32.mrf.mxu0
      %v5179 = vadd.f32 %v5090, %v5178
      %5180 = vmatmul.bf16.gmra.mxu0 %v2442
      %v5181 = vpop.f32.mrf.mxu0
      %v5182 = vadd.f32 %v5093, %v5181
      %v5183 = vpop.f32.mrf.mxu0
      %v5184 = vadd.f32 %v5095, %v5183
      %5185 = vmatmul.bf16.gmra.mxu0 %v2450
      %v5186 = vpop.f32.mrf.mxu0
      %v5187 = vadd.f32 %v5098, %v5186
      %v5188 = vpop.f32.mrf.mxu0
      %v5189 = vadd.f32 %v5100, %v5188
      %5190 = vmatmul.bf16.gmra.mxu0 %v2458
      %v5191 = vpop.f32.mrf.mxu0
      %v5192 = vadd.f32 %v5103, %v5191
      %v5193 = vpop.f32.mrf.mxu0
      %v5194 = vadd.f32 %v5105, %v5193
      %5195 = vmatmul.bf16.gmra.mxu0 %v2466
      %v5196 = vpop.f32.mrf.mxu0
      %v5197 = vadd.f32 %v5108, %v5196
      %v5198 = vpop.f32.mrf.mxu0
      %v5199 = vadd.f32 %v5110, %v5198
      %5200 = vmatmul.bf16.gmra.mxu0 %v2474
      %v5201 = vpop.f32.mrf.mxu0
      %v5202 = vadd.f32 %v5113, %v5201
      %v5203 = vpop.f32.mrf.mxu0
      %v5204 = vadd.f32 %v5115, %v5203
      %5205 = vmatmul.bf16.gmra.mxu0 %v2482
      %v5206 = vpop.f32.mrf.mxu0
      %v5207 = vadd.f32 %v5118, %v5206
      %v5208 = vpop.f32.mrf.mxu0
      %v5209 = vadd.f32 %v5120, %v5208
      %5210 = vmatmul.bf16.gmra.mxu0 %v2490
      %v5211 = vpop.f32.mrf.mxu0
      %v5212 = vadd.f32 %v5123, %v5211
      %v5213 = vpop.f32.mrf.mxu0
      %v5214 = vadd.f32 %v5125, %v5213
      %5215 = vmatmul.bf16.gmra.mxu0 %v2498
      %v5216 = vpop.f32.mrf.mxu0
      %v5217 = vadd.f32 %v5128, %v5216
      %v5218 = vpop.f32.mrf.mxu0
      %v5219 = vadd.f32 %v5130, %v5218
      %5220 = vmatmul.bf16.gmra.mxu0 %v2506
      %v5221 = vpop.f32.mrf.mxu0
      %v5222 = vadd.f32 %v5133, %v5221
      %v5223 = vpop.f32.mrf.mxu0
      %v5224 = vadd.f32 %v5135, %v5223
      %5225 = vmatmul.bf16.gmra.mxu0 %v2514
      %v5226 = vpop.f32.mrf.mxu0
      %v5227 = vadd.f32 %v5138, %v5226
      %v5228 = vpop.f32.mrf.mxu0
      %v5229 = vadd.f32 %v5140, %v5228
      %5230 = vmatmul.bf16.gmra.mxu0 %v2522
      %v5231 = vpop.f32.mrf.mxu0
      %v5232 = vadd.f32 %v5143, %v5231
      %v5233 = vpop.f32.mrf.mxu0
      %v5234 = vadd.f32 %v5145, %v5233
      %5235 = vmatmul.bf16.gmra.mxu0 %v2530
      %v5236 = vpop.f32.mrf.mxu0
      %v5237 = vadd.f32 %v5148, %v5236
      %v5238 = vpop.f32.mrf.mxu0
      %v5239 = vadd.f32 %v5150, %v5238
      %5240 = vdwg.mxu0
      %5241 = vmatpush.bf16.msra.mxu0 %v3836
      %5242 = vmatpush.bf16.msra.mxu0 %v3835
      %5243 = vmatpush.bf16.msra.mxu0 %v3834
      %5244 = vmatpush.bf16.msra.mxu0 %v3833
      %5245 = vmatpush.bf16.msra.mxu0 %v3832
      %5246 = vmatpush.bf16.msra.mxu0 %v3831
      %5247 = vmatpush.bf16.msra.mxu0 %v3830
      %5248 = vmatpush.bf16.msra.mxu0 %v3829
      %5249 = vmatmul.bf16.gmra.mxu0 %v2403
      %v5250 = vpop.f32.mrf.mxu0
      %v5251 = vadd.f32 %v5162, %v5250
      %v5252 = vpop.f32.mrf.mxu0
      %v5253 = vadd.f32 %v5164, %v5252
      %5254 = vmatmul.bf16.gmra.mxu0 %v2428
      %v5255 = vpop.f32.mrf.mxu0
      %v5256 = vadd.f32 %v5167, %v5255
      %v5257 = vpop.f32.mrf.mxu0
      %v5258 = vadd.f32 %v5169, %v5257
      %5259 = vmatmul.bf16.gmra.mxu0 %v2410
      %v5260 = vpop.f32.mrf.mxu0
      %v5261 = vadd.f32 %v5172, %v5260
      %v5262 = vpop.f32.mrf.mxu0
      %v5263 = vadd.f32 %v5174, %v5262
      %5264 = vmatmul.bf16.gmra.mxu0 %v2435
      %v5265 = vpop.f32.mrf.mxu0
      %v5266 = vadd.f32 %v5177, %v5265
      %v5267 = vpop.f32.mrf.mxu0
      %v5268 = vadd.f32 %v5179, %v5267
      %5269 = vmatmul.bf16.gmra.mxu0 %v2443
      %v5270 = vpop.f32.mrf.mxu0
      %v5271 = vadd.f32 %v5182, %v5270
      %v5272 = vpop.f32.mrf.mxu0
      %v5273 = vadd.f32 %v5184, %v5272
      %5274 = vmatmul.bf16.gmra.mxu0 %v2451
      %v5275 = vpop.f32.mrf.mxu0
      %v5276 = vadd.f32 %v5187, %v5275
      %v5277 = vpop.f32.mrf.mxu0
      %v5278 = vadd.f32 %v5189, %v5277
      %5279 = vmatmul.bf16.gmra.mxu0 %v2459
      %v5280 = vpop.f32.mrf.mxu0
      %v5281 = vadd.f32 %v5192, %v5280
      %v5282 = vpop.f32.mrf.mxu0
      %v5283 = vadd.f32 %v5194, %v5282
      %5284 = vmatmul.bf16.gmra.mxu0 %v2467
      %v5285 = vpop.f32.mrf.mxu0
      %v5286 = vadd.f32 %v5197, %v5285
      %v5287 = vpop.f32.mrf.mxu0
      %v5288 = vadd.f32 %v5199, %v5287
      %5289 = vmatmul.bf16.gmra.mxu0 %v2475
      %v5290 = vpop.f32.mrf.mxu0
      %v5291 = vadd.f32 %v5202, %v5290
      %v5292 = vpop.f32.mrf.mxu0
      %v5293 = vadd.f32 %v5204, %v5292
      %5294 = vmatmul.bf16.gmra.mxu0 %v2483
      %v5295 = vpop.f32.mrf.mxu0
      %v5296 = vadd.f32 %v5207, %v5295
      %v5297 = vpop.f32.mrf.mxu0
      %v5298 = vadd.f32 %v5209, %v5297
      %5299 = vmatmul.bf16.gmra.mxu0 %v2491
      %v5300 = vpop.f32.mrf.mxu0
      %v5301 = vadd.f32 %v5212, %v5300
      %v5302 = vpop.f32.mrf.mxu0
      %v5303 = vadd.f32 %v5214, %v5302
      %5304 = vmatmul.bf16.gmra.mxu0 %v2499
      %v5305 = vpop.f32.mrf.mxu0
      %v5306 = vadd.f32 %v5217, %v5305
      %v5307 = vpop.f32.mrf.mxu0
      %v5308 = vadd.f32 %v5219, %v5307
      %5309 = vmatmul.bf16.gmra.mxu0 %v2507
      %v5310 = vpop.f32.mrf.mxu0
      %v5311 = vadd.f32 %v5222, %v5310
      %v5312 = vpop.f32.mrf.mxu0
      %v5313 = vadd.f32 %v5224, %v5312
      %5314 = vmatmul.bf16.gmra.mxu0 %v2515
      %v5315 = vpop.f32.mrf.mxu0
      %v5316 = vadd.f32 %v5227, %v5315
      %v5317 = vpop.f32.mrf.mxu0
      %v5318 = vadd.f32 %v5229, %v5317
      %5319 = vmatmul.bf16.gmra.mxu0 %v2523
      %v5320 = vpop.f32.mrf.mxu0
      %v5321 = vadd.f32 %v5232, %v5320
      %v5322 = vpop.f32.mrf.mxu0
      %v5323 = vadd.f32 %v5234, %v5322
      %5324 = vmatmul.bf16.gmra.mxu0 %v2531
      %v5325 = vpop.f32.mrf.mxu0
      %v5326 = vadd.f32 %v5237, %v5325
      %v5327 = vpop.f32.mrf.mxu0
      %v5328 = vadd.f32 %v5239, %v5327
      %5329 = vdwg.mxu0
      %5330 = vmatpush.bf16.msra.mxu0 %v3844
      %5331 = vmatpush.bf16.msra.mxu0 %v3843
      %5332 = vmatpush.bf16.msra.mxu0 %v3842
      %5333 = vmatpush.bf16.msra.mxu0 %v3841
      %5334 = vmatpush.bf16.msra.mxu0 %v3840
      %5335 = vmatpush.bf16.msra.mxu0 %v3839
      %5336 = vmatpush.bf16.msra.mxu0 %v3838
      %5337 = vmatpush.bf16.msra.mxu0 %v3837
      %5338 = vmatmul.bf16.gmra.mxu0 %v2404
      %v5339 = vpop.f32.mrf.mxu0
      %v5340 = vadd.f32 %v5251, %v5339
      %v5341 = vpop.f32.mrf.mxu0
      %v5342 = vadd.f32 %v5253, %v5341
      %5343 = vmatmul.bf16.gmra.mxu0 %v2429
      %v5344 = vpop.f32.mrf.mxu0
      %v5345 = vadd.f32 %v5256, %v5344
      %v5346 = vpop.f32.mrf.mxu0
      %v5347 = vadd.f32 %v5258, %v5346
      %5348 = vmatmul.bf16.gmra.mxu0 %v2411
      %v5349 = vpop.f32.mrf.mxu0
      %v5350 = vadd.f32 %v5261, %v5349
      %v5351 = vpop.f32.mrf.mxu0
      %v5352 = vadd.f32 %v5263, %v5351
      %5353 = vmatmul.bf16.gmra.mxu0 %v2436
      %v5354 = vpop.f32.mrf.mxu0
      %v5355 = vadd.f32 %v5266, %v5354
      %v5356 = vpop.f32.mrf.mxu0
      %v5357 = vadd.f32 %v5268, %v5356
      %5358 = vmatmul.bf16.gmra.mxu0 %v2444
      %v5359 = vpop.f32.mrf.mxu0
      %v5360 = vadd.f32 %v5271, %v5359
      %v5361 = vpop.f32.mrf.mxu0
      %v5362 = vadd.f32 %v5273, %v5361
      %5363 = vmatmul.bf16.gmra.mxu0 %v2452
      %v5364 = vpop.f32.mrf.mxu0
      %v5365 = vadd.f32 %v5276, %v5364
      %v5366 = vpop.f32.mrf.mxu0
      %v5367 = vadd.f32 %v5278, %v5366
      %5368 = vmatmul.bf16.gmra.mxu0 %v2460
      %v5369 = vpop.f32.mrf.mxu0
      %v5370 = vadd.f32 %v5281, %v5369
      %v5371 = vpop.f32.mrf.mxu0
      %v5372 = vadd.f32 %v5283, %v5371
      %5373 = vmatmul.bf16.gmra.mxu0 %v2468
      %v5374 = vpop.f32.mrf.mxu0
      %v5375 = vadd.f32 %v5286, %v5374
      %v5376 = vpop.f32.mrf.mxu0
      %v5377 = vadd.f32 %v5288, %v5376
      %5378 = vmatmul.bf16.gmra.mxu0 %v2476
      %v5379 = vpop.f32.mrf.mxu0
      %v5380 = vadd.f32 %v5291, %v5379
      %v5381 = vpop.f32.mrf.mxu0
      %v5382 = vadd.f32 %v5293, %v5381
      %5383 = vmatmul.bf16.gmra.mxu0 %v2484
      %v5384 = vpop.f32.mrf.mxu0
      %v5385 = vadd.f32 %v5296, %v5384
      %v5386 = vpop.f32.mrf.mxu0
      %v5387 = vadd.f32 %v5298, %v5386
      %5388 = vmatmul.bf16.gmra.mxu0 %v2492
      %v5389 = vpop.f32.mrf.mxu0
      %v5390 = vadd.f32 %v5301, %v5389
      %v5391 = vpop.f32.mrf.mxu0
      %v5392 = vadd.f32 %v5303, %v5391
      %5393 = vmatmul.bf16.gmra.mxu0 %v2500
      %v5394 = vpop.f32.mrf.mxu0
      %v5395 = vadd.f32 %v5306, %v5394
      %v5396 = vpop.f32.mrf.mxu0
      %v5397 = vadd.f32 %v5308, %v5396
      %5398 = vmatmul.bf16.gmra.mxu0 %v2508
      %v5399 = vpop.f32.mrf.mxu0
      %v5400 = vadd.f32 %v5311, %v5399
      %v5401 = vpop.f32.mrf.mxu0
      %v5402 = vadd.f32 %v5313, %v5401
      %5403 = vmatmul.bf16.gmra.mxu0 %v2516
      %v5404 = vpop.f32.mrf.mxu0
      %v5405 = vadd.f32 %v5316, %v5404
      %v5406 = vpop.f32.mrf.mxu0
      %v5407 = vadd.f32 %v5318, %v5406
      %5408 = vmatmul.bf16.gmra.mxu0 %v2524
      %v5409 = vpop.f32.mrf.mxu0
      %v5410 = vadd.f32 %v5321, %v5409
      %v5411 = vpop.f32.mrf.mxu0
      %v5412 = vadd.f32 %v5323, %v5411
      %5413 = vmatmul.bf16.gmra.mxu0 %v2532
      %v5414 = vpop.f32.mrf.mxu0
      %v5415 = vadd.f32 %v5326, %v5414
      %v5416 = vpop.f32.mrf.mxu0
      %v5417 = vadd.f32 %v5328, %v5416
      %5418 = vdwg.mxu0
      %5419 = vmatpush.bf16.msra.mxu0 %v3852
      %5420 = vmatpush.bf16.msra.mxu0 %v3851
      %5421 = vmatpush.bf16.msra.mxu0 %v3850
      %5422 = vmatpush.bf16.msra.mxu0 %v3849
      %5423 = vmatpush.bf16.msra.mxu0 %v3848
      %5424 = vmatpush.bf16.msra.mxu0 %v3847
      %5425 = vmatpush.bf16.msra.mxu0 %v3846
      %5426 = vmatpush.bf16.msra.mxu0 %v3845
      %5427 = vmatmul.bf16.gmra.mxu0 %v2405
      %v5428 = vpop.f32.mrf.mxu0
      %v5429 = vadd.f32 %v5340, %v5428
      %v5430 = vpop.f32.mrf.mxu0
      %v5431 = vadd.f32 %v5342, %v5430
      %5432 = vmatmul.bf16.gmra.mxu0 %v2430
      %v5433 = vpop.f32.mrf.mxu0
      %v5434 = vadd.f32 %v5345, %v5433
      %v5435 = vpop.f32.mrf.mxu0
      %v5436 = vadd.f32 %v5347, %v5435
      %5437 = vmatmul.bf16.gmra.mxu0 %v2412
      %v5438 = vpop.f32.mrf.mxu0
      %v5439 = vadd.f32 %v5350, %v5438
      %v5440 = vpop.f32.mrf.mxu0
      %v5441 = vadd.f32 %v5352, %v5440
      %5442 = vmatmul.bf16.gmra.mxu0 %v2437
      %v5443 = vpop.f32.mrf.mxu0
      %v5444 = vadd.f32 %v5355, %v5443
      %v5445 = vpop.f32.mrf.mxu0
      %v5446 = vadd.f32 %v5357, %v5445
      %5447 = vmatmul.bf16.gmra.mxu0 %v2445
      %v5448 = vpop.f32.mrf.mxu0
      %v5449 = vadd.f32 %v5360, %v5448
      %v5450 = vpop.f32.mrf.mxu0
      %v5451 = vadd.f32 %v5362, %v5450
      %5452 = vmatmul.bf16.gmra.mxu0 %v2453
      %v5453 = vpop.f32.mrf.mxu0
      %v5454 = vadd.f32 %v5365, %v5453
      %v5455 = vpop.f32.mrf.mxu0
      %v5456 = vadd.f32 %v5367, %v5455
      %5457 = vmatmul.bf16.gmra.mxu0 %v2461
      %v5458 = vpop.f32.mrf.mxu0
      %v5459 = vadd.f32 %v5370, %v5458
      %v5460 = vpop.f32.mrf.mxu0
      %v5461 = vadd.f32 %v5372, %v5460
      %5462 = vmatmul.bf16.gmra.mxu0 %v2469
      %v5463 = vpop.f32.mrf.mxu0
      %v5464 = vadd.f32 %v5375, %v5463
      %v5465 = vpop.f32.mrf.mxu0
      %v5466 = vadd.f32 %v5377, %v5465
      %5467 = vmatmul.bf16.gmra.mxu0 %v2477
      %v5468 = vpop.f32.mrf.mxu0
      %v5469 = vadd.f32 %v5380, %v5468
      %v5470 = vpop.f32.mrf.mxu0
      %v5471 = vadd.f32 %v5382, %v5470
      %5472 = vmatmul.bf16.gmra.mxu0 %v2485
      %v5473 = vpop.f32.mrf.mxu0
      %v5474 = vadd.f32 %v5385, %v5473
      %v5475 = vpop.f32.mrf.mxu0
      %v5476 = vadd.f32 %v5387, %v5475
      %5477 = vmatmul.bf16.gmra.mxu0 %v2493
      %v5478 = vpop.f32.mrf.mxu0
      %v5479 = vadd.f32 %v5390, %v5478
      %v5480 = vpop.f32.mrf.mxu0
      %v5481 = vadd.f32 %v5392, %v5480
      %5482 = vmatmul.bf16.gmra.mxu0 %v2501
      %v5483 = vpop.f32.mrf.mxu0
      %v5484 = vadd.f32 %v5395, %v5483
      %v5485 = vpop.f32.mrf.mxu0
      %v5486 = vadd.f32 %v5397, %v5485
      %5487 = vmatmul.bf16.gmra.mxu0 %v2509
      %v5488 = vpop.f32.mrf.mxu0
      %v5489 = vadd.f32 %v5400, %v5488
      %v5490 = vpop.f32.mrf.mxu0
      %v5491 = vadd.f32 %v5402, %v5490
      %5492 = vmatmul.bf16.gmra.mxu0 %v2517
      %v5493 = vpop.f32.mrf.mxu0
      %v5494 = vadd.f32 %v5405, %v5493
      %v5495 = vpop.f32.mrf.mxu0
      %v5496 = vadd.f32 %v5407, %v5495
      %5497 = vmatmul.bf16.gmra.mxu0 %v2525
      %v5498 = vpop.f32.mrf.mxu0
      %v5499 = vadd.f32 %v5410, %v5498
      %v5500 = vpop.f32.mrf.mxu0
      %v5501 = vadd.f32 %v5412, %v5500
      %5502 = vmatmul.bf16.gmra.mxu0 %v2533
      %v5503 = vpop.f32.mrf.mxu0
      %v5504 = vadd.f32 %v5415, %v5503
      %v5505 = vpop.f32.mrf.mxu0
      %v5506 = vadd.f32 %v5417, %v5505
      %5507 = vdwg.mxu0
      %5508 = vmatpush.bf16.msra.mxu0 %v3860
      %5509 = vmatpush.bf16.msra.mxu0 %v3859
      %5510 = vmatpush.bf16.msra.mxu0 %v3858
      %5511 = vmatpush.bf16.msra.mxu0 %v3857
      %5512 = vmatpush.bf16.msra.mxu0 %v3856
      %5513 = vmatpush.bf16.msra.mxu0 %v3855
      %5514 = vmatpush.bf16.msra.mxu0 %v3854
      %5515 = vmatpush.bf16.msra.mxu0 %v3853
      %5516 = vmatmul.bf16.gmra.mxu0 %v2406
      %v5517 = vpop.f32.mrf.mxu0
      %v5518 = vadd.f32 %v5429, %v5517
      %v5519 = vpop.f32.mrf.mxu0
      %v5520 = vadd.f32 %v5431, %v5519
      %5521 = vmatmul.bf16.gmra.mxu0 %v2431
      %v5522 = vpop.f32.mrf.mxu0
      %v5523 = vadd.f32 %v5434, %v5522
      %v5524 = vpop.f32.mrf.mxu0
      %v5525 = vadd.f32 %v5436, %v5524
      %5526 = vmatmul.bf16.gmra.mxu0 %v2413
      %v5527 = vpop.f32.mrf.mxu0
      %v5528 = vadd.f32 %v5439, %v5527
      %v5529 = vpop.f32.mrf.mxu0
      %v5530 = vadd.f32 %v5441, %v5529
      %5531 = vmatmul.bf16.gmra.mxu0 %v2438
      %v5532 = vpop.f32.mrf.mxu0
      %v5533 = vadd.f32 %v5444, %v5532
      %v5534 = vpop.f32.mrf.mxu0
      %v5535 = vadd.f32 %v5446, %v5534
      %5536 = vmatmul.bf16.gmra.mxu0 %v2446
      %v5537 = vpop.f32.mrf.mxu0
      %v5538 = vadd.f32 %v5449, %v5537
      %v5539 = vpop.f32.mrf.mxu0
      %v5540 = vadd.f32 %v5451, %v5539
      %5541 = vmatmul.bf16.gmra.mxu0 %v2454
      %v5542 = vpop.f32.mrf.mxu0
      %v5543 = vadd.f32 %v5454, %v5542
      %v5544 = vpop.f32.mrf.mxu0
      %v5545 = vadd.f32 %v5456, %v5544
      %5546 = vmatmul.bf16.gmra.mxu0 %v2462
      %v5547 = vpop.f32.mrf.mxu0
      %v5548 = vadd.f32 %v5459, %v5547
      %v5549 = vpop.f32.mrf.mxu0
      %v5550 = vadd.f32 %v5461, %v5549
      %5551 = vmatmul.bf16.gmra.mxu0 %v2470
      %v5552 = vpop.f32.mrf.mxu0
      %v5553 = vadd.f32 %v5464, %v5552
      %v5554 = vpop.f32.mrf.mxu0
      %v5555 = vadd.f32 %v5466, %v5554
      %5556 = vmatmul.bf16.gmra.mxu0 %v2478
      %v5557 = vpop.f32.mrf.mxu0
      %v5558 = vadd.f32 %v5469, %v5557
      %v5559 = vpop.f32.mrf.mxu0
      %v5560 = vadd.f32 %v5471, %v5559
      %5561 = vmatmul.bf16.gmra.mxu0 %v2486
      %v5562 = vpop.f32.mrf.mxu0
      %v5563 = vadd.f32 %v5474, %v5562
      %v5564 = vpop.f32.mrf.mxu0
      %v5565 = vadd.f32 %v5476, %v5564
      %5566 = vmatmul.bf16.gmra.mxu0 %v2494
      %v5567 = vpop.f32.mrf.mxu0
      %v5568 = vadd.f32 %v5479, %v5567
      %v5569 = vpop.f32.mrf.mxu0
      %v5570 = vadd.f32 %v5481, %v5569
      %5571 = vmatmul.bf16.gmra.mxu0 %v2502
      %v5572 = vpop.f32.mrf.mxu0
      %v5573 = vadd.f32 %v5484, %v5572
      %v5574 = vpop.f32.mrf.mxu0
      %v5575 = vadd.f32 %v5486, %v5574
      %5576 = vmatmul.bf16.gmra.mxu0 %v2510
      %v5577 = vpop.f32.mrf.mxu0
      %v5578 = vadd.f32 %v5489, %v5577
      %v5579 = vpop.f32.mrf.mxu0
      %v5580 = vadd.f32 %v5491, %v5579
      %5581 = vmatmul.bf16.gmra.mxu0 %v2518
      %v5582 = vpop.f32.mrf.mxu0
      %v5583 = vadd.f32 %v5494, %v5582
      %v5584 = vpop.f32.mrf.mxu0
      %v5585 = vadd.f32 %v5496, %v5584
      %5586 = vmatmul.bf16.gmra.mxu0 %v2526
      %v5587 = vpop.f32.mrf.mxu0
      %v5588 = vadd.f32 %v5499, %v5587
      %v5589 = vpop.f32.mrf.mxu0
      %v5590 = vadd.f32 %v5501, %v5589
      %5591 = vmatmul.bf16.gmra.mxu0 %v2534
      %v5592 = vpop.f32.mrf.mxu0
      %v5593 = vadd.f32 %v5504, %v5592
      %v5594 = vpop.f32.mrf.mxu0
      %v5595 = vadd.f32 %v5506, %v5594
      %5596 = vdwg.mxu0
      %5597 = vmatpush.bf16.msra.mxu0 %v3868
      %5598 = vmatpush.bf16.msra.mxu0 %v3867
      %5599 = vmatpush.bf16.msra.mxu0 %v3866
      %5600 = vmatpush.bf16.msra.mxu0 %v3865
      %5601 = vmatpush.bf16.msra.mxu0 %v3864
      %5602 = vmatpush.bf16.msra.mxu0 %v3863
      %5603 = vmatpush.bf16.msra.mxu0 %v3862
      %5604 = vmatpush.bf16.msra.mxu0 %v3861
      %5605 = vmatmul.bf16.gmra.mxu0 %v2407
      %v5606 = vpop.f32.mrf.mxu0
      %v5607 = vadd.f32 %v5518, %v5606
      %v5608 = vpop.f32.mrf.mxu0
      %v5609 = vadd.f32 %v5520, %v5608
      %5610 = vmatmul.bf16.gmra.mxu0 %v2432
      %v5611 = vpop.f32.mrf.mxu0
      %v5612 = vadd.f32 %v5523, %v5611
      %v5613 = vpop.f32.mrf.mxu0
      %v5614 = vadd.f32 %v5525, %v5613
      %5615 = vmatmul.bf16.gmra.mxu0 %v2414
      %v5616 = vpop.f32.mrf.mxu0
      %v5617 = vadd.f32 %v5528, %v5616
      %v5618 = vpop.f32.mrf.mxu0
      %v5619 = vadd.f32 %v5530, %v5618
      %5620 = vmatmul.bf16.gmra.mxu0 %v2439
      %v5621 = vpop.f32.mrf.mxu0
      %v5622 = vadd.f32 %v5533, %v5621
      %v5623 = vpop.f32.mrf.mxu0
      %v5624 = vadd.f32 %v5535, %v5623
      %5625 = vmatmul.bf16.gmra.mxu0 %v2447
      %v5626 = vpop.f32.mrf.mxu0
      %v5627 = vadd.f32 %v5538, %v5626
      %v5628 = vpop.f32.mrf.mxu0
      %v5629 = vadd.f32 %v5540, %v5628
      %5630 = vmatmul.bf16.gmra.mxu0 %v2455
      %v5631 = vpop.f32.mrf.mxu0
      %v5632 = vadd.f32 %v5543, %v5631
      %v5633 = vpop.f32.mrf.mxu0
      %v5634 = vadd.f32 %v5545, %v5633
      %5635 = vmatmul.bf16.gmra.mxu0 %v2463
      %v5636 = vpop.f32.mrf.mxu0
      %v5637 = vadd.f32 %v5548, %v5636
      %v5638 = vpop.f32.mrf.mxu0
      %v5639 = vadd.f32 %v5550, %v5638
      %5640 = vmatmul.bf16.gmra.mxu0 %v2471
      %v5641 = vpop.f32.mrf.mxu0
      %v5642 = vadd.f32 %v5553, %v5641
      %v5643 = vpop.f32.mrf.mxu0
      %v5644 = vadd.f32 %v5555, %v5643
      %5645 = vmatmul.bf16.gmra.mxu0 %v2479
      %v5646 = vpop.f32.mrf.mxu0
      %v5647 = vadd.f32 %v5558, %v5646
      %v5648 = vpop.f32.mrf.mxu0
      %v5649 = vadd.f32 %v5560, %v5648
      %5650 = vmatmul.bf16.gmra.mxu0 %v2487
      %v5651 = vpop.f32.mrf.mxu0
      %v5652 = vadd.f32 %v5563, %v5651
      %v5653 = vpop.f32.mrf.mxu0
      %v5654 = vadd.f32 %v5565, %v5653
      %5655 = vmatmul.bf16.gmra.mxu0 %v2495
      %v5656 = vpop.f32.mrf.mxu0
      %v5657 = vadd.f32 %v5568, %v5656
      %v5658 = vpop.f32.mrf.mxu0
      %v5659 = vadd.f32 %v5570, %v5658
      %5660 = vmatmul.bf16.gmra.mxu0 %v2503
      %v5661 = vpop.f32.mrf.mxu0
      %v5662 = vadd.f32 %v5573, %v5661
      %v5663 = vpop.f32.mrf.mxu0
      %v5664 = vadd.f32 %v5575, %v5663
      %5665 = vmatmul.bf16.gmra.mxu0 %v2511
      %v5666 = vpop.f32.mrf.mxu0
      %v5667 = vadd.f32 %v5578, %v5666
      %v5668 = vpop.f32.mrf.mxu0
      %v5669 = vadd.f32 %v5580, %v5668
      %5670 = vmatmul.bf16.gmra.mxu0 %v2519
      %v5671 = vpop.f32.mrf.mxu0
      %v5672 = vadd.f32 %v5583, %v5671
      %v5673 = vpop.f32.mrf.mxu0
      %v5674 = vadd.f32 %v5585, %v5673
      %5675 = vmatmul.bf16.gmra.mxu0 %v2527
      %v5676 = vpop.f32.mrf.mxu0
      %v5677 = vadd.f32 %v5588, %v5676
      %v5678 = vpop.f32.mrf.mxu0
      %v5679 = vadd.f32 %v5590, %v5678
      %5680 = vmatmul.bf16.gmra.mxu0 %v2535
      %v5681 = vpop.f32.mrf.mxu0
      %v5682 = vadd.f32 %v5593, %v5681
      %v5683 = vpop.f32.mrf.mxu0
      %v5684 = vadd.f32 %v5595, %v5683
      %5685 = vdwg.mxu0
      %5686 = vmatpush.bf16.msra.mxu0 %v3876
      %5687 = vmatpush.bf16.msra.mxu0 %v3875
      %5688 = vmatpush.bf16.msra.mxu0 %v3874
      %5689 = vmatpush.bf16.msra.mxu0 %v3873
      %5690 = vmatpush.bf16.msra.mxu0 %v3872
      %5691 = vmatpush.bf16.msra.mxu0 %v3871
      %5692 = vmatpush.bf16.msra.mxu0 %v3870
      %5693 = vmatpush.bf16.msra.mxu0 %v3869
      %5694 = vmatmul.bf16.gmra.mxu0 %v2408
      %v5695 = vpop.f32.mrf.mxu0
      %v5696 = vadd.f32 %v5607, %v5695
      %v5697 = vpop.f32.mrf.mxu0
      %v5698 = vadd.f32 %v5609, %v5697
      %5699 = vmatmul.bf16.gmra.mxu0 %v2433
      %v5700 = vpop.f32.mrf.mxu0
      %v5701 = vadd.f32 %v5612, %v5700
      %v5702 = vpop.f32.mrf.mxu0
      %v5703 = vadd.f32 %v5614, %v5702
      %5704 = vmatmul.bf16.gmra.mxu0 %v2441
      %v5705 = vpop.f32.mrf.mxu0
      %v5706 = vadd.f32 %v5617, %v5705
      %v5707 = vpop.f32.mrf.mxu0
      %v5708 = vadd.f32 %v5619, %v5707
      %5709 = vmatmul.bf16.gmra.mxu0 %v2449
      %v5710 = vpop.f32.mrf.mxu0
      %v5711 = vadd.f32 %v5622, %v5710
      %v5712 = vpop.f32.mrf.mxu0
      %v5713 = vadd.f32 %v5624, %v5712
      %5714 = vmatmul.bf16.gmra.mxu0 %v2457
      %v5715 = vpop.f32.mrf.mxu0
      %v5716 = vadd.f32 %v5627, %v5715
      %v5717 = vpop.f32.mrf.mxu0
      %v5718 = vadd.f32 %v5629, %v5717
      %5719 = vmatmul.bf16.gmra.mxu0 %v2465
      %v5720 = vpop.f32.mrf.mxu0
      %v5721 = vadd.f32 %v5632, %v5720
      %v5722 = vpop.f32.mrf.mxu0
      %v5723 = vadd.f32 %v5634, %v5722
      %5724 = vmatmul.bf16.gmra.mxu0 %v2473
      %v5725 = vpop.f32.mrf.mxu0
      %v5726 = vadd.f32 %v5637, %v5725
      %v5727 = vpop.f32.mrf.mxu0
      %v5728 = vadd.f32 %v5639, %v5727
      %5729 = vmatmul.bf16.gmra.mxu0 %v2481
      %v5730 = vpop.f32.mrf.mxu0
      %v5731 = vadd.f32 %v5642, %v5730
      %v5732 = vpop.f32.mrf.mxu0
      %v5733 = vadd.f32 %v5644, %v5732
      %5734 = vmatmul.bf16.gmra.mxu0 %v2489
      %v5735 = vpop.f32.mrf.mxu0
      %v5736 = vadd.f32 %v5647, %v5735
      %v5737 = vpop.f32.mrf.mxu0
      %v5738 = vadd.f32 %v5649, %v5737
      %5739 = vmatmul.bf16.gmra.mxu0 %v2497
      %v5740 = vpop.f32.mrf.mxu0
      %v5741 = vadd.f32 %v5652, %v5740
      %v5742 = vpop.f32.mrf.mxu0
      %v5743 = vadd.f32 %v5654, %v5742
      %5744 = vmatmul.bf16.gmra.mxu0 %v2505
      %v5745 = vpop.f32.mrf.mxu0
      %v5746 = vadd.f32 %v5657, %v5745
      %v5747 = vpop.f32.mrf.mxu0
      %v5748 = vadd.f32 %v5659, %v5747
      %5749 = vmatmul.bf16.gmra.mxu0 %v2513
      %v5750 = vpop.f32.mrf.mxu0
      %v5751 = vadd.f32 %v5662, %v5750
      %v5752 = vpop.f32.mrf.mxu0
      %v5753 = vadd.f32 %v5664, %v5752
      %5754 = vmatmul.bf16.gmra.mxu0 %v2521
      %v5755 = vpop.f32.mrf.mxu0
      %v5756 = vadd.f32 %v5667, %v5755
      %v5757 = vpop.f32.mrf.mxu0
      %v5758 = vadd.f32 %v5669, %v5757
      %5759 = vmatmul.bf16.gmra.mxu0 %v2529
      %v5760 = vpop.f32.mrf.mxu0
      %v5761 = vadd.f32 %v5672, %v5760
      %v5762 = vpop.f32.mrf.mxu0
      %v5763 = vadd.f32 %v5674, %v5762
      %5764 = vmatmul.bf16.gmra.mxu0 %v2537
      %v5765 = vpop.f32.mrf.mxu0
      %v5766 = vadd.f32 %v5677, %v5765
      %v5767 = vpop.f32.mrf.mxu0
      %v5768 = vadd.f32 %v5679, %v5767
      %5769 = vmatmul.bf16.gmra.mxu0 %v2545
      %v5770 = vpop.f32.mrf.mxu0
      %v5771 = vadd.f32 %v5682, %v5770
      %v5772 = vpop.f32.mrf.mxu0
      %v5773 = vadd.f32 %v5684, %v5772
      %5774 = vdwg.mxu0
      %5775 = vmatpush.bf16.msra.mxu0 %v3884
      %5776 = vmatpush.bf16.msra.mxu0 %v3883
      %5777 = vmatpush.bf16.msra.mxu0 %v3882
      %5778 = vmatpush.bf16.msra.mxu0 %v3881
      %5779 = vmatpush.bf16.msra.mxu0 %v3880
      %5780 = vmatpush.bf16.msra.mxu0 %v3879
      %5781 = vmatpush.bf16.msra.mxu0 %v3878
      %5782 = vmatpush.bf16.msra.mxu0 %v3877
      %5783 = vmatmul.bf16.gmra.mxu0 %v2409
      %v5784 = vpop.f32.mrf.mxu0
      %v5785 = vadd.f32 %v5696, %v5784
      %v5786 = vpop.f32.mrf.mxu0
      %v5787 = vadd.f32 %v5698, %v5786
      %5788 = vmatmul.bf16.gmra.mxu0 %v2434
      %v5789 = vpop.f32.mrf.mxu0
      %v5790 = vadd.f32 %v5701, %v5789
      %v5791 = vpop.f32.mrf.mxu0
      %v5792 = vadd.f32 %v5703, %v5791
      %5793 = vmatmul.bf16.gmra.mxu0 %v2442
      %v5794 = vpop.f32.mrf.mxu0
      %v5795 = vadd.f32 %v5706, %v5794
      %v5796 = vpop.f32.mrf.mxu0
      %v5797 = vadd.f32 %v5708, %v5796
      %5798 = vmatmul.bf16.gmra.mxu0 %v2450
      %v5799 = vpop.f32.mrf.mxu0
      %v5800 = vadd.f32 %v5711, %v5799
      %v5801 = vpop.f32.mrf.mxu0
      %v5802 = vadd.f32 %v5713, %v5801
      %5803 = vmatmul.bf16.gmra.mxu0 %v2458
      %v5804 = vpop.f32.mrf.mxu0
      %v5805 = vadd.f32 %v5716, %v5804
      %v5806 = vpop.f32.mrf.mxu0
      %v5807 = vadd.f32 %v5718, %v5806
      %5808 = vmatmul.bf16.gmra.mxu0 %v2466
      %v5809 = vpop.f32.mrf.mxu0
      %v5810 = vadd.f32 %v5721, %v5809
      %v5811 = vpop.f32.mrf.mxu0
      %v5812 = vadd.f32 %v5723, %v5811
      %5813 = vmatmul.bf16.gmra.mxu0 %v2474
      %v5814 = vpop.f32.mrf.mxu0
      %v5815 = vadd.f32 %v5726, %v5814
      %v5816 = vpop.f32.mrf.mxu0
      %v5817 = vadd.f32 %v5728, %v5816
      %5818 = vmatmul.bf16.gmra.mxu0 %v2482
      %v5819 = vpop.f32.mrf.mxu0
      %v5820 = vadd.f32 %v5731, %v5819
      %v5821 = vpop.f32.mrf.mxu0
      %v5822 = vadd.f32 %v5733, %v5821
      %5823 = vmatmul.bf16.gmra.mxu0 %v2490
      %v5824 = vpop.f32.mrf.mxu0
      %v5825 = vadd.f32 %v5736, %v5824
      %v5826 = vpop.f32.mrf.mxu0
      %v5827 = vadd.f32 %v5738, %v5826
      %5828 = vmatmul.bf16.gmra.mxu0 %v2498
      %v5829 = vpop.f32.mrf.mxu0
      %v5830 = vadd.f32 %v5741, %v5829
      %v5831 = vpop.f32.mrf.mxu0
      %v5832 = vadd.f32 %v5743, %v5831
      %5833 = vmatmul.bf16.gmra.mxu0 %v2506
      %v5834 = vpop.f32.mrf.mxu0
      %v5835 = vadd.f32 %v5746, %v5834
      %v5836 = vpop.f32.mrf.mxu0
      %v5837 = vadd.f32 %v5748, %v5836
      %5838 = vmatmul.bf16.gmra.mxu0 %v2514
      %v5839 = vpop.f32.mrf.mxu0
      %v5840 = vadd.f32 %v5751, %v5839
      %v5841 = vpop.f32.mrf.mxu0
      %v5842 = vadd.f32 %v5753, %v5841
      %5843 = vmatmul.bf16.gmra.mxu0 %v2522
      %v5844 = vpop.f32.mrf.mxu0
      %v5845 = vadd.f32 %v5756, %v5844
      %v5846 = vpop.f32.mrf.mxu0
      %v5847 = vadd.f32 %v5758, %v5846
      %5848 = vmatmul.bf16.gmra.mxu0 %v2530
      %v5849 = vpop.f32.mrf.mxu0
      %v5850 = vadd.f32 %v5761, %v5849
      %v5851 = vpop.f32.mrf.mxu0
      %v5852 = vadd.f32 %v5763, %v5851
      %5853 = vmatmul.bf16.gmra.mxu0 %v2538
      %v5854 = vpop.f32.mrf.mxu0
      %v5855 = vadd.f32 %v5766, %v5854
      %v5856 = vpop.f32.mrf.mxu0
      %v5857 = vadd.f32 %v5768, %v5856
      %5858 = vmatmul.bf16.gmra.mxu0 %v2546
      %v5859 = vpop.f32.mrf.mxu0
      %v5860 = vadd.f32 %v5771, %v5859
      %v5861 = vpop.f32.mrf.mxu0
      %v5862 = vadd.f32 %v5773, %v5861
      %5863 = vdwg.mxu0
      %5864 = vmatpush.bf16.msra.mxu0 %v3892
      %5865 = vmatpush.bf16.msra.mxu0 %v3891
      %5866 = vmatpush.bf16.msra.mxu0 %v3890
      %5867 = vmatpush.bf16.msra.mxu0 %v3889
      %5868 = vmatpush.bf16.msra.mxu0 %v3888
      %5869 = vmatpush.bf16.msra.mxu0 %v3887
      %5870 = vmatpush.bf16.msra.mxu0 %v3886
      %5871 = vmatpush.bf16.msra.mxu0 %v3885
      %5872 = vmatmul.bf16.gmra.mxu0 %v2410
      %v5873 = vpop.f32.mrf.mxu0
      %v5874 = vadd.f32 %v5785, %v5873
      %v5875 = vpop.f32.mrf.mxu0
      %v5876 = vadd.f32 %v5787, %v5875
      %5877 = vmatmul.bf16.gmra.mxu0 %v2435
      %v5878 = vpop.f32.mrf.mxu0
      %v5879 = vadd.f32 %v5790, %v5878
      %v5880 = vpop.f32.mrf.mxu0
      %v5881 = vadd.f32 %v5792, %v5880
      %5882 = vmatmul.bf16.gmra.mxu0 %v2443
      %v5883 = vpop.f32.mrf.mxu0
      %v5884 = vadd.f32 %v5795, %v5883
      %v5885 = vpop.f32.mrf.mxu0
      %v5886 = vadd.f32 %v5797, %v5885
      %5887 = vmatmul.bf16.gmra.mxu0 %v2451
      %v5888 = vpop.f32.mrf.mxu0
      %v5889 = vadd.f32 %v5800, %v5888
      %v5890 = vpop.f32.mrf.mxu0
      %v5891 = vadd.f32 %v5802, %v5890
      %5892 = vmatmul.bf16.gmra.mxu0 %v2459
      %v5893 = vpop.f32.mrf.mxu0
      %v5894 = vadd.f32 %v5805, %v5893
      %v5895 = vpop.f32.mrf.mxu0
      %v5896 = vadd.f32 %v5807, %v5895
      %5897 = vmatmul.bf16.gmra.mxu0 %v2467
      %v5898 = vpop.f32.mrf.mxu0
      %v5899 = vadd.f32 %v5810, %v5898
      %v5900 = vpop.f32.mrf.mxu0
      %v5901 = vadd.f32 %v5812, %v5900
      %5902 = vmatmul.bf16.gmra.mxu0 %v2475
      %v5903 = vpop.f32.mrf.mxu0
      %v5904 = vadd.f32 %v5815, %v5903
      %v5905 = vpop.f32.mrf.mxu0
      %v5906 = vadd.f32 %v5817, %v5905
      %5907 = vmatmul.bf16.gmra.mxu0 %v2483
      %v5908 = vpop.f32.mrf.mxu0
      %v5909 = vadd.f32 %v5820, %v5908
      %v5910 = vpop.f32.mrf.mxu0
      %v5911 = vadd.f32 %v5822, %v5910
      %5912 = vmatmul.bf16.gmra.mxu0 %v2491
      %v5913 = vpop.f32.mrf.mxu0
      %v5914 = vadd.f32 %v5825, %v5913
      %v5915 = vpop.f32.mrf.mxu0
      %v5916 = vadd.f32 %v5827, %v5915
      %5917 = vmatmul.bf16.gmra.mxu0 %v2499
      %v5918 = vpop.f32.mrf.mxu0
      %v5919 = vadd.f32 %v5830, %v5918
      %v5920 = vpop.f32.mrf.mxu0
      %v5921 = vadd.f32 %v5832, %v5920
      %5922 = vmatmul.bf16.gmra.mxu0 %v2507
      %v5923 = vpop.f32.mrf.mxu0
      %v5924 = vadd.f32 %v5835, %v5923
      %v5925 = vpop.f32.mrf.mxu0
      %v5926 = vadd.f32 %v5837, %v5925
      %5927 = vmatmul.bf16.gmra.mxu0 %v2515
      %v5928 = vpop.f32.mrf.mxu0
      %v5929 = vadd.f32 %v5840, %v5928
      %v5930 = vpop.f32.mrf.mxu0
      %v5931 = vadd.f32 %v5842, %v5930
      %5932 = vmatmul.bf16.gmra.mxu0 %v2523
      %v5933 = vpop.f32.mrf.mxu0
      %v5934 = vadd.f32 %v5845, %v5933
      %v5935 = vpop.f32.mrf.mxu0
      %v5936 = vadd.f32 %v5847, %v5935
      %5937 = vmatmul.bf16.gmra.mxu0 %v2531
      %v5938 = vpop.f32.mrf.mxu0
      %v5939 = vadd.f32 %v5850, %v5938
      %v5940 = vpop.f32.mrf.mxu0
      %v5941 = vadd.f32 %v5852, %v5940
      %5942 = vmatmul.bf16.gmra.mxu0 %v2539
      %v5943 = vpop.f32.mrf.mxu0
      %v5944 = vadd.f32 %v5855, %v5943
      %v5945 = vpop.f32.mrf.mxu0
      %v5946 = vadd.f32 %v5857, %v5945
      %5947 = vmatmul.bf16.gmra.mxu0 %v2547
      %v5948 = vpop.f32.mrf.mxu0
      %v5949 = vadd.f32 %v5860, %v5948
      %v5950 = vpop.f32.mrf.mxu0
      %v5951 = vadd.f32 %v5862, %v5950
      %5952 = vdwg.mxu0
      %5953 = vmatpush.bf16.msra.mxu0 %v3900
      %5954 = vmatpush.bf16.msra.mxu0 %v3899
      %5955 = vmatpush.bf16.msra.mxu0 %v3898
      %5956 = vmatpush.bf16.msra.mxu0 %v3897
      %5957 = vmatpush.bf16.msra.mxu0 %v3896
      %5958 = vmatpush.bf16.msra.mxu0 %v3895
      %5959 = vmatpush.bf16.msra.mxu0 %v3894
      %5960 = vmatpush.bf16.msra.mxu0 %v3893
      %5961 = vmatmul.bf16.gmra.mxu0 %v2411
      %v5962 = vpop.f32.mrf.mxu0
      %v5963 = vadd.f32 %v5874, %v5962
      %v5964 = vpop.f32.mrf.mxu0
      %v5965 = vadd.f32 %v5876, %v5964
      %5966 = vmatmul.bf16.gmra.mxu0 %v2436
      %v5967 = vpop.f32.mrf.mxu0
      %v5968 = vadd.f32 %v5879, %v5967
      %v5969 = vpop.f32.mrf.mxu0
      %v5970 = vadd.f32 %v5881, %v5969
      %5971 = vmatmul.bf16.gmra.mxu0 %v2444
      %v5972 = vpop.f32.mrf.mxu0
      %v5973 = vadd.f32 %v5884, %v5972
      %v5974 = vpop.f32.mrf.mxu0
      %v5975 = vadd.f32 %v5886, %v5974
      %5976 = vmatmul.bf16.gmra.mxu0 %v2452
      %v5977 = vpop.f32.mrf.mxu0
      %v5978 = vadd.f32 %v5889, %v5977
      %v5979 = vpop.f32.mrf.mxu0
      %v5980 = vadd.f32 %v5891, %v5979
      %5981 = vmatmul.bf16.gmra.mxu0 %v2460
      %v5982 = vpop.f32.mrf.mxu0
      %v5983 = vadd.f32 %v5894, %v5982
      %v5984 = vpop.f32.mrf.mxu0
      %v5985 = vadd.f32 %v5896, %v5984
      %5986 = vmatmul.bf16.gmra.mxu0 %v2468
      %v5987 = vpop.f32.mrf.mxu0
      %v5988 = vadd.f32 %v5899, %v5987
      %v5989 = vpop.f32.mrf.mxu0
      %v5990 = vadd.f32 %v5901, %v5989
      %5991 = vmatmul.bf16.gmra.mxu0 %v2476
      %v5992 = vpop.f32.mrf.mxu0
      %v5993 = vadd.f32 %v5904, %v5992
      %v5994 = vpop.f32.mrf.mxu0
      %v5995 = vadd.f32 %v5906, %v5994
      %5996 = vmatmul.bf16.gmra.mxu0 %v2484
      %v5997 = vpop.f32.mrf.mxu0
      %v5998 = vadd.f32 %v5909, %v5997
      %v5999 = vpop.f32.mrf.mxu0
      %v6000 = vadd.f32 %v5911, %v5999
      %6001 = vmatmul.bf16.gmra.mxu0 %v2492
      %v6002 = vpop.f32.mrf.mxu0
      %v6003 = vadd.f32 %v5914, %v6002
      %v6004 = vpop.f32.mrf.mxu0
      %v6005 = vadd.f32 %v5916, %v6004
      %6006 = vmatmul.bf16.gmra.mxu0 %v2500
      %v6007 = vpop.f32.mrf.mxu0
      %v6008 = vadd.f32 %v5919, %v6007
      %v6009 = vpop.f32.mrf.mxu0
      %v6010 = vadd.f32 %v5921, %v6009
      %6011 = vmatmul.bf16.gmra.mxu0 %v2508
      %v6012 = vpop.f32.mrf.mxu0
      %v6013 = vadd.f32 %v5924, %v6012
      %v6014 = vpop.f32.mrf.mxu0
      %v6015 = vadd.f32 %v5926, %v6014
      %6016 = vmatmul.bf16.gmra.mxu0 %v2516
      %v6017 = vpop.f32.mrf.mxu0
      %v6018 = vadd.f32 %v5929, %v6017
      %v6019 = vpop.f32.mrf.mxu0
      %v6020 = vadd.f32 %v5931, %v6019
      %6021 = vmatmul.bf16.gmra.mxu0 %v2524
      %v6022 = vpop.f32.mrf.mxu0
      %v6023 = vadd.f32 %v5934, %v6022
      %v6024 = vpop.f32.mrf.mxu0
      %v6025 = vadd.f32 %v5936, %v6024
      %6026 = vmatmul.bf16.gmra.mxu0 %v2532
      %v6027 = vpop.f32.mrf.mxu0
      %v6028 = vadd.f32 %v5939, %v6027
      %v6029 = vpop.f32.mrf.mxu0
      %v6030 = vadd.f32 %v5941, %v6029
      %6031 = vmatmul.bf16.gmra.mxu0 %v2540
      %v6032 = vpop.f32.mrf.mxu0
      %v6033 = vadd.f32 %v5944, %v6032
      %v6034 = vpop.f32.mrf.mxu0
      %v6035 = vadd.f32 %v5946, %v6034
      %6036 = vmatmul.bf16.gmra.mxu0 %v2548
      %v6037 = vpop.f32.mrf.mxu0
      %v6038 = vadd.f32 %v5949, %v6037
      %v6039 = vpop.f32.mrf.mxu0
      %v6040 = vadd.f32 %v5951, %v6039
      %6041 = vdwg.mxu0
      %6042 = vmatpush.bf16.msra.mxu0 %v3908
      %6043 = vmatpush.bf16.msra.mxu0 %v3907
      %6044 = vmatpush.bf16.msra.mxu0 %v3906
      %6045 = vmatpush.bf16.msra.mxu0 %v3905
      %6046 = vmatpush.bf16.msra.mxu0 %v3904
      %6047 = vmatpush.bf16.msra.mxu0 %v3903
      %6048 = vmatpush.bf16.msra.mxu0 %v3902
      %6049 = vmatpush.bf16.msra.mxu0 %v3901
      %6050 = vmatmul.bf16.gmra.mxu0 %v2412
      %v6051 = vpop.f32.mrf.mxu0
      %v6052 = vadd.f32 %v5963, %v6051
      %v6053 = vpop.f32.mrf.mxu0
      %v6054 = vadd.f32 %v5965, %v6053
      %6055 = vmatmul.bf16.gmra.mxu0 %v2437
      %v6056 = vpop.f32.mrf.mxu0
      %v6057 = vadd.f32 %v5968, %v6056
      %v6058 = vpop.f32.mrf.mxu0
      %v6059 = vadd.f32 %v5970, %v6058
      %6060 = vmatmul.bf16.gmra.mxu0 %v2445
      %v6061 = vpop.f32.mrf.mxu0
      %v6062 = vadd.f32 %v5973, %v6061
      %v6063 = vpop.f32.mrf.mxu0
      %v6064 = vadd.f32 %v5975, %v6063
      %6065 = vmatmul.bf16.gmra.mxu0 %v2453
      %v6066 = vpop.f32.mrf.mxu0
      %v6067 = vadd.f32 %v5978, %v6066
      %v6068 = vpop.f32.mrf.mxu0
      %v6069 = vadd.f32 %v5980, %v6068
      %6070 = vmatmul.bf16.gmra.mxu0 %v2461
      %v6071 = vpop.f32.mrf.mxu0
      %v6072 = vadd.f32 %v5983, %v6071
      %v6073 = vpop.f32.mrf.mxu0
      %v6074 = vadd.f32 %v5985, %v6073
      %6075 = vmatmul.bf16.gmra.mxu0 %v2469
      %v6076 = vpop.f32.mrf.mxu0
      %v6077 = vadd.f32 %v5988, %v6076
      %v6078 = vpop.f32.mrf.mxu0
      %v6079 = vadd.f32 %v5990, %v6078
      %6080 = vmatmul.bf16.gmra.mxu0 %v2477
      %v6081 = vpop.f32.mrf.mxu0
      %v6082 = vadd.f32 %v5993, %v6081
      %v6083 = vpop.f32.mrf.mxu0
      %v6084 = vadd.f32 %v5995, %v6083
      %6085 = vmatmul.bf16.gmra.mxu0 %v2485
      %v6086 = vpop.f32.mrf.mxu0
      %v6087 = vadd.f32 %v5998, %v6086
      %v6088 = vpop.f32.mrf.mxu0
      %v6089 = vadd.f32 %v6000, %v6088
      %6090 = vmatmul.bf16.gmra.mxu0 %v2493
      %v6091 = vpop.f32.mrf.mxu0
      %v6092 = vadd.f32 %v6003, %v6091
      %v6093 = vpop.f32.mrf.mxu0
      %v6094 = vadd.f32 %v6005, %v6093
      %6095 = vmatmul.bf16.gmra.mxu0 %v2501
      %v6096 = vpop.f32.mrf.mxu0
      %v6097 = vadd.f32 %v6008, %v6096
      %v6098 = vpop.f32.mrf.mxu0
      %v6099 = vadd.f32 %v6010, %v6098
      %6100 = vmatmul.bf16.gmra.mxu0 %v2509
      %v6101 = vpop.f32.mrf.mxu0
      %v6102 = vadd.f32 %v6013, %v6101
      %v6103 = vpop.f32.mrf.mxu0
      %v6104 = vadd.f32 %v6015, %v6103
      %6105 = vmatmul.bf16.gmra.mxu0 %v2517
      %v6106 = vpop.f32.mrf.mxu0
      %v6107 = vadd.f32 %v6018, %v6106
      %v6108 = vpop.f32.mrf.mxu0
      %v6109 = vadd.f32 %v6020, %v6108
      %6110 = vmatmul.bf16.gmra.mxu0 %v2525
      %v6111 = vpop.f32.mrf.mxu0
      %v6112 = vadd.f32 %v6023, %v6111
      %v6113 = vpop.f32.mrf.mxu0
      %v6114 = vadd.f32 %v6025, %v6113
      %6115 = vmatmul.bf16.gmra.mxu0 %v2533
      %v6116 = vpop.f32.mrf.mxu0
      %v6117 = vadd.f32 %v6028, %v6116
      %v6118 = vpop.f32.mrf.mxu0
      %v6119 = vadd.f32 %v6030, %v6118
      %6120 = vmatmul.bf16.gmra.mxu0 %v2541
      %v6121 = vpop.f32.mrf.mxu0
      %v6122 = vadd.f32 %v6033, %v6121
      %v6123 = vpop.f32.mrf.mxu0
      %v6124 = vadd.f32 %v6035, %v6123
      %6125 = vmatmul.bf16.gmra.mxu0 %v2549
      %v6126 = vpop.f32.mrf.mxu0
      %v6127 = vadd.f32 %v6038, %v6126
      %v6128 = vpop.f32.mrf.mxu0
      %v6129 = vadd.f32 %v6040, %v6128
      %6130 = vdwg.mxu0
      %6131 = vmatpush.bf16.msra.mxu0 %v3916
      %6132 = vmatpush.bf16.msra.mxu0 %v3915
      %6133 = vmatpush.bf16.msra.mxu0 %v3914
      %6134 = vmatpush.bf16.msra.mxu0 %v3913
      %6135 = vmatpush.bf16.msra.mxu0 %v3912
      %6136 = vmatpush.bf16.msra.mxu0 %v3911
      %6137 = vmatpush.bf16.msra.mxu0 %v3910
      %6138 = vmatpush.bf16.msra.mxu0 %v3909
      %6139 = vmatmul.bf16.gmra.mxu0 %v2413
      %v6140 = vpop.f32.mrf.mxu0
      %v6141 = vadd.f32 %v6052, %v6140
      %v6142 = vpop.f32.mrf.mxu0
      %v6143 = vadd.f32 %v6054, %v6142
      %6144 = vmatmul.bf16.gmra.mxu0 %v2438
      %v6145 = vpop.f32.mrf.mxu0
      %v6146 = vadd.f32 %v6057, %v6145
      %v6147 = vpop.f32.mrf.mxu0
      %v6148 = vadd.f32 %v6059, %v6147
      %6149 = vmatmul.bf16.gmra.mxu0 %v2446
      %v6150 = vpop.f32.mrf.mxu0
      %v6151 = vadd.f32 %v6062, %v6150
      %v6152 = vpop.f32.mrf.mxu0
      %v6153 = vadd.f32 %v6064, %v6152
      %6154 = vmatmul.bf16.gmra.mxu0 %v2454
      %v6155 = vpop.f32.mrf.mxu0
      %v6156 = vadd.f32 %v6067, %v6155
      %v6157 = vpop.f32.mrf.mxu0
      %v6158 = vadd.f32 %v6069, %v6157
      %6159 = vmatmul.bf16.gmra.mxu0 %v2462
      %v6160 = vpop.f32.mrf.mxu0
      %v6161 = vadd.f32 %v6072, %v6160
      %v6162 = vpop.f32.mrf.mxu0
      %v6163 = vadd.f32 %v6074, %v6162
      %6164 = vmatmul.bf16.gmra.mxu0 %v2470
      %v6165 = vpop.f32.mrf.mxu0
      %v6166 = vadd.f32 %v6077, %v6165
      %v6167 = vpop.f32.mrf.mxu0
      %v6168 = vadd.f32 %v6079, %v6167
      %6169 = vmatmul.bf16.gmra.mxu0 %v2478
      %v6170 = vpop.f32.mrf.mxu0
      %v6171 = vadd.f32 %v6082, %v6170
      %v6172 = vpop.f32.mrf.mxu0
      %v6173 = vadd.f32 %v6084, %v6172
      %6174 = vmatmul.bf16.gmra.mxu0 %v2486
      %v6175 = vpop.f32.mrf.mxu0
      %v6176 = vadd.f32 %v6087, %v6175
      %v6177 = vpop.f32.mrf.mxu0
      %v6178 = vadd.f32 %v6089, %v6177
      %6179 = vmatmul.bf16.gmra.mxu0 %v2494
      %v6180 = vpop.f32.mrf.mxu0
      %v6181 = vadd.f32 %v6092, %v6180
      %v6182 = vpop.f32.mrf.mxu0
      %v6183 = vadd.f32 %v6094, %v6182
      %6184 = vmatmul.bf16.gmra.mxu0 %v2502
      %v6185 = vpop.f32.mrf.mxu0
      %v6186 = vadd.f32 %v6097, %v6185
      %v6187 = vpop.f32.mrf.mxu0
      %v6188 = vadd.f32 %v6099, %v6187
      %6189 = vmatmul.bf16.gmra.mxu0 %v2510
      %v6190 = vpop.f32.mrf.mxu0
      %v6191 = vadd.f32 %v6102, %v6190
      %v6192 = vpop.f32.mrf.mxu0
      %v6193 = vadd.f32 %v6104, %v6192
      %6194 = vmatmul.bf16.gmra.mxu0 %v2518
      %v6195 = vpop.f32.mrf.mxu0
      %v6196 = vadd.f32 %v6107, %v6195
      %v6197 = vpop.f32.mrf.mxu0
      %v6198 = vadd.f32 %v6109, %v6197
      %6199 = vmatmul.bf16.gmra.mxu0 %v2526
      %v6200 = vpop.f32.mrf.mxu0
      %v6201 = vadd.f32 %v6112, %v6200
      %v6202 = vpop.f32.mrf.mxu0
      %v6203 = vadd.f32 %v6114, %v6202
      %6204 = vmatmul.bf16.gmra.mxu0 %v2534
      %v6205 = vpop.f32.mrf.mxu0
      %v6206 = vadd.f32 %v6117, %v6205
      %v6207 = vpop.f32.mrf.mxu0
      %v6208 = vadd.f32 %v6119, %v6207
      %6209 = vmatmul.bf16.gmra.mxu0 %v2542
      %v6210 = vpop.f32.mrf.mxu0
      %v6211 = vadd.f32 %v6122, %v6210
      %v6212 = vpop.f32.mrf.mxu0
      %v6213 = vadd.f32 %v6124, %v6212
      %6214 = vmatmul.bf16.gmra.mxu0 %v2550
      %v6215 = vpop.f32.mrf.mxu0
      %v6216 = vadd.f32 %v6127, %v6215
      %v6217 = vpop.f32.mrf.mxu0
      %v6218 = vadd.f32 %v6129, %v6217
      %6219 = vdwg.mxu0
      %6220 = vmatpush.bf16.msra.mxu0 %v3924
      %6221 = vmatpush.bf16.msra.mxu0 %v3923
      %6222 = vmatpush.bf16.msra.mxu0 %v3922
      %6223 = vmatpush.bf16.msra.mxu0 %v3921
      %6224 = vmatpush.bf16.msra.mxu0 %v3920
      %6225 = vmatpush.bf16.msra.mxu0 %v3919
      %6226 = vmatpush.bf16.msra.mxu0 %v3918
      %6227 = vmatpush.bf16.msra.mxu0 %v3917
      %6228 = vmatmul.bf16.gmra.mxu0 %v2414
      %v6229 = vpop.f32.mrf.mxu0
      %v6230 = vadd.f32 %v6141, %v6229
      %v6231 = vpop.f32.mrf.mxu0
      %v6232 = vadd.f32 %v6143, %v6231
      %6233 = vmatmul.bf16.gmra.mxu0 %v2439
      %v6234 = vpop.f32.mrf.mxu0
      %v6235 = vadd.f32 %v6146, %v6234
      %v6236 = vpop.f32.mrf.mxu0
      %v6237 = vadd.f32 %v6148, %v6236
      %6238 = vmatmul.bf16.gmra.mxu0 %v2447
      %v6239 = vpop.f32.mrf.mxu0
      %v6240 = vadd.f32 %v6151, %v6239
      %v6241 = vpop.f32.mrf.mxu0
      %v6242 = vadd.f32 %v6153, %v6241
      %6243 = vmatmul.bf16.gmra.mxu0 %v2455
      %v6244 = vpop.f32.mrf.mxu0
      %v6245 = vadd.f32 %v6156, %v6244
      %v6246 = vpop.f32.mrf.mxu0
      %v6247 = vadd.f32 %v6158, %v6246
      %6248 = vmatmul.bf16.gmra.mxu0 %v2463
      %v6249 = vpop.f32.mrf.mxu0
      %v6250 = vadd.f32 %v6161, %v6249
      %v6251 = vpop.f32.mrf.mxu0
      %v6252 = vadd.f32 %v6163, %v6251
      %6253 = vmatmul.bf16.gmra.mxu0 %v2471
      %v6254 = vpop.f32.mrf.mxu0
      %v6255 = vadd.f32 %v6166, %v6254
      %v6256 = vpop.f32.mrf.mxu0
      %v6257 = vadd.f32 %v6168, %v6256
      %6258 = vmatmul.bf16.gmra.mxu0 %v2479
      %v6259 = vpop.f32.mrf.mxu0
      %v6260 = vadd.f32 %v6171, %v6259
      %v6261 = vpop.f32.mrf.mxu0
      %v6262 = vadd.f32 %v6173, %v6261
      %6263 = vmatmul.bf16.gmra.mxu0 %v2487
      %v6264 = vpop.f32.mrf.mxu0
      %v6265 = vadd.f32 %v6176, %v6264
      %v6266 = vpop.f32.mrf.mxu0
      %v6267 = vadd.f32 %v6178, %v6266
      %6268 = vmatmul.bf16.gmra.mxu0 %v2495
      %v6269 = vpop.f32.mrf.mxu0
      %v6270 = vadd.f32 %v6181, %v6269
      %v6271 = vpop.f32.mrf.mxu0
      %v6272 = vadd.f32 %v6183, %v6271
      %6273 = vmatmul.bf16.gmra.mxu0 %v2503
      %v6274 = vpop.f32.mrf.mxu0
      %v6275 = vadd.f32 %v6186, %v6274
      %v6276 = vpop.f32.mrf.mxu0
      %v6277 = vadd.f32 %v6188, %v6276
      %6278 = vmatmul.bf16.gmra.mxu0 %v2511
      %v6279 = vpop.f32.mrf.mxu0
      %v6280 = vadd.f32 %v6191, %v6279
      %v6281 = vpop.f32.mrf.mxu0
      %v6282 = vadd.f32 %v6193, %v6281
      %6283 = vmatmul.bf16.gmra.mxu0 %v2519
      %v6284 = vpop.f32.mrf.mxu0
      %v6285 = vadd.f32 %v6196, %v6284
      %v6286 = vpop.f32.mrf.mxu0
      %v6287 = vadd.f32 %v6198, %v6286
      %6288 = vmatmul.bf16.gmra.mxu0 %v2527
      %v6289 = vpop.f32.mrf.mxu0
      %v6290 = vadd.f32 %v6201, %v6289
      %v6291 = vpop.f32.mrf.mxu0
      %v6292 = vadd.f32 %v6203, %v6291
      %6293 = vmatmul.bf16.gmra.mxu0 %v2535
      %v6294 = vpop.f32.mrf.mxu0
      %v6295 = vadd.f32 %v6206, %v6294
      %v6296 = vpop.f32.mrf.mxu0
      %v6297 = vadd.f32 %v6208, %v6296
      %6298 = vmatmul.bf16.gmra.mxu0 %v2543
      %v6299 = vpop.f32.mrf.mxu0
      %v6300 = vadd.f32 %v6211, %v6299
      %v6301 = vpop.f32.mrf.mxu0
      %v6302 = vadd.f32 %v6213, %v6301
      %6303 = vmatmul.bf16.gmra.mxu0 %v2551
      %v6304 = vpop.f32.mrf.mxu0
      %v6305 = vadd.f32 %v6216, %v6304
      %v6306 = vpop.f32.mrf.mxu0
      %v6307 = vadd.f32 %v6218, %v6306
      %6308 = vdwg.mxu0
      %6309 = vmatpush.bf16.msra.mxu0 0
      %6310 = vmatpush.bf16.msra.mxu0 0
      %6311 = vmatpush.bf16.msra.mxu0 0
      %6312 = vmatpush.bf16.msra.mxu0 0
      %6313 = vmatpush.bf16.msra.mxu0 %v3928
      %6314 = vmatpush.bf16.msra.mxu0 %v3927
      %6315 = vmatpush.bf16.msra.mxu0 %v3926
      %6316 = vmatpush.bf16.msra.mxu0 %v3925
      %6317 = vmatmul.bf16.gmra.mxu0 %v4126
      %v6318 = vpop.f32.mrf.mxu0
      %v6319 = vadd.f32 %v6230, %v6318
      %v6320 = vpop.f32.mrf.mxu0
      %v6321 = vadd.f32 %v6232, %v6320
      %6322 = vmatmul.bf16.gmra.mxu0 %v4129
      %v6323 = vpop.f32.mrf.mxu0
      %v6324 = vadd.f32 %v6235, %v6323
      %v6325 = vpop.f32.mrf.mxu0
      %v6326 = vadd.f32 %v6237, %v6325
      %6327 = vmatmul.bf16.gmra.mxu0 %v4132
      %v6328 = vpop.f32.mrf.mxu0
      %v6329 = vadd.f32 %v6240, %v6328
      %v6330 = vpop.f32.mrf.mxu0
      %v6331 = vadd.f32 %v6242, %v6330
      %6332 = vmatmul.bf16.gmra.mxu0 %v4135
      %v6333 = vpop.f32.mrf.mxu0
      %v6334 = vadd.f32 %v6245, %v6333
      %v6335 = vpop.f32.mrf.mxu0
      %v6336 = vadd.f32 %v6247, %v6335
      %6337 = vmatmul.bf16.gmra.mxu0 %v4138
      %v6338 = vpop.f32.mrf.mxu0
      %v6339 = vadd.f32 %v6250, %v6338
      %v6340 = vpop.f32.mrf.mxu0
      %v6341 = vadd.f32 %v6252, %v6340
      %6342 = vmatmul.bf16.gmra.mxu0 %v4141
      %v6343 = vpop.f32.mrf.mxu0
      %v6344 = vadd.f32 %v6255, %v6343
      %v6345 = vpop.f32.mrf.mxu0
      %v6346 = vadd.f32 %v6257, %v6345
      %6347 = vmatmul.bf16.gmra.mxu0 %v4144
      %v6348 = vpop.f32.mrf.mxu0
      %v6349 = vadd.f32 %v6260, %v6348
      %v6350 = vpop.f32.mrf.mxu0
      %v6351 = vadd.f32 %v6262, %v6350
      %6352 = vmatmul.bf16.gmra.mxu0 %v4147
      %v6353 = vpop.f32.mrf.mxu0
      %v6354 = vadd.f32 %v6265, %v6353
      %v6355 = vpop.f32.mrf.mxu0
      %v6356 = vadd.f32 %v6267, %v6355
      %6357 = vmatmul.bf16.gmra.mxu0 %v4150
      %v6358 = vpop.f32.mrf.mxu0
      %v6359 = vadd.f32 %v6270, %v6358
      %v6360 = vpop.f32.mrf.mxu0
      %v6361 = vadd.f32 %v6272, %v6360
      %6362 = vmatmul.bf16.gmra.mxu0 %v4153
      %v6363 = vpop.f32.mrf.mxu0
      %v6364 = vadd.f32 %v6275, %v6363
      %v6365 = vpop.f32.mrf.mxu0
      %v6366 = vadd.f32 %v6277, %v6365
      %6367 = vmatmul.bf16.gmra.mxu0 %v4156
      %v6368 = vpop.f32.mrf.mxu0
      %v6369 = vadd.f32 %v6280, %v6368
      %v6370 = vpop.f32.mrf.mxu0
      %v6371 = vadd.f32 %v6282, %v6370
      %6372 = vmatmul.bf16.gmra.mxu0 %v4159
      %v6373 = vpop.f32.mrf.mxu0
      %v6374 = vadd.f32 %v6285, %v6373
      %v6375 = vpop.f32.mrf.mxu0
      %v6376 = vadd.f32 %v6287, %v6375
      %6377 = vmatmul.bf16.gmra.mxu0 %v4162
      %v6378 = vpop.f32.mrf.mxu0
      %v6379 = vadd.f32 %v6290, %v6378
      %v6380 = vpop.f32.mrf.mxu0
      %v6381 = vadd.f32 %v6292, %v6380
      %6382 = vmatmul.bf16.gmra.mxu0 %v4165
      %v6383 = vpop.f32.mrf.mxu0
      %v6384 = vadd.f32 %v6295, %v6383
      %v6385 = vpop.f32.mrf.mxu0
      %v6386 = vadd.f32 %v6297, %v6385
      %6387 = vmatmul.bf16.gmra.mxu0 %v4168
      %v6388 = vpop.f32.mrf.mxu0
      %v6389 = vadd.f32 %v6300, %v6388
      %v6390 = vpop.f32.mrf.mxu0
      %v6391 = vadd.f32 %v6302, %v6390
      %6392 = vmatmul.bf16.gmra.mxu0 %v4171
      %v6393 = vpop.f32.mrf.mxu0
      %v6394 = vadd.f32 %v6305, %v6393
      %v6395 = vpop.f32.mrf.mxu0
      %v6396 = vadd.f32 %v6307, %v6395
      %6397 = vdwg.mxu0
      %6430 = vrot.lane.b32.xlu0 %v6319, 125
      %v6431 = vpop.permute.xlu0 %6430
      %6432 = vrot.lane.b32.xlu0 %v6321, 125
      %v6433 = vpop.permute.xlu0 %6432
      %6434 = vrot.lane.b32.xlu0 %v6324, 125
      %v6435 = vpop.permute.xlu0 %6434
      %6436 = vrot.lane.b32.xlu0 %v6326, 125
      %v6437 = vpop.permute.xlu0 %6436
      %6438 = vrot.lane.b32.xlu0 %v6329, 125
      %v6439 = vpop.permute.xlu0 %6438
      %6440 = vrot.lane.b32.xlu0 %v6331, 125
      %v6441 = vpop.permute.xlu0 %6440
      %6442 = vrot.lane.b32.xlu0 %v6334, 125
      %v6443 = vpop.permute.xlu0 %6442
      %6444 = vrot.lane.b32.xlu0 %v6336, 125
      %v6445 = vpop.permute.xlu0 %6444
      %6446 = vrot.lane.b32.xlu0 %v6339, 125
      %v6447 = vpop.permute.xlu0 %6446
      %6448 = vrot.lane.b32.xlu0 %v6341, 125
      %v6449 = vpop.permute.xlu0 %6448
      %6450 = vrot.lane.b32.xlu0 %v6344, 125
      %v6451 = vpop.permute.xlu0 %6450
      %6452 = vrot.lane.b32.xlu0 %v6346, 125
      %v6453 = vpop.permute.xlu0 %6452
      %6454 = vrot.lane.b32.xlu0 %v6349, 125
      %v6455 = vpop.permute.xlu0 %6454
      %6456 = vrot.lane.b32.xlu0 %v6351, 125
      %v6457 = vpop.permute.xlu0 %6456
      %6458 = vrot.lane.b32.xlu0 %v6354, 125
      %v6459 = vpop.permute.xlu0 %6458
      %6460 = vrot.lane.b32.xlu0 %v6356, 125
      %v6461 = vpop.permute.xlu0 %6460
      %6462 = vrot.lane.b32.xlu0 %v6359, 125
      %v6463 = vpop.permute.xlu0 %6462
      %6464 = vrot.lane.b32.xlu0 %v6361, 125
      %v6465 = vpop.permute.xlu0 %6464
      %6466 = vrot.lane.b32.xlu0 %v6364, 125
      %v6467 = vpop.permute.xlu0 %6466
      %6468 = vrot.lane.b32.xlu0 %v6366, 125
      %v6469 = vpop.permute.xlu0 %6468
      %6470 = vrot.lane.b32.xlu0 %v6369, 125
      %v6471 = vpop.permute.xlu0 %6470
      %6472 = vrot.lane.b32.xlu0 %v6371, 125
      %v6473 = vpop.permute.xlu0 %6472
      %6474 = vrot.lane.b32.xlu0 %v6374, 125
      %v6475 = vpop.permute.xlu0 %6474
      %6476 = vrot.lane.b32.xlu0 %v6376, 125
      %v6477 = vpop.permute.xlu0 %6476
      %6478 = vrot.lane.b32.xlu0 %v6379, 125
      %v6479 = vpop.permute.xlu0 %6478
      %6480 = vrot.lane.b32.xlu0 %v6381, 125
      %v6481 = vpop.permute.xlu0 %6480
      %6482 = vrot.lane.b32.xlu0 %v6384, 125
      %v6483 = vpop.permute.xlu0 %6482
      %6484 = vrot.lane.b32.xlu0 %v6386, 125
      %v6485 = vpop.permute.xlu0 %6484
      %6486 = vrot.lane.b32.xlu0 %v6389, 125
      %v6487 = vpop.permute.xlu0 %6486
      %6488 = vrot.lane.b32.xlu0 %v6391, 125
      %v6489 = vpop.permute.xlu0 %6488
      %6490 = vrot.lane.b32.xlu0 %v6394, 125
      %v6491 = vpop.permute.xlu0 %6490
      %6492 = vrot.lane.b32.xlu0 %v6396, 125
      %v6493 = vpop.permute.xlu0 %6492
      %v6526 = vmax.f32 %v6319, %v6431
      %v6527 = vmax.f32 %v6321, %v6433
      %v6528 = vmax.f32 %v6324, %v6435
      %v6529 = vmax.f32 %v6326, %v6437
      %v6530 = vmax.f32 %v6329, %v6439
      %v6531 = vmax.f32 %v6331, %v6441
      %v6532 = vmax.f32 %v6334, %v6443
      %v6533 = vmax.f32 %v6336, %v6445
      %v6534 = vmax.f32 %v6339, %v6447
      %v6535 = vmax.f32 %v6341, %v6449
      %v6536 = vmax.f32 %v6344, %v6451
      %v6537 = vmax.f32 %v6346, %v6453
      %v6538 = vmax.f32 %v6349, %v6455
      %v6539 = vmax.f32 %v6351, %v6457
      %v6540 = vmax.f32 %v6354, %v6459
      %v6541 = vmax.f32 %v6356, %v6461
      %v6542 = vmax.f32 %v6359, %v6463
      %v6543 = vmax.f32 %v6361, %v6465
      %v6544 = vmax.f32 %v6364, %v6467
      %v6545 = vmax.f32 %v6366, %v6469
      %v6546 = vmax.f32 %v6369, %v6471
      %v6547 = vmax.f32 %v6371, %v6473
      %v6548 = vmax.f32 %v6374, %v6475
      %v6549 = vmax.f32 %v6376, %v6477
      %v6550 = vmax.f32 %v6379, %v6479
      %v6551 = vmax.f32 %v6381, %v6481
      %v6552 = vmax.f32 %v6384, %v6483
      %v6553 = vmax.f32 %v6386, %v6485
      %v6554 = vmax.f32 %v6389, %v6487
      %v6555 = vmax.f32 %v6391, %v6489
      %v6556 = vmax.f32 %v6394, %v6491
      %v6557 = vmax.f32 %v6396, %v6493
      %6558 = vrot.lane.b32.xlu0 %v6319, 122
      %v6559 = vpop.permute.xlu0 %6558
      %6560 = vrot.lane.b32.xlu0 %v6321, 122
      %v6561 = vpop.permute.xlu0 %6560
      %6562 = vrot.lane.b32.xlu0 %v6324, 122
      %v6563 = vpop.permute.xlu0 %6562
      %6564 = vrot.lane.b32.xlu0 %v6326, 122
      %v6565 = vpop.permute.xlu0 %6564
      %6566 = vrot.lane.b32.xlu0 %v6329, 122
      %v6567 = vpop.permute.xlu0 %6566
      %6568 = vrot.lane.b32.xlu0 %v6331, 122
      %v6569 = vpop.permute.xlu0 %6568
      %6570 = vrot.lane.b32.xlu0 %v6334, 122
      %v6571 = vpop.permute.xlu0 %6570
      %6572 = vrot.lane.b32.xlu0 %v6336, 122
      %v6573 = vpop.permute.xlu0 %6572
      %6574 = vrot.lane.b32.xlu0 %v6339, 122
      %v6575 = vpop.permute.xlu0 %6574
      %6576 = vrot.lane.b32.xlu0 %v6341, 122
      %v6577 = vpop.permute.xlu0 %6576
      %6578 = vrot.lane.b32.xlu0 %v6344, 122
      %v6579 = vpop.permute.xlu0 %6578
      %6580 = vrot.lane.b32.xlu0 %v6346, 122
      %v6581 = vpop.permute.xlu0 %6580
      %6582 = vrot.lane.b32.xlu0 %v6349, 122
      %v6583 = vpop.permute.xlu0 %6582
      %6584 = vrot.lane.b32.xlu0 %v6351, 122
      %v6585 = vpop.permute.xlu0 %6584
      %6586 = vrot.lane.b32.xlu0 %v6354, 122
      %v6587 = vpop.permute.xlu0 %6586
      %6588 = vrot.lane.b32.xlu0 %v6356, 122
      %v6589 = vpop.permute.xlu0 %6588
      %6590 = vrot.lane.b32.xlu0 %v6359, 122
      %v6591 = vpop.permute.xlu0 %6590
      %6592 = vrot.lane.b32.xlu0 %v6361, 122
      %v6593 = vpop.permute.xlu0 %6592
      %6594 = vrot.lane.b32.xlu0 %v6364, 122
      %v6595 = vpop.permute.xlu0 %6594
      %6596 = vrot.lane.b32.xlu0 %v6366, 122
      %v6597 = vpop.permute.xlu0 %6596
      %6598 = vrot.lane.b32.xlu0 %v6369, 122
      %v6599 = vpop.permute.xlu0 %6598
      %6600 = vrot.lane.b32.xlu0 %v6371, 122
      %v6601 = vpop.permute.xlu0 %6600
      %6602 = vrot.lane.b32.xlu0 %v6374, 122
      %v6603 = vpop.permute.xlu0 %6602
      %6604 = vrot.lane.b32.xlu0 %v6376, 122
      %v6605 = vpop.permute.xlu0 %6604
      %6606 = vrot.lane.b32.xlu0 %v6379, 122
      %v6607 = vpop.permute.xlu0 %6606
      %6608 = vrot.lane.b32.xlu0 %v6381, 122
      %v6609 = vpop.permute.xlu0 %6608
      %6610 = vrot.lane.b32.xlu0 %v6384, 122
      %v6611 = vpop.permute.xlu0 %6610
      %6612 = vrot.lane.b32.xlu0 %v6386, 122
      %v6613 = vpop.permute.xlu0 %6612
      %6614 = vrot.lane.b32.xlu0 %v6389, 122
      %v6615 = vpop.permute.xlu0 %6614
      %6616 = vrot.lane.b32.xlu0 %v6391, 122
      %v6617 = vpop.permute.xlu0 %6616
      %6618 = vrot.lane.b32.xlu0 %v6394, 122
      %v6619 = vpop.permute.xlu0 %6618
      %6620 = vrot.lane.b32.xlu0 %v6396, 122
      %v6621 = vpop.permute.xlu0 %6620
      %v6654 = vmax.f32 %v6526, %v6559
      %v6655 = vmax.f32 %v6527, %v6561
      %v6656 = vmax.f32 %v6528, %v6563
      %v6657 = vmax.f32 %v6529, %v6565
      %v6658 = vmax.f32 %v6530, %v6567
      %v6659 = vmax.f32 %v6531, %v6569
      %v6660 = vmax.f32 %v6532, %v6571
      %v6661 = vmax.f32 %v6533, %v6573
      %v6662 = vmax.f32 %v6534, %v6575
      %v6663 = vmax.f32 %v6535, %v6577
      %v6664 = vmax.f32 %v6536, %v6579
      %v6665 = vmax.f32 %v6537, %v6581
      %v6666 = vmax.f32 %v6538, %v6583
      %v6667 = vmax.f32 %v6539, %v6585
      %v6668 = vmax.f32 %v6540, %v6587
      %v6669 = vmax.f32 %v6541, %v6589
      %v6670 = vmax.f32 %v6542, %v6591
      %v6671 = vmax.f32 %v6543, %v6593
      %v6672 = vmax.f32 %v6544, %v6595
      %v6673 = vmax.f32 %v6545, %v6597
      %v6674 = vmax.f32 %v6546, %v6599
      %v6675 = vmax.f32 %v6547, %v6601
      %v6676 = vmax.f32 %v6548, %v6603
      %v6677 = vmax.f32 %v6549, %v6605
      %v6678 = vmax.f32 %v6550, %v6607
      %v6679 = vmax.f32 %v6551, %v6609
      %v6680 = vmax.f32 %v6552, %v6611
      %v6681 = vmax.f32 %v6553, %v6613
      %v6682 = vmax.f32 %v6554, %v6615
      %v6683 = vmax.f32 %v6555, %v6617
      %v6684 = vmax.f32 %v6556, %v6619
      %v6685 = vmax.f32 %v6557, %v6621
      %6686 = vrot.lane.b32.xlu0 %v6319, 119
      %v6687 = vpop.permute.xlu0 %6686
      %6688 = vrot.lane.b32.xlu0 %v6321, 119
      %v6689 = vpop.permute.xlu0 %6688
      %6690 = vrot.lane.b32.xlu0 %v6324, 119
      %v6691 = vpop.permute.xlu0 %6690
      %6692 = vrot.lane.b32.xlu0 %v6326, 119
      %v6693 = vpop.permute.xlu0 %6692
      %6694 = vrot.lane.b32.xlu0 %v6329, 119
      %v6695 = vpop.permute.xlu0 %6694
      %6696 = vrot.lane.b32.xlu0 %v6331, 119
      %v6697 = vpop.permute.xlu0 %6696
      %6698 = vrot.lane.b32.xlu0 %v6334, 119
      %v6699 = vpop.permute.xlu0 %6698
      %6700 = vrot.lane.b32.xlu0 %v6336, 119
      %v6701 = vpop.permute.xlu0 %6700
      %6702 = vrot.lane.b32.xlu0 %v6339, 119
      %v6703 = vpop.permute.xlu0 %6702
      %6704 = vrot.lane.b32.xlu0 %v6341, 119
      %v6705 = vpop.permute.xlu0 %6704
      %6706 = vrot.lane.b32.xlu0 %v6344, 119
      %v6707 = vpop.permute.xlu0 %6706
      %6708 = vrot.lane.b32.xlu0 %v6346, 119
      %v6709 = vpop.permute.xlu0 %6708
      %6710 = vrot.lane.b32.xlu0 %v6349, 119
      %v6711 = vpop.permute.xlu0 %6710
      %6712 = vrot.lane.b32.xlu0 %v6351, 119
      %v6713 = vpop.permute.xlu0 %6712
      %6714 = vrot.lane.b32.xlu0 %v6354, 119
      %v6715 = vpop.permute.xlu0 %6714
      %6716 = vrot.lane.b32.xlu0 %v6356, 119
      %v6717 = vpop.permute.xlu0 %6716
      %6718 = vrot.lane.b32.xlu0 %v6359, 119
      %v6719 = vpop.permute.xlu0 %6718
      %6720 = vrot.lane.b32.xlu0 %v6361, 119
      %v6721 = vpop.permute.xlu0 %6720
      %6722 = vrot.lane.b32.xlu0 %v6364, 119
      %v6723 = vpop.permute.xlu0 %6722
      %6724 = vrot.lane.b32.xlu0 %v6366, 119
      %v6725 = vpop.permute.xlu0 %6724
      %6726 = vrot.lane.b32.xlu0 %v6369, 119
      %v6727 = vpop.permute.xlu0 %6726
      %6728 = vrot.lane.b32.xlu0 %v6371, 119
      %v6729 = vpop.permute.xlu0 %6728
      %6730 = vrot.lane.b32.xlu0 %v6374, 119
      %v6731 = vpop.permute.xlu0 %6730
      %6732 = vrot.lane.b32.xlu0 %v6376, 119
      %v6733 = vpop.permute.xlu0 %6732
      %6734 = vrot.lane.b32.xlu0 %v6379, 119
      %v6735 = vpop.permute.xlu0 %6734
      %6736 = vrot.lane.b32.xlu0 %v6381, 119
      %v6737 = vpop.permute.xlu0 %6736
      %6738 = vrot.lane.b32.xlu0 %v6384, 119
      %v6739 = vpop.permute.xlu0 %6738
      %6740 = vrot.lane.b32.xlu0 %v6386, 119
      %v6741 = vpop.permute.xlu0 %6740
      %6742 = vrot.lane.b32.xlu0 %v6389, 119
      %v6743 = vpop.permute.xlu0 %6742
      %6744 = vrot.lane.b32.xlu0 %v6391, 119
      %v6745 = vpop.permute.xlu0 %6744
      %6746 = vrot.lane.b32.xlu0 %v6394, 119
      %v6747 = vpop.permute.xlu0 %6746
      %6748 = vrot.lane.b32.xlu0 %v6396, 119
      %v6749 = vpop.permute.xlu0 %6748
      %v6782 = vmax.f32 %v6654, %v6687
      %v6783 = vmax.f32 %v6655, %v6689
      %v6784 = vmax.f32 %v6656, %v6691
      %v6785 = vmax.f32 %v6657, %v6693
      %v6786 = vmax.f32 %v6658, %v6695
      %v6787 = vmax.f32 %v6659, %v6697
      %v6788 = vmax.f32 %v6660, %v6699
      %v6789 = vmax.f32 %v6661, %v6701
      %v6790 = vmax.f32 %v6662, %v6703
      %v6791 = vmax.f32 %v6663, %v6705
      %v6792 = vmax.f32 %v6664, %v6707
      %v6793 = vmax.f32 %v6665, %v6709
      %v6794 = vmax.f32 %v6666, %v6711
      %v6795 = vmax.f32 %v6667, %v6713
      %v6796 = vmax.f32 %v6668, %v6715
      %v6797 = vmax.f32 %v6669, %v6717
      %v6798 = vmax.f32 %v6670, %v6719
      %v6799 = vmax.f32 %v6671, %v6721
      %v6800 = vmax.f32 %v6672, %v6723
      %v6801 = vmax.f32 %v6673, %v6725
      %v6802 = vmax.f32 %v6674, %v6727
      %v6803 = vmax.f32 %v6675, %v6729
      %v6804 = vmax.f32 %v6676, %v6731
      %v6805 = vmax.f32 %v6677, %v6733
      %v6806 = vmax.f32 %v6678, %v6735
      %v6807 = vmax.f32 %v6679, %v6737
      %v6808 = vmax.f32 %v6680, %v6739
      %v6809 = vmax.f32 %v6681, %v6741
      %v6810 = vmax.f32 %v6682, %v6743
      %v6811 = vmax.f32 %v6683, %v6745
      %v6812 = vmax.f32 %v6684, %v6747
      %v6813 = vmax.f32 %v6685, %v6749
      %v6814 = vmax.f32 %v6782, 0.0
      %v6815 = vmax.f32 %v6783, 0.0
      %v6816 = vmax.f32 %v6784, 0.0
      %v6817 = vmax.f32 %v6785, 0.0
      %v6818 = vmax.f32 %v6786, 0.0
      %v6819 = vmax.f32 %v6787, 0.0
      %v6820 = vmax.f32 %v6788, 0.0
      %v6821 = vmax.f32 %v6789, 0.0
      %v6822 = vmax.f32 %v6790, 0.0
      %v6823 = vmax.f32 %v6791, 0.0
      %v6824 = vmax.f32 %v6792, 0.0
      %v6825 = vmax.f32 %v6793, 0.0
      %v6826 = vmax.f32 %v6794, 0.0
      %v6827 = vmax.f32 %v6795, 0.0
      %v6828 = vmax.f32 %v6796, 0.0
      %v6829 = vmax.f32 %v6797, 0.0
      %v6830 = vmax.f32 %v6798, 0.0
      %v6831 = vmax.f32 %v6799, 0.0
      %v6832 = vmax.f32 %v6800, 0.0
      %v6833 = vmax.f32 %v6801, 0.0
      %v6834 = vmax.f32 %v6802, 0.0
      %v6835 = vmax.f32 %v6803, 0.0
      %v6836 = vmax.f32 %v6804, 0.0
      %v6837 = vmax.f32 %v6805, 0.0
      %v6838 = vmax.f32 %v6806, 0.0
      %v6839 = vmax.f32 %v6807, 0.0
      %v6840 = vmax.f32 %v6808, 0.0
      %v6841 = vmax.f32 %v6809, 0.0
      %v6842 = vmax.f32 %v6810, 0.0
      %v6843 = vmax.f32 %v6811, 0.0
      %v6844 = vmax.f32 %v6812, 0.0
      %v6845 = vmax.f32 %v6813, 0.0
      %vm6846 = vcmask 23552
      %6847 = vst.msk [vmem:[%s170] sm:$0xff] %vm6846, %v6814
      %6848 = vst.msk [vmem:[%s170 + $0x8] sm:$0xff] %vm6846, %v6815
      %6849 = vst.msk [vmem:[%s170 + $0x10] sm:$0xff] %vm6846, %v6816
      %6850 = vst.msk [vmem:[%s170 + $0x18] sm:$0xff] %vm6846, %v6817
      %6851 = vst.msk [vmem:[%s170 + $0x20] sm:$0xff] %vm6846, %v6818
      %6852 = vst.msk [vmem:[%s170 + $0x28] sm:$0xff] %vm6846, %v6819
      %6853 = vst.msk [vmem:[%s170 + $0x30] sm:$0xff] %vm6846, %v6820
      %6854 = vst.msk [vmem:[%s170 + $0x38] sm:$0xff] %vm6846, %v6821
      %6855 = vst.msk [vmem:[%s170 + $0x40] sm:$0xff] %vm6846, %v6822
      %6856 = vst.msk [vmem:[%s170 + $0x48] sm:$0xff] %vm6846, %v6823
      %6857 = vst.msk [vmem:[%s170 + $0x50] sm:$0xff] %vm6846, %v6824
      %6858 = vst.msk [vmem:[%s170 + $0x58] sm:$0xff] %vm6846, %v6825
      %6859 = vst.msk [vmem:[%s170 + $0x60] sm:$0xff] %vm6846, %v6826
      %6860 = vst.msk [vmem:[%s170 + $0x68] sm:$0xff] %vm6846, %v6827
      %6861 = vst.msk [vmem:[%s170 + $0x70] sm:$0xff] %vm6846, %v6828
      %6862 = vst.msk [vmem:[%s170 + $0x78] sm:$0xff] %vm6846, %v6829
      %6863 = vst.msk [vmem:[%s170 + $0x80] sm:$0xff] %vm6846, %v6830
      %6864 = vst.msk [vmem:[%s170 + $0x88] sm:$0xff] %vm6846, %v6831
      %6865 = vst.msk [vmem:[%s170 + $0x90] sm:$0xff] %vm6846, %v6832
      %6866 = vst.msk [vmem:[%s170 + $0x98] sm:$0xff] %vm6846, %v6833
      %6867 = vst.msk [vmem:[%s170 + $0xa0] sm:$0xff] %vm6846, %v6834
      %6868 = vst.msk [vmem:[%s170 + $0xa8] sm:$0xff] %vm6846, %v6835
      %6869 = vst.msk [vmem:[%s170 + $0xb0] sm:$0xff] %vm6846, %v6836
      %6870 = vst.msk [vmem:[%s170 + $0xb8] sm:$0xff] %vm6846, %v6837
      %6871 = vst.msk [vmem:[%s170 + $0xc0] sm:$0xff] %vm6846, %v6838
      %6872 = vst.msk [vmem:[%s170 + $0xc8] sm:$0xff] %vm6846, %v6839
      %6873 = vst.msk [vmem:[%s170 + $0xd0] sm:$0xff] %vm6846, %v6840
      %6874 = vst.msk [vmem:[%s170 + $0xd8] sm:$0xff] %vm6846, %v6841
      %6875 = vst.msk [vmem:[%s170 + $0xe0] sm:$0xff] %vm6846, %v6842
      %6876 = vst.msk [vmem:[%s170 + $0xe8] sm:$0xff] %vm6846, %v6843
      %6877 = vst.msk [vmem:[%s170 + $0xf0] sm:$0xff] %vm6846, %v6844
      %6878 = vst.msk [vmem:[%s170 + $0xf8] sm:$0xff] %vm6846, %v6845
      %p6879 = scmp.lt.s32.totalorder %s14, 1
      %s6880 = scalar_select %p6879, %s14, 1
      %s6881 = smul.addr %s6880, 32
      %s6882 = smul.addr %s6881, 8
      %s6883 = scalar_lea.vmem %s3, %s6882
      // Predicated region
      $region33: #{pyramid_maxout_forward.1} parent=31 // pred_check
        %p6884 = pneg %p100
      $region34: #{pyramid_maxout_forward.1} parent=31 // pred_check_branch
        %6886 = sbr.rel (%p6884) target = $region36
      $region35: #{pyramid_maxout_forward.1} parent=31 // pred_region
        _
      $region36: #{pyramid_maxout_forward.1} parent=31 // pred_fallthru
        _
    $region32: #{pyramid_maxout_forward.1} parent=5 // pred_fallthru
      _
    %p6887 = scmp.le.s32.totalorder 2, %s9
    // Predicated region
    $region37: #{pyramid_maxout_forward.1} parent=5 // pred_check
      %p6888 = pneg %p6887
    $region38: #{pyramid_maxout_forward.1} parent=5 // pred_check_branch
      %6890 = sbr.rel (%p6888) target = $region40
    $region39: #{pyramid_maxout_forward.1} parent=5 // pred_region
      %s6891 = ssub.s32 %s9, 2
      // Predicated region
      $region41: #{pyramid_maxout_forward.1} parent=39 // pred_check
        %p6892 = pneg %p106
      $region42: #{pyramid_maxout_forward.1} parent=39 // pred_check_branch
        %6894 = sbr.rel (%p6892) target = $region44
      $region43: #{pyramid_maxout_forward.1} parent=39 // pred_region
        %p6895 = scmp.lt.s32.totalorder %s15, 1
        %s6896 = scalar_select %p6895, %s15, 1
        %s6897 = smul.addr %s6896, 32
        %s6898 = smul.addr %s6897, 8
        %s6899 = scalar_lea.vmem %s3, %s6898
      $region44: #{pyramid_maxout_forward.1} parent=39 // pred_fallthru
        _
    $region40: #{pyramid_maxout_forward.1} parent=5 // pred_fallthru
      _
  $region6: #{pyramid_maxout_forward.1} parent=0 // loop_footer
    %s13 = sadd.s32 1, %s9
  $region7: #{pyramid_maxout_forward.1} parent=0 // loop_footer_branch
    %8 = sbr.rel target = $region3
  $region8: #{pyramid_maxout_forward.1} parent=0 // loop_exit
    _

</llo_original>
